<compile_context>
chip_gen: v6e
topology: v6e:2x2x1
jax: 0.10.0
libtpu: 0.0.40
codegen_flags: <defaults>
</compile_context>

<pallas_src>
import functools
import math

import jax
import jax.numpy as jnp
from jax.experimental import pallas as pl
from jax.experimental.pallas import tpu as pltpu

# ----------------------------- model config (small synthetic BERT) ----------
VOCAB = 100
VOCAB_PAD = 128          # lane-dense padded vocab for the one-hot gather
TYPE_VOCAB = 2
MAX_POS = 16
HIDDEN = 32
N_HEADS = 4
HEAD_DIM = HIDDEN // N_HEADS
INTER = 64
N_LAYERS = 2
LN_EPS = 1e-12

BATCH = 2
SEQ = 8

assert N_HEADS * HEAD_DIM == HIDDEN


# ----------------------------- kernel helpers --------------------------------
def _gelu_tanh(x):
    # TODO(synk): tanh approximation of GELU (HF uses exact erf-GELU).
    c = math.sqrt(2.0 / math.pi)
    return 0.5 * x * (1.0 + jnp.tanh(c * (x + 0.044715 * x * x * x)))


# ----------------------------- fused kernel ----------------------------------
def fused_bert_kernel(ids_ref, types_ref, mask_ref, pos_ref, pool_ref,
                      word_ref, type_ref,
                      emb_g_ref, emb_b_ref,
                      qkv_w_ref, qkv_b_ref,
                      o_w_ref, o_b_ref,
                      attn_g_ref, attn_b_ref,
                      i_w_ref, i_b_ref,
                      out_w_ref, out_b_ref,
                      oln_g_ref, oln_b_ref,
                      out_ref, *, batch, seq):
    """Whole BERT forward (post-tokenization) in a single kernel invocation."""
    B, S = batch, seq
    M = B * S
    G = N_HEADS * B            # fused (head, batch) groups
    f32 = jnp.float32

    def layer_norm(x, g, b):
        mu = jnp.mean(x, axis=-1, keepdims=True)
        xc = x - mu
        var = jnp.mean(xc * xc, axis=-1, keepdims=True)
        return xc * jax.lax.rsqrt(var + LN_EPS) * g + b

    def dot(a, b):
        return jnp.dot(a, b, preferred_element_type=f32)

    # ---- embeddings ---------------------------------------------------------
    # word: one-hot gather as a lane-dense (M,128)@(128,H) MXU matmul
    ids = ids_ref[...]                                               # (M, 1) int32
    word_oh = (jax.lax.broadcasted_iota(jnp.int32, (M, VOCAB_PAD), 1)
               == ids).astype(f32)
    emb = dot(word_oh, word_ref[...])                                # (M, H)

    # token type (vocab 2): pure VPU arithmetic select, no MXU contraction
    t = jnp.broadcast_to(types_ref[...].astype(f32), (M, HIDDEN))    # (M, H)
    row0 = type_ref[0:1, :]
    type_delta = type_ref[1:2, :] - row0                             # (1, H)
    emb = emb + row0 + t * type_delta

    # position: pre-tiled to (M, H) in the wrapper
    emb = emb + pos_ref[...]

    hidden = layer_norm(emb, emb_g_ref[...], emb_b_ref[...])
    # Dropout is a no-op in eval mode.

    add_mask = mask_ref[...]                                         # (G, S, S)
    scale = 1.0 / math.sqrt(HEAD_DIM)

    def to_heads(x):
        # (M, H) with head-grouped lanes -> (G, S, HD), groups g = h*B + b.
        # Sublane concat + leading-dim reshape only (no transposes).
        return jnp.concatenate(
            [x[:, h * HEAD_DIM:(h + 1) * HEAD_DIM] for h in range(N_HEADS)],
            axis=0).reshape(G, S, HEAD_DIM)

    for l in range(N_LAYERS):
        # ---- fused QKV projection: one (M, H) @ (H, 3H) GEMM ----
        qkv = dot(hidden, qkv_w_ref[l]) + qkv_b_ref[l]               # (M, 3H)
        q = to_heads(qkv[:, 0:HIDDEN])                               # (G, S, HD)
        k = to_heads(qkv[:, HIDDEN:2 * HIDDEN])
        v = to_heads(qkv[:, 2 * HIDDEN:3 * HIDDEN])

        # ---- attention, batched over all (batch, head) groups at once ----
        s = jnp.einsum('gqd,gkd->gqk', q, k,
                       preferred_element_type=f32) * scale + add_mask
        mx = jnp.max(s, axis=-1, keepdims=True)
        p = jnp.exp(s - mx)
        p = p * pl.reciprocal(jnp.sum(p, axis=-1, keepdims=True), approx=True)
        ctx = jnp.einsum('gqk,gkd->gqd', p, v,
                         preferred_element_type=f32)                 # (G, S, HD)

        # merge heads back to token-major (M, H): free reshape + lane concat
        ctx2 = ctx.reshape(N_HEADS * M, HEAD_DIM)
        ctx_m = jnp.concatenate(
            [ctx2[h * M:(h + 1) * M, :] for h in range(N_HEADS)], axis=1)

        # ---- attention output projection + Add&Norm ----
        attn_out = dot(ctx_m, o_w_ref[l]) + o_b_ref[l]
        hidden = layer_norm(attn_out + hidden, attn_g_ref[l], attn_b_ref[l])

        # ---- feed-forward + Add&Norm ----
        inter = _gelu_tanh(dot(hidden, i_w_ref[l]) + i_b_ref[l])
        ffn = dot(inter, out_w_ref[l]) + out_b_ref[l]
        hidden = layer_norm(ffn + hidden, oln_g_ref[l], oln_b_ref[l])

    # ---- mean over sequence (dim=1) as a single MXU matmul ----
    out_ref[...] = dot(pool_ref[...], hidden).astype(out_ref.dtype)  # (B, H)


# ----------------------------- pallas_call wrapper ----------------------------
def _zero_map(ndim):
    return lambda i: (0,) * ndim


def bert_embeddings_forward(params, input_ids, token_type_ids, attention_mask):
    """Equivalent of: BertModel(**data).last_hidden_state.mean(dim=1)."""
    B, S = input_ids.shape
    M = B * S
    G = N_HEADS * B

    ids2d = input_ids.reshape(M, 1).astype(jnp.int32)
    types2d = token_type_ids.reshape(M, 1).astype(jnp.int32)

    # Additive attention mask, pre-broadcast to head-major groups (g = h*B + b).
    base = (1.0 - attention_mask.astype(jnp.float32)) * -1e9          # (B, S)
    mask_g = jnp.broadcast_to(
        jnp.tile(base, (N_HEADS, 1))[:, None, :], (G, S, S))          # (G, S, S)

    # Positional embeddings pre-tiled over batch (constant data, wrapper-side).
    pos_tiled = jnp.tile(params["pos_emb"][:S, :], (B, 1))            # (M, H)

    # Mean-pool matrix: block-diagonal 1/S -> pooled = pool @ hidden.
    pool = jnp.kron(jnp.eye(B, dtype=jnp.float32),
                    jnp.full((1, S), 1.0 / S, jnp.float32))           # (B, M)

    # Lane-dense word table (zero-pad vocab 100 -> 128).
    word = jnp.pad(params["word_emb"], ((0, VOCAB_PAD - VOCAB), (0, 0)))

    inputs = (
        ids2d, types2d, mask_g, pos_tiled, pool,
        word, params["type_emb"],
        params["emb_ln_g"], params["emb_ln_b"],
        params["qkv_w"], params["qkv_b"],
        params["o_w"], params["o_b"],
        params["attn_ln_g"], params["attn_ln_b"],
        params["i_w"], params["i_b"],
        params["out_w"], params["out_b"],
        params["out_ln_g"], params["out_ln_b"],
    )

    in_specs = [pl.BlockSpec(x.shape, _zero_map(x.ndim)) for x in inputs]

    return pl.pallas_call(
        functools.partial(fused_bert_kernel, batch=B, seq=S),
        out_shape=jax.ShapeDtypeStruct((B, HIDDEN), jnp.float32),
        grid=(1,),
        in_specs=in_specs,
        out_specs=pl.BlockSpec((B, HIDDEN), lambda i: (0, 0)),
        compiler_params=pltpu.CompilerParams(
            dimension_semantics=("arbitrary",)),
    )(*inputs)


# ----------------------------- parameter construction ------------------------
def init_params(key):
    std = 0.02

    def normal(k, shape):
        return std * jax.random.normal(k, shape, dtype=jnp.float32)

    keys = iter(jax.random.split(key, 3 + N_LAYERS * 4))

    params = {
        "word_emb": normal(next(keys), (VOCAB, HIDDEN)),
        "pos_emb": normal(next(keys), (MAX_POS, HIDDEN)),
        "type_emb": normal(next(keys), (TYPE_VOCAB, HIDDEN)),
        "emb_ln_g": jnp.ones((1, HIDDEN), jnp.float32),
        "emb_ln_b": jnp.zeros((1, HIDDEN), jnp.float32),
    }

    qkv_w, qkv_b = [], []
    o_w, o_b = [], []
    attn_g, attn_b = [], []
    i_w, i_b = [], []
    out_w, out_b = [], []
    oln_g, oln_b = [], []
    for _ in range(N_LAYERS):
        qkv_w.append(normal(next(keys), (HIDDEN, 3 * HIDDEN)))       # fused Q|K|V
        qkv_b.append(jnp.zeros((1, 3 * HIDDEN), jnp.float32))
        o_w.append(normal(next(keys), (HIDDEN, HIDDEN)))
        o_b.append(jnp.zeros((1, HIDDEN), jnp.float32))
        attn_g.append(jnp.ones((1, HIDDEN), jnp.float32))
        attn_b.append(jnp.zeros((1, HIDDEN), jnp.float32))
        i_w.append(normal(next(keys), (HIDDEN, INTER)))
        i_b.append(jnp.zeros((1, INTER), jnp.float32))
        out_w.append(normal(next(keys), (INTER, HIDDEN)))
        out_b.append(jnp.zeros((1, HIDDEN), jnp.float32))
        oln_g.append(jnp.ones((1, HIDDEN), jnp.float32))
        oln_b.append(jnp.zeros((1, HIDDEN), jnp.float32))

    params.update({
        "qkv_w": jnp.stack(qkv_w), "qkv_b": jnp.stack(qkv_b),
        "o_w": jnp.stack(o_w), "o_b": jnp.stack(o_b),
        "attn_ln_g": jnp.stack(attn_g), "attn_ln_b": jnp.stack(attn_b),
        "i_w": jnp.stack(i_w), "i_b": jnp.stack(i_b),
        "out_w": jnp.stack(out_w), "out_b": jnp.stack(out_b),
        "out_ln_g": jnp.stack(oln_g), "out_ln_b": jnp.stack(oln_b),
    })
    return params


# ----------------------------- main ------------------------------------------
if __name__ == "__main__":
    key = jax.random.PRNGKey(0)
    k_param, k_ids = jax.random.split(key)

    params = init_params(k_param)

    input_ids = jax.random.randint(k_ids, (BATCH, SEQ), 0, VOCAB, dtype=jnp.int32)
    token_type_ids = jnp.zeros((BATCH, SEQ), dtype=jnp.int32)
    attention_mask = jnp.ones((BATCH, SEQ), dtype=jnp.int32)

    fwd = jax.jit(bert_embeddings_forward)
    out = fwd(params, input_ids, token_type_ids, attention_mask)
    out = jax.block_until_ready(out)

    assert out.shape == (BATCH, HIDDEN), out.shape
    assert bool(jnp.all(jnp.isfinite(out)))
    print("KERNEL_OK")
</pallas_src>

<mosaic_0001>
module attributes {stable_mosaic.version = 11 : i64} {
  func.func @fused_bert_kernel(%arg0: i32, %arg1: memref<16x1xi32, #tpu.memory_space<vmem>>, %arg2: memref<16x1xi32, #tpu.memory_space<vmem>>, %arg3: memref<8x8x8xf32, #tpu.memory_space<vmem>>, %arg4: memref<16x32xf32, #tpu.memory_space<vmem>>, %arg5: memref<2x16xf32, #tpu.memory_space<vmem>>, %arg6: memref<128x32xf32, #tpu.memory_space<vmem>>, %arg7: memref<2x32xf32, #tpu.memory_space<vmem>>, %arg8: memref<1x32xf32, #tpu.memory_space<vmem>>, %arg9: memref<1x32xf32, #tpu.memory_space<vmem>>, %arg10: memref<2x32x96xf32, #tpu.memory_space<vmem>>, %arg11: memref<2x1x96xf32, #tpu.memory_space<vmem>>, %arg12: memref<2x32x32xf32, #tpu.memory_space<vmem>>, %arg13: memref<2x1x32xf32, #tpu.memory_space<vmem>>, %arg14: memref<2x1x32xf32, #tpu.memory_space<vmem>>, %arg15: memref<2x1x32xf32, #tpu.memory_space<vmem>>, %arg16: memref<2x32x64xf32, #tpu.memory_space<vmem>>, %arg17: memref<2x1x64xf32, #tpu.memory_space<vmem>>, %arg18: memref<2x64x32xf32, #tpu.memory_space<vmem>>, %arg19: memref<2x1x32xf32, #tpu.memory_space<vmem>>, %arg20: memref<2x1x32xf32, #tpu.memory_space<vmem>>, %arg21: memref<2x1x32xf32, #tpu.memory_space<vmem>>, %arg22: memref<2x32xf32, #tpu.memory_space<vmem>>) attributes {dimension_semantics = [#tpu.dimension_semantics<arbitrary>], iteration_bounds = array<i64: 1>, scalar_prefetch = 0 : i64, scratch_operands = 0 : i64, tpu.core_type = #tpu.core_type<tc>, window_params = [{pipeline_mode = #tpu.pipeline_mode<synchronous>, transform_indices = @transform_0, window_bounds = array<i64: 16, 1>}, {pipeline_mode = #tpu.pipeline_mode<synchronous>, transform_indices = @transform_1, window_bounds = array<i64: 16, 1>}, {pipeline_mode = #tpu.pipeline_mode<synchronous>, transform_indices = @transform_2, window_bounds = array<i64: 8, 8, 8>}, {pipeline_mode = #tpu.pipeline_mode<synchronous>, transform_indices = @transform_3, window_bounds = array<i64: 16, 32>}, {pipeline_mode = #tpu.pipeline_mode<synchronous>, transform_indices = @transform_4, window_bounds = array<i64: 2, 16>}, {pipeline_mode = #tpu.pipeline_mode<synchronous>, transform_indices = @transform_5, window_bounds = array<i64: 128, 32>}, {pipeline_mode = #tpu.pipeline_mode<synchronous>, transform_indices = @transform_6, window_bounds = array<i64: 2, 32>}, {pipeline_mode = #tpu.pipeline_mode<synchronous>, transform_indices = @transform_7, window_bounds = array<i64: 1, 32>}, {pipeline_mode = #tpu.pipeline_mode<synchronous>, transform_indices = @transform_8, window_bounds = array<i64: 1, 32>}, {pipeline_mode = #tpu.pipeline_mode<synchronous>, transform_indices = @transform_9, window_bounds = array<i64: 2, 32, 96>}, {pipeline_mode = #tpu.pipeline_mode<synchronous>, transform_indices = @transform_10, window_bounds = array<i64: 2, 1, 96>}, {pipeline_mode = #tpu.pipeline_mode<synchronous>, transform_indices = @transform_11, window_bounds = array<i64: 2, 32, 32>}, {pipeline_mode = #tpu.pipeline_mode<synchronous>, transform_indices = @transform_12, window_bounds = array<i64: 2, 1, 32>}, {pipeline_mode = #tpu.pipeline_mode<synchronous>, transform_indices = @transform_13, window_bounds = array<i64: 2, 1, 32>}, {pipeline_mode = #tpu.pipeline_mode<synchronous>, transform_indices = @transform_14, window_bounds = array<i64: 2, 1, 32>}, {pipeline_mode = #tpu.pipeline_mode<synchronous>, transform_indices = @transform_15, window_bounds = array<i64: 2, 32, 64>}, {pipeline_mode = #tpu.pipeline_mode<synchronous>, transform_indices = @transform_16, window_bounds = array<i64: 2, 1, 64>}, {pipeline_mode = #tpu.pipeline_mode<synchronous>, transform_indices = @transform_17, window_bounds = array<i64: 2, 64, 32>}, {pipeline_mode = #tpu.pipeline_mode<synchronous>, transform_indices = @transform_18, window_bounds = array<i64: 2, 1, 32>}, {pipeline_mode = #tpu.pipeline_mode<synchronous>, transform_indices = @transform_19, window_bounds = array<i64: 2, 1, 32>}, {pipeline_mode = #tpu.pipeline_mode<synchronous>, transform_indices = @transform_20, window_bounds = array<i64: 2, 1, 32>}, {pipeline_mode = #tpu.pipeline_mode<synchronous>, transform_indices = @transform_21, window_bounds = array<i64: 2, 32>}]} {
    %c0 = arith.constant 0 : index
    %c0_0 = arith.constant 0 : index
    %0 = vector.load %arg1[%c0, %c0_0] : memref<16x1xi32, #tpu.memory_space<vmem>>, vector<16x1xi32>
    %1 = tpu.iota {dimensions = array<i32: 1>} : vector<16x128xi32>
    %2 = vector.broadcast %0 : vector<16x1xi32> to vector<16x128xi32>
    %3 = arith.cmpi eq, %1, %2 : vector<16x128xi32>
    %4 = arith.extui %3 : vector<16x128xi1> to vector<16x128xi32>
    %5 = arith.sitofp %4 : vector<16x128xi32> to vector<16x128xf32>
    %c0_1 = arith.constant 0 : index
    %c0_2 = arith.constant 0 : index
    %6 = vector.load %arg6[%c0_1, %c0_2] : memref<128x32xf32, #tpu.memory_space<vmem>>, vector<128x32xf32>
    %cst = arith.constant dense<0.000000e+00> : vector<16x32xf32>
    %7 = tpu.matmul %5, %6, %cst {dimension_numbers = #tpu.dot_dimension_numbers<[1], [0], [0], [1], [0, 0, 1, 1], [], []>} : vector<16x128xf32>, vector<128x32xf32>, vector<16x32xf32> -> vector<16x32xf32>
    %c0_3 = arith.constant 0 : index
    %c0_4 = arith.constant 0 : index
    %8 = vector.load %arg2[%c0_3, %c0_4] : memref<16x1xi32, #tpu.memory_space<vmem>>, vector<16x1xi32>
    %9 = arith.sitofp %8 : vector<16x1xi32> to vector<16x1xf32>
    %10 = vector.shape_cast %9 : vector<16x1xf32> to vector<16x1xf32>
    %11 = vector.broadcast %10 : vector<16x1xf32> to vector<16x32xf32>
    %c0_5 = arith.constant 0 : index
    %c0_6 = arith.constant 0 : index
    %12 = vector.load %arg7[%c0_5, %c0_6] : memref<2x32xf32, #tpu.memory_space<vmem>>, vector<1x32xf32>
    %c1 = arith.constant 1 : index
    %c0_7 = arith.constant 0 : index
    %13 = vector.load %arg7[%c1, %c0_7] : memref<2x32xf32, #tpu.memory_space<vmem>>, vector<1x32xf32>
    %14 = arith.subf %13, %12 : vector<1x32xf32>
    %15 = vector.broadcast %12 : vector<1x32xf32> to vector<16x32xf32>
    %16 = arith.addf %7, %15 : vector<16x32xf32>
    %17 = vector.broadcast %14 : vector<1x32xf32> to vector<16x32xf32>
    %18 = arith.mulf %11, %17 : vector<16x32xf32>
    %19 = arith.addf %16, %18 : vector<16x32xf32>
    %c0_8 = arith.constant 0 : index
    %c0_9 = arith.constant 0 : index
    %20 = vector.load %arg4[%c0_8, %c0_9] : memref<16x32xf32, #tpu.memory_space<vmem>>, vector<16x32xf32>
    %21 = arith.addf %19, %20 : vector<16x32xf32>
    %c0_10 = arith.constant 0 : index
    %c0_11 = arith.constant 0 : index
    %22 = vector.load %arg8[%c0_10, %c0_11] : memref<1x32xf32, #tpu.memory_space<vmem>>, vector<1x32xf32>
    %c0_12 = arith.constant 0 : index
    %c0_13 = arith.constant 0 : index
    %23 = vector.load %arg9[%c0_12, %c0_13] : memref<1x32xf32, #tpu.memory_space<vmem>>, vector<1x32xf32>
    %cst_14 = arith.constant dense<0.000000e+00> : vector<16xf32>
    %24 = vector.multi_reduction <add>, %21, %cst_14 [1] : vector<16x32xf32> to vector<16xf32>
    %25 = vector.shape_cast %24 : vector<16xf32> to vector<16x1xf32>
    %cst_15 = arith.constant 3.200000e+01 : f32
    %26 = vector.broadcast %cst_15 : f32 to vector<16x1xf32>
    %27 = arith.divf %25, %26 : vector<16x1xf32>
    %28 = vector.broadcast %27 : vector<16x1xf32> to vector<16x32xf32>
    %29 = arith.subf %21, %28 : vector<16x32xf32>
    %30 = arith.mulf %29, %29 : vector<16x32xf32>
    %cst_16 = arith.constant dense<0.000000e+00> : vector<16xf32>
    %31 = vector.multi_reduction <add>, %30, %cst_16 [1] : vector<16x32xf32> to vector<16xf32>
    %32 = vector.shape_cast %31 : vector<16xf32> to vector<16x1xf32>
    %cst_17 = arith.constant 3.200000e+01 : f32
    %33 = vector.broadcast %cst_17 : f32 to vector<16x1xf32>
    %34 = arith.divf %32, %33 : vector<16x1xf32>
    %cst_18 = arith.constant 9.99999996E-13 : f32
    %35 = vector.broadcast %cst_18 : f32 to vector<16x1xf32>
    %36 = arith.addf %34, %35 : vector<16x1xf32>
    %37 = math.rsqrt %36 : vector<16x1xf32>
    %38 = vector.broadcast %37 : vector<16x1xf32> to vector<16x32xf32>
    %39 = arith.mulf %29, %38 : vector<16x32xf32>
    %40 = vector.broadcast %22 : vector<1x32xf32> to vector<16x32xf32>
    %41 = arith.mulf %39, %40 : vector<16x32xf32>
    %42 = vector.broadcast %23 : vector<1x32xf32> to vector<16x32xf32>
    %43 = arith.addf %41, %42 : vector<16x32xf32>
    %c0_19 = arith.constant 0 : index
    %c0_20 = arith.constant 0 : index
    %c0_21 = arith.constant 0 : index
    %44 = vector.load %arg3[%c0_19, %c0_20, %c0_21] : memref<8x8x8xf32, #tpu.memory_space<vmem>>, vector<8x8x8xf32>
    %c0_22 = arith.constant 0 : index
    %c0_23 = arith.constant 0 : index
    %c0_24 = arith.constant 0 : index
    %45 = vector.load %arg10[%c0_22, %c0_23, %c0_24] : memref<2x32x96xf32, #tpu.memory_space<vmem>>, vector<1x32x96xf32>
    %46 = vector.shape_cast %45 : vector<1x32x96xf32> to vector<32x96xf32>
    %cst_25 = arith.constant dense<0.000000e+00> : vector<16x96xf32>
    %47 = tpu.matmul %43, %46, %cst_25 {dimension_numbers = #tpu.dot_dimension_numbers<[1], [0], [0], [1], [0, 0, 1, 1], [], []>} : vector<16x32xf32>, vector<32x96xf32>, vector<16x96xf32> -> vector<16x96xf32>
    %c0_26 = arith.constant 0 : index
    %c0_27 = arith.constant 0 : index
    %c0_28 = arith.constant 0 : index
    %48 = vector.load %arg11[%c0_26, %c0_27, %c0_28] : memref<2x1x96xf32, #tpu.memory_space<vmem>>, vector<1x1x96xf32>
    %49 = vector.shape_cast %48 : vector<1x1x96xf32> to vector<1x96xf32>
    %50 = vector.broadcast %49 : vector<1x96xf32> to vector<16x96xf32>
    %51 = arith.addf %47, %50 : vector<16x96xf32>
    %52 = vector.extract_strided_slice %51 {offsets = [0, 0], sizes = [16, 32], strides = [1, 1]} : vector<16x96xf32> to vector<16x32xf32>
    %53 = vector.extract_strided_slice %52 {offsets = [0, 0], sizes = [16, 8], strides = [1, 1]} : vector<16x32xf32> to vector<16x8xf32>
    %54 = vector.extract_strided_slice %52 {offsets = [0, 8], sizes = [16, 8], strides = [1, 1]} : vector<16x32xf32> to vector<16x8xf32>
    %55 = vector.extract_strided_slice %52 {offsets = [0, 16], sizes = [16, 8], strides = [1, 1]} : vector<16x32xf32> to vector<16x8xf32>
    %56 = vector.extract_strided_slice %52 {offsets = [0, 24], sizes = [16, 8], strides = [1, 1]} : vector<16x32xf32> to vector<16x8xf32>
    %57 = tpu.concatenate %53, %54, %55, %56 in 0 : vector<16x8xf32>, vector<16x8xf32>, vector<16x8xf32>, vector<16x8xf32> -> vector<64x8xf32>
    %58 = vector.shape_cast %57 : vector<64x8xf32> to vector<8x8x8xf32>
    %59 = vector.extract_strided_slice %51 {offsets = [0, 32], sizes = [16, 32], strides = [1, 1]} : vector<16x96xf32> to vector<16x32xf32>
    %60 = vector.extract_strided_slice %59 {offsets = [0, 0], sizes = [16, 8], strides = [1, 1]} : vector<16x32xf32> to vector<16x8xf32>
    %61 = vector.extract_strided_slice %59 {offsets = [0, 8], sizes = [16, 8], strides = [1, 1]} : vector<16x32xf32> to vector<16x8xf32>
    %62 = vector.extract_strided_slice %59 {offsets = [0, 16], sizes = [16, 8], strides = [1, 1]} : vector<16x32xf32> to vector<16x8xf32>
    %63 = vector.extract_strided_slice %59 {offsets = [0, 24], sizes = [16, 8], strides = [1, 1]} : vector<16x32xf32> to vector<16x8xf32>
    %64 = tpu.concatenate %60, %61, %62, %63 in 0 : vector<16x8xf32>, vector<16x8xf32>, vector<16x8xf32>, vector<16x8xf32> -> vector<64x8xf32>
    %65 = vector.shape_cast %64 : vector<64x8xf32> to vector<8x8x8xf32>
    %66 = vector.extract_strided_slice %51 {offsets = [0, 64], sizes = [16, 32], strides = [1, 1]} : vector<16x96xf32> to vector<16x32xf32>
    %67 = vector.extract_strided_slice %66 {offsets = [0, 0], sizes = [16, 8], strides = [1, 1]} : vector<16x32xf32> to vector<16x8xf32>
    %68 = vector.extract_strided_slice %66 {offsets = [0, 8], sizes = [16, 8], strides = [1, 1]} : vector<16x32xf32> to vector<16x8xf32>
    %69 = vector.extract_strided_slice %66 {offsets = [0, 16], sizes = [16, 8], strides = [1, 1]} : vector<16x32xf32> to vector<16x8xf32>
    %70 = vector.extract_strided_slice %66 {offsets = [0, 24], sizes = [16, 8], strides = [1, 1]} : vector<16x32xf32> to vector<16x8xf32>
    %71 = tpu.concatenate %67, %68, %69, %70 in 0 : vector<16x8xf32>, vector<16x8xf32>, vector<16x8xf32>, vector<16x8xf32> -> vector<64x8xf32>
    %72 = vector.shape_cast %71 : vector<64x8xf32> to vector<8x8x8xf32>
    "tpu.trace_start"() <{level = 10 : i32, message = "gqd,gkd->gqk"}> : () -> ()
    %cst_29 = arith.constant dense<0.000000e+00> : vector<8x8x8xf32>
    %73 = tpu.matmul %58, %65, %cst_29 {dimension_numbers = #tpu.dot_dimension_numbers<[2], [2], [1], [1], [0, 0, 0, 1, 1, 1], [0], [0]>} : vector<8x8x8xf32>, vector<8x8x8xf32>, vector<8x8x8xf32> -> vector<8x8x8xf32>
    "tpu.trace_stop"() : () -> ()
    %cst_30 = arith.constant 0.353553385 : f32
    %74 = vector.broadcast %cst_30 : f32 to vector<8x8x8xf32>
    %75 = arith.mulf %73, %74 : vector<8x8x8xf32>
    %76 = arith.addf %75, %44 : vector<8x8x8xf32>
    %cst_31 = arith.constant dense<0xFF800000> : vector<8x8xf32>
    %77 = vector.multi_reduction <maximumf>, %76, %cst_31 [2] : vector<8x8x8xf32> to vector<8x8xf32>
    %78 = vector.shape_cast %77 : vector<8x8xf32> to vector<8x8x1xf32>
    %79 = vector.broadcast %78 : vector<8x8x1xf32> to vector<8x8x8xf32>
    %80 = arith.subf %76, %79 : vector<8x8x8xf32>
    %81 = math.exp %80 : vector<8x8x8xf32>
    %cst_32 = arith.constant dense<0.000000e+00> : vector<8x8xf32>
    %82 = vector.multi_reduction <add>, %81, %cst_32 [2] : vector<8x8x8xf32> to vector<8x8xf32>
    %83 = vector.shape_cast %82 : vector<8x8xf32> to vector<8x8x1xf32>
    %84 = tpu.reciprocal %83 {approx = true} : vector<8x8x1xf32> -> vector<8x8x1xf32>
    %85 = vector.broadcast %84 : vector<8x8x1xf32> to vector<8x8x8xf32>
    %86 = arith.mulf %81, %85 : vector<8x8x8xf32>
    "tpu.trace_start"() <{level = 10 : i32, message = "gqk,gkd->gqd"}> : () -> ()
    %cst_33 = arith.constant dense<0.000000e+00> : vector<8x8x8xf32>
    %87 = tpu.matmul %86, %72, %cst_33 {dimension_numbers = #tpu.dot_dimension_numbers<[2], [1], [1], [2], [0, 0, 0, 1, 1, 2], [0], [0]>} : vector<8x8x8xf32>, vector<8x8x8xf32>, vector<8x8x8xf32> -> vector<8x8x8xf32>
    "tpu.trace_stop"() : () -> ()
    %88 = vector.shape_cast %87 : vector<8x8x8xf32> to vector<64x8xf32>
    %89 = vector.extract_strided_slice %88 {offsets = [0, 0], sizes = [16, 8], strides = [1, 1]} : vector<64x8xf32> to vector<16x8xf32>
    %90 = vector.extract_strided_slice %88 {offsets = [16, 0], sizes = [16, 8], strides = [1, 1]} : vector<64x8xf32> to vector<16x8xf32>
    %91 = vector.extract_strided_slice %88 {offsets = [32, 0], sizes = [16, 8], strides = [1, 1]} : vector<64x8xf32> to vector<16x8xf32>
    %92 = vector.extract_strided_slice %88 {offsets = [48, 0], sizes = [16, 8], strides = [1, 1]} : vector<64x8xf32> to vector<16x8xf32>
    %93 = tpu.concatenate %89, %90, %91, %92 in 1 : vector<16x8xf32>, vector<16x8xf32>, vector<16x8xf32>, vector<16x8xf32> -> vector<16x32xf32>
    %c0_34 = arith.constant 0 : index
    %c0_35 = arith.constant 0 : index
    %c0_36 = arith.constant 0 : index
    %94 = vector.load %arg12[%c0_34, %c0_35, %c0_36] : memref<2x32x32xf32, #tpu.memory_space<vmem>>, vector<1x32x32xf32>
    %95 = vector.shape_cast %94 : vector<1x32x32xf32> to vector<32x32xf32>
    %cst_37 = arith.constant dense<0.000000e+00> : vector<16x32xf32>
    %96 = tpu.matmul %93, %95, %cst_37 {dimension_numbers = #tpu.dot_dimension_numbers<[1], [0], [0], [1], [0, 0, 1, 1], [], []>} : vector<16x32xf32>, vector<32x32xf32>, vector<16x32xf32> -> vector<16x32xf32>
    %c0_38 = arith.constant 0 : index
    %c0_39 = arith.constant 0 : index
    %c0_40 = arith.constant 0 : index
    %97 = vector.load %arg13[%c0_38, %c0_39, %c0_40] : memref<2x1x32xf32, #tpu.memory_space<vmem>>, vector<1x1x32xf32>
    %98 = vector.shape_cast %97 : vector<1x1x32xf32> to vector<1x32xf32>
    %99 = vector.broadcast %98 : vector<1x32xf32> to vector<16x32xf32>
    %100 = arith.addf %96, %99 : vector<16x32xf32>
    %101 = arith.addf %100, %43 : vector<16x32xf32>
    %c0_41 = arith.constant 0 : index
    %c0_42 = arith.constant 0 : index
    %c0_43 = arith.constant 0 : index
    %102 = vector.load %arg14[%c0_41, %c0_42, %c0_43] : memref<2x1x32xf32, #tpu.memory_space<vmem>>, vector<1x1x32xf32>
    %103 = vector.shape_cast %102 : vector<1x1x32xf32> to vector<1x32xf32>
    %c0_44 = arith.constant 0 : index
    %c0_45 = arith.constant 0 : index
    %c0_46 = arith.constant 0 : index
    %104 = vector.load %arg15[%c0_44, %c0_45, %c0_46] : memref<2x1x32xf32, #tpu.memory_space<vmem>>, vector<1x1x32xf32>
    %105 = vector.shape_cast %104 : vector<1x1x32xf32> to vector<1x32xf32>
    %cst_47 = arith.constant dense<0.000000e+00> : vector<16xf32>
    %106 = vector.multi_reduction <add>, %101, %cst_47 [1] : vector<16x32xf32> to vector<16xf32>
    %107 = vector.shape_cast %106 : vector<16xf32> to vector<16x1xf32>
    %cst_48 = arith.constant 3.200000e+01 : f32
    %108 = vector.broadcast %cst_48 : f32 to vector<16x1xf32>
    %109 = arith.divf %107, %108 : vector<16x1xf32>
    %110 = vector.broadcast %109 : vector<16x1xf32> to vector<16x32xf32>
    %111 = arith.subf %101, %110 : vector<16x32xf32>
    %112 = arith.mulf %111, %111 : vector<16x32xf32>
    %cst_49 = arith.constant dense<0.000000e+00> : vector<16xf32>
    %113 = vector.multi_reduction <add>, %112, %cst_49 [1] : vector<16x32xf32> to vector<16xf32>
    %114 = vector.shape_cast %113 : vector<16xf32> to vector<16x1xf32>
    %cst_50 = arith.constant 3.200000e+01 : f32
    %115 = vector.broadcast %cst_50 : f32 to vector<16x1xf32>
    %116 = arith.divf %114, %115 : vector<16x1xf32>
    %cst_51 = arith.constant 9.99999996E-13 : f32
    %117 = vector.broadcast %cst_51 : f32 to vector<16x1xf32>
    %118 = arith.addf %116, %117 : vector<16x1xf32>
    %119 = math.rsqrt %118 : vector<16x1xf32>
    %120 = vector.broadcast %119 : vector<16x1xf32> to vector<16x32xf32>
    %121 = arith.mulf %111, %120 : vector<16x32xf32>
    %122 = vector.broadcast %103 : vector<1x32xf32> to vector<16x32xf32>
    %123 = arith.mulf %121, %122 : vector<16x32xf32>
    %124 = vector.broadcast %105 : vector<1x32xf32> to vector<16x32xf32>
    %125 = arith.addf %123, %124 : vector<16x32xf32>
    %c0_52 = arith.constant 0 : index
    %c0_53 = arith.constant 0 : index
    %c0_54 = arith.constant 0 : index
    %126 = vector.load %arg16[%c0_52, %c0_53, %c0_54] : memref<2x32x64xf32, #tpu.memory_space<vmem>>, vector<1x32x64xf32>
    %127 = vector.shape_cast %126 : vector<1x32x64xf32> to vector<32x64xf32>
    %cst_55 = arith.constant dense<0.000000e+00> : vector<16x64xf32>
    %128 = tpu.matmul %125, %127, %cst_55 {dimension_numbers = #tpu.dot_dimension_numbers<[1], [0], [0], [1], [0, 0, 1, 1], [], []>} : vector<16x32xf32>, vector<32x64xf32>, vector<16x64xf32> -> vector<16x64xf32>
    %c0_56 = arith.constant 0 : index
    %c0_57 = arith.constant 0 : index
    %c0_58 = arith.constant 0 : index
    %129 = vector.load %arg17[%c0_56, %c0_57, %c0_58] : memref<2x1x64xf32, #tpu.memory_space<vmem>>, vector<1x1x64xf32>
    %130 = vector.shape_cast %129 : vector<1x1x64xf32> to vector<1x64xf32>
    %131 = vector.broadcast %130 : vector<1x64xf32> to vector<16x64xf32>
    %132 = arith.addf %128, %131 : vector<16x64xf32>
    %cst_59 = arith.constant 5.000000e-01 : f32
    %133 = vector.broadcast %cst_59 : f32 to vector<16x64xf32>
    %134 = arith.mulf %133, %132 : vector<16x64xf32>
    %cst_60 = arith.constant 4.471500e-02 : f32
    %135 = vector.broadcast %cst_60 : f32 to vector<16x64xf32>
    %136 = arith.mulf %135, %132 : vector<16x64xf32>
    %137 = arith.mulf %136, %132 : vector<16x64xf32>
    %138 = arith.mulf %137, %132 : vector<16x64xf32>
    %139 = arith.addf %132, %138 : vector<16x64xf32>
    %cst_61 = arith.constant 0.797884583 : f32
    %140 = vector.broadcast %cst_61 : f32 to vector<16x64xf32>
    %141 = arith.mulf %140, %139 : vector<16x64xf32>
    %142 = math.tanh %141 : vector<16x64xf32>
    %cst_62 = arith.constant 1.000000e+00 : f32
    %143 = vector.broadcast %cst_62 : f32 to vector<16x64xf32>
    %144 = arith.addf %143, %142 : vector<16x64xf32>
    %145 = arith.mulf %134, %144 : vector<16x64xf32>
    %c0_63 = arith.constant 0 : index
    %c0_64 = arith.constant 0 : index
    %c0_65 = arith.constant 0 : index
    %146 = vector.load %arg18[%c0_63, %c0_64, %c0_65] : memref<2x64x32xf32, #tpu.memory_space<vmem>>, vector<1x64x32xf32>
    %147 = vector.shape_cast %146 : vector<1x64x32xf32> to vector<64x32xf32>
    %cst_66 = arith.constant dense<0.000000e+00> : vector<16x32xf32>
    %148 = tpu.matmul %145, %147, %cst_66 {dimension_numbers = #tpu.dot_dimension_numbers<[1], [0], [0], [1], [0, 0, 1, 1], [], []>} : vector<16x64xf32>, vector<64x32xf32>, vector<16x32xf32> -> vector<16x32xf32>
    %c0_67 = arith.constant 0 : index
    %c0_68 = arith.constant 0 : index
    %c0_69 = arith.constant 0 : index
    %149 = vector.load %arg19[%c0_67, %c0_68, %c0_69] : memref<2x1x32xf32, #tpu.memory_space<vmem>>, vector<1x1x32xf32>
    %150 = vector.shape_cast %149 : vector<1x1x32xf32> to vector<1x32xf32>
    %151 = vector.broadcast %150 : vector<1x32xf32> to vector<16x32xf32>
    %152 = arith.addf %148, %151 : vector<16x32xf32>
    %153 = arith.addf %152, %125 : vector<16x32xf32>
    %c0_70 = arith.constant 0 : index
    %c0_71 = arith.constant 0 : index
    %c0_72 = arith.constant 0 : index
    %154 = vector.load %arg20[%c0_70, %c0_71, %c0_72] : memref<2x1x32xf32, #tpu.memory_space<vmem>>, vector<1x1x32xf32>
    %155 = vector.shape_cast %154 : vector<1x1x32xf32> to vector<1x32xf32>
    %c0_73 = arith.constant 0 : index
    %c0_74 = arith.constant 0 : index
    %c0_75 = arith.constant 0 : index
    %156 = vector.load %arg21[%c0_73, %c0_74, %c0_75] : memref<2x1x32xf32, #tpu.memory_space<vmem>>, vector<1x1x32xf32>
    %157 = vector.shape_cast %156 : vector<1x1x32xf32> to vector<1x32xf32>
    %cst_76 = arith.constant dense<0.000000e+00> : vector<16xf32>
    %158 = vector.multi_reduction <add>, %153, %cst_76 [1] : vector<16x32xf32> to vector<16xf32>
    %159 = vector.shape_cast %158 : vector<16xf32> to vector<16x1xf32>
    %cst_77 = arith.constant 3.200000e+01 : f32
    %160 = vector.broadcast %cst_77 : f32 to vector<16x1xf32>
    %161 = arith.divf %159, %160 : vector<16x1xf32>
    %162 = vector.broadcast %161 : vector<16x1xf32> to vector<16x32xf32>
    %163 = arith.subf %153, %162 : vector<16x32xf32>
    %164 = arith.mulf %163, %163 : vector<16x32xf32>
    %cst_78 = arith.constant dense<0.000000e+00> : vector<16xf32>
    %165 = vector.multi_reduction <add>, %164, %cst_78 [1] : vector<16x32xf32> to vector<16xf32>
    %166 = vector.shape_cast %165 : vector<16xf32> to vector<16x1xf32>
    %cst_79 = arith.constant 3.200000e+01 : f32
    %167 = vector.broadcast %cst_79 : f32 to vector<16x1xf32>
    %168 = arith.divf %166, %167 : vector<16x1xf32>
    %cst_80 = arith.constant 9.99999996E-13 : f32
    %169 = vector.broadcast %cst_80 : f32 to vector<16x1xf32>
    %170 = arith.addf %168, %169 : vector<16x1xf32>
    %171 = math.rsqrt %170 : vector<16x1xf32>
    %172 = vector.broadcast %171 : vector<16x1xf32> to vector<16x32xf32>
    %173 = arith.mulf %163, %172 : vector<16x32xf32>
    %174 = vector.broadcast %155 : vector<1x32xf32> to vector<16x32xf32>
    %175 = arith.mulf %173, %174 : vector<16x32xf32>
    %176 = vector.broadcast %157 : vector<1x32xf32> to vector<16x32xf32>
    %177 = arith.addf %175, %176 : vector<16x32xf32>
    %c1_81 = arith.constant 1 : index
    %c0_82 = arith.constant 0 : index
    %c0_83 = arith.constant 0 : index
    %178 = vector.load %arg10[%c1_81, %c0_82, %c0_83] : memref<2x32x96xf32, #tpu.memory_space<vmem>>, vector<1x32x96xf32>
    %179 = vector.shape_cast %178 : vector<1x32x96xf32> to vector<32x96xf32>
    %cst_84 = arith.constant dense<0.000000e+00> : vector<16x96xf32>
    %180 = tpu.matmul %177, %179, %cst_84 {dimension_numbers = #tpu.dot_dimension_numbers<[1], [0], [0], [1], [0, 0, 1, 1], [], []>} : vector<16x32xf32>, vector<32x96xf32>, vector<16x96xf32> -> vector<16x96xf32>
    %c1_85 = arith.constant 1 : index
    %c0_86 = arith.constant 0 : index
    %c0_87 = arith.constant 0 : index
    %181 = vector.load %arg11[%c1_85, %c0_86, %c0_87] : memref<2x1x96xf32, #tpu.memory_space<vmem>>, vector<1x1x96xf32>
    %182 = vector.shape_cast %181 : vector<1x1x96xf32> to vector<1x96xf32>
    %183 = vector.broadcast %182 : vector<1x96xf32> to vector<16x96xf32>
    %184 = arith.addf %180, %183 : vector<16x96xf32>
    %185 = vector.extract_strided_slice %184 {offsets = [0, 0], sizes = [16, 32], strides = [1, 1]} : vector<16x96xf32> to vector<16x32xf32>
    %186 = vector.extract_strided_slice %185 {offsets = [0, 0], sizes = [16, 8], strides = [1, 1]} : vector<16x32xf32> to vector<16x8xf32>
    %187 = vector.extract_strided_slice %185 {offsets = [0, 8], sizes = [16, 8], strides = [1, 1]} : vector<16x32xf32> to vector<16x8xf32>
    %188 = vector.extract_strided_slice %185 {offsets = [0, 16], sizes = [16, 8], strides = [1, 1]} : vector<16x32xf32> to vector<16x8xf32>
    %189 = vector.extract_strided_slice %185 {offsets = [0, 24], sizes = [16, 8], strides = [1, 1]} : vector<16x32xf32> to vector<16x8xf32>
    %190 = tpu.concatenate %186, %187, %188, %189 in 0 : vector<16x8xf32>, vector<16x8xf32>, vector<16x8xf32>, vector<16x8xf32> -> vector<64x8xf32>
    %191 = vector.shape_cast %190 : vector<64x8xf32> to vector<8x8x8xf32>
    %192 = vector.extract_strided_slice %184 {offsets = [0, 32], sizes = [16, 32], strides = [1, 1]} : vector<16x96xf32> to vector<16x32xf32>
    %193 = vector.extract_strided_slice %192 {offsets = [0, 0], sizes = [16, 8], strides = [1, 1]} : vector<16x32xf32> to vector<16x8xf32>
    %194 = vector.extract_strided_slice %192 {offsets = [0, 8], sizes = [16, 8], strides = [1, 1]} : vector<16x32xf32> to vector<16x8xf32>
    %195 = vector.extract_strided_slice %192 {offsets = [0, 16], sizes = [16, 8], strides = [1, 1]} : vector<16x32xf32> to vector<16x8xf32>
    %196 = vector.extract_strided_slice %192 {offsets = [0, 24], sizes = [16, 8], strides = [1, 1]} : vector<16x32xf32> to vector<16x8xf32>
    %197 = tpu.concatenate %193, %194, %195, %196 in 0 : vector<16x8xf32>, vector<16x8xf32>, vector<16x8xf32>, vector<16x8xf32> -> vector<64x8xf32>
    %198 = vector.shape_cast %197 : vector<64x8xf32> to vector<8x8x8xf32>
    %199 = vector.extract_strided_slice %184 {offsets = [0, 64], sizes = [16, 32], strides = [1, 1]} : vector<16x96xf32> to vector<16x32xf32>
    %200 = vector.extract_strided_slice %199 {offsets = [0, 0], sizes = [16, 8], strides = [1, 1]} : vector<16x32xf32> to vector<16x8xf32>
    %201 = vector.extract_strided_slice %199 {offsets = [0, 8], sizes = [16, 8], strides = [1, 1]} : vector<16x32xf32> to vector<16x8xf32>
    %202 = vector.extract_strided_slice %199 {offsets = [0, 16], sizes = [16, 8], strides = [1, 1]} : vector<16x32xf32> to vector<16x8xf32>
    %203 = vector.extract_strided_slice %199 {offsets = [0, 24], sizes = [16, 8], strides = [1, 1]} : vector<16x32xf32> to vector<16x8xf32>
    %204 = tpu.concatenate %200, %201, %202, %203 in 0 : vector<16x8xf32>, vector<16x8xf32>, vector<16x8xf32>, vector<16x8xf32> -> vector<64x8xf32>
    %205 = vector.shape_cast %204 : vector<64x8xf32> to vector<8x8x8xf32>
    "tpu.trace_start"() <{level = 10 : i32, message = "gqd,gkd->gqk"}> : () -> ()
    %cst_88 = arith.constant dense<0.000000e+00> : vector<8x8x8xf32>
    %206 = tpu.matmul %191, %198, %cst_88 {dimension_numbers = #tpu.dot_dimension_numbers<[2], [2], [1], [1], [0, 0, 0, 1, 1, 1], [0], [0]>} : vector<8x8x8xf32>, vector<8x8x8xf32>, vector<8x8x8xf32> -> vector<8x8x8xf32>
    "tpu.trace_stop"() : () -> ()
    %cst_89 = arith.constant 0.353553385 : f32
    %207 = vector.broadcast %cst_89 : f32 to vector<8x8x8xf32>
    %208 = arith.mulf %206, %207 : vector<8x8x8xf32>
    %209 = arith.addf %208, %44 : vector<8x8x8xf32>
    %cst_90 = arith.constant dense<0xFF800000> : vector<8x8xf32>
    %210 = vector.multi_reduction <maximumf>, %209, %cst_90 [2] : vector<8x8x8xf32> to vector<8x8xf32>
    %211 = vector.shape_cast %210 : vector<8x8xf32> to vector<8x8x1xf32>
    %212 = vector.broadcast %211 : vector<8x8x1xf32> to vector<8x8x8xf32>
    %213 = arith.subf %209, %212 : vector<8x8x8xf32>
    %214 = math.exp %213 : vector<8x8x8xf32>
    %cst_91 = arith.constant dense<0.000000e+00> : vector<8x8xf32>
    %215 = vector.multi_reduction <add>, %214, %cst_91 [2] : vector<8x8x8xf32> to vector<8x8xf32>
    %216 = vector.shape_cast %215 : vector<8x8xf32> to vector<8x8x1xf32>
    %217 = tpu.reciprocal %216 {approx = true} : vector<8x8x1xf32> -> vector<8x8x1xf32>
    %218 = vector.broadcast %217 : vector<8x8x1xf32> to vector<8x8x8xf32>
    %219 = arith.mulf %214, %218 : vector<8x8x8xf32>
    "tpu.trace_start"() <{level = 10 : i32, message = "gqk,gkd->gqd"}> : () -> ()
    %cst_92 = arith.constant dense<0.000000e+00> : vector<8x8x8xf32>
    %220 = tpu.matmul %219, %205, %cst_92 {dimension_numbers = #tpu.dot_dimension_numbers<[2], [1], [1], [2], [0, 0, 0, 1, 1, 2], [0], [0]>} : vector<8x8x8xf32>, vector<8x8x8xf32>, vector<8x8x8xf32> -> vector<8x8x8xf32>
    "tpu.trace_stop"() : () -> ()
    %221 = vector.shape_cast %220 : vector<8x8x8xf32> to vector<64x8xf32>
    %222 = vector.extract_strided_slice %221 {offsets = [0, 0], sizes = [16, 8], strides = [1, 1]} : vector<64x8xf32> to vector<16x8xf32>
    %223 = vector.extract_strided_slice %221 {offsets = [16, 0], sizes = [16, 8], strides = [1, 1]} : vector<64x8xf32> to vector<16x8xf32>
    %224 = vector.extract_strided_slice %221 {offsets = [32, 0], sizes = [16, 8], strides = [1, 1]} : vector<64x8xf32> to vector<16x8xf32>
    %225 = vector.extract_strided_slice %221 {offsets = [48, 0], sizes = [16, 8], strides = [1, 1]} : vector<64x8xf32> to vector<16x8xf32>
    %226 = tpu.concatenate %222, %223, %224, %225 in 1 : vector<16x8xf32>, vector<16x8xf32>, vector<16x8xf32>, vector<16x8xf32> -> vector<16x32xf32>
    %c1_93 = arith.constant 1 : index
    %c0_94 = arith.constant 0 : index
    %c0_95 = arith.constant 0 : index
    %227 = vector.load %arg12[%c1_93, %c0_94, %c0_95] : memref<2x32x32xf32, #tpu.memory_space<vmem>>, vector<1x32x32xf32>
    %228 = vector.shape_cast %227 : vector<1x32x32xf32> to vector<32x32xf32>
    %cst_96 = arith.constant dense<0.000000e+00> : vector<16x32xf32>
    %229 = tpu.matmul %226, %228, %cst_96 {dimension_numbers = #tpu.dot_dimension_numbers<[1], [0], [0], [1], [0, 0, 1, 1], [], []>} : vector<16x32xf32>, vector<32x32xf32>, vector<16x32xf32> -> vector<16x32xf32>
    %c1_97 = arith.constant 1 : index
    %c0_98 = arith.constant 0 : index
    %c0_99 = arith.constant 0 : index
    %230 = vector.load %arg13[%c1_97, %c0_98, %c0_99] : memref<2x1x32xf32, #tpu.memory_space<vmem>>, vector<1x1x32xf32>
    %231 = vector.shape_cast %230 : vector<1x1x32xf32> to vector<1x32xf32>
    %232 = vector.broadcast %231 : vector<1x32xf32> to vector<16x32xf32>
    %233 = arith.addf %229, %232 : vector<16x32xf32>
    %234 = arith.addf %233, %177 : vector<16x32xf32>
    %c1_100 = arith.constant 1 : index
    %c0_101 = arith.constant 0 : index
    %c0_102 = arith.constant 0 : index
    %235 = vector.load %arg14[%c1_100, %c0_101, %c0_102] : memref<2x1x32xf32, #tpu.memory_space<vmem>>, vector<1x1x32xf32>
    %236 = vector.shape_cast %235 : vector<1x1x32xf32> to vector<1x32xf32>
    %c1_103 = arith.constant 1 : index
    %c0_104 = arith.constant 0 : index
    %c0_105 = arith.constant 0 : index
    %237 = vector.load %arg15[%c1_103, %c0_104, %c0_105] : memref<2x1x32xf32, #tpu.memory_space<vmem>>, vector<1x1x32xf32>
    %238 = vector.shape_cast %237 : vector<1x1x32xf32> to vector<1x32xf32>
    %cst_106 = arith.constant dense<0.000000e+00> : vector<16xf32>
    %239 = vector.multi_reduction <add>, %234, %cst_106 [1] : vector<16x32xf32> to vector<16xf32>
    %240 = vector.shape_cast %239 : vector<16xf32> to vector<16x1xf32>
    %cst_107 = arith.constant 3.200000e+01 : f32
    %241 = vector.broadcast %cst_107 : f32 to vector<16x1xf32>
    %242 = arith.divf %240, %241 : vector<16x1xf32>
    %243 = vector.broadcast %242 : vector<16x1xf32> to vector<16x32xf32>
    %244 = arith.subf %234, %243 : vector<16x32xf32>
    %245 = arith.mulf %244, %244 : vector<16x32xf32>
    %cst_108 = arith.constant dense<0.000000e+00> : vector<16xf32>
    %246 = vector.multi_reduction <add>, %245, %cst_108 [1] : vector<16x32xf32> to vector<16xf32>
    %247 = vector.shape_cast %246 : vector<16xf32> to vector<16x1xf32>
    %cst_109 = arith.constant 3.200000e+01 : f32
    %248 = vector.broadcast %cst_109 : f32 to vector<16x1xf32>
    %249 = arith.divf %247, %248 : vector<16x1xf32>
    %cst_110 = arith.constant 9.99999996E-13 : f32
    %250 = vector.broadcast %cst_110 : f32 to vector<16x1xf32>
    %251 = arith.addf %249, %250 : vector<16x1xf32>
    %252 = math.rsqrt %251 : vector<16x1xf32>
    %253 = vector.broadcast %252 : vector<16x1xf32> to vector<16x32xf32>
    %254 = arith.mulf %244, %253 : vector<16x32xf32>
    %255 = vector.broadcast %236 : vector<1x32xf32> to vector<16x32xf32>
    %256 = arith.mulf %254, %255 : vector<16x32xf32>
    %257 = vector.broadcast %238 : vector<1x32xf32> to vector<16x32xf32>
    %258 = arith.addf %256, %257 : vector<16x32xf32>
    %c1_111 = arith.constant 1 : index
    %c0_112 = arith.constant 0 : index
    %c0_113 = arith.constant 0 : index
    %259 = vector.load %arg16[%c1_111, %c0_112, %c0_113] : memref<2x32x64xf32, #tpu.memory_space<vmem>>, vector<1x32x64xf32>
    %260 = vector.shape_cast %259 : vector<1x32x64xf32> to vector<32x64xf32>
    %cst_114 = arith.constant dense<0.000000e+00> : vector<16x64xf32>
    %261 = tpu.matmul %258, %260, %cst_114 {dimension_numbers = #tpu.dot_dimension_numbers<[1], [0], [0], [1], [0, 0, 1, 1], [], []>} : vector<16x32xf32>, vector<32x64xf32>, vector<16x64xf32> -> vector<16x64xf32>
    %c1_115 = arith.constant 1 : index
    %c0_116 = arith.constant 0 : index
    %c0_117 = arith.constant 0 : index
    %262 = vector.load %arg17[%c1_115, %c0_116, %c0_117] : memref<2x1x64xf32, #tpu.memory_space<vmem>>, vector<1x1x64xf32>
    %263 = vector.shape_cast %262 : vector<1x1x64xf32> to vector<1x64xf32>
    %264 = vector.broadcast %263 : vector<1x64xf32> to vector<16x64xf32>
    %265 = arith.addf %261, %264 : vector<16x64xf32>
    %cst_118 = arith.constant 5.000000e-01 : f32
    %266 = vector.broadcast %cst_118 : f32 to vector<16x64xf32>
    %267 = arith.mulf %266, %265 : vector<16x64xf32>
    %cst_119 = arith.constant 4.471500e-02 : f32
    %268 = vector.broadcast %cst_119 : f32 to vector<16x64xf32>
    %269 = arith.mulf %268, %265 : vector<16x64xf32>
    %270 = arith.mulf %269, %265 : vector<16x64xf32>
    %271 = arith.mulf %270, %265 : vector<16x64xf32>
    %272 = arith.addf %265, %271 : vector<16x64xf32>
    %cst_120 = arith.constant 0.797884583 : f32
    %273 = vector.broadcast %cst_120 : f32 to vector<16x64xf32>
    %274 = arith.mulf %273, %272 : vector<16x64xf32>
    %275 = math.tanh %274 : vector<16x64xf32>
    %cst_121 = arith.constant 1.000000e+00 : f32
    %276 = vector.broadcast %cst_121 : f32 to vector<16x64xf32>
    %277 = arith.addf %276, %275 : vector<16x64xf32>
    %278 = arith.mulf %267, %277 : vector<16x64xf32>
    %c1_122 = arith.constant 1 : index
    %c0_123 = arith.constant 0 : index
    %c0_124 = arith.constant 0 : index
    %279 = vector.load %arg18[%c1_122, %c0_123, %c0_124] : memref<2x64x32xf32, #tpu.memory_space<vmem>>, vector<1x64x32xf32>
    %280 = vector.shape_cast %279 : vector<1x64x32xf32> to vector<64x32xf32>
    %cst_125 = arith.constant dense<0.000000e+00> : vector<16x32xf32>
    %281 = tpu.matmul %278, %280, %cst_125 {dimension_numbers = #tpu.dot_dimension_numbers<[1], [0], [0], [1], [0, 0, 1, 1], [], []>} : vector<16x64xf32>, vector<64x32xf32>, vector<16x32xf32> -> vector<16x32xf32>
    %c1_126 = arith.constant 1 : index
    %c0_127 = arith.constant 0 : index
    %c0_128 = arith.constant 0 : index
    %282 = vector.load %arg19[%c1_126, %c0_127, %c0_128] : memref<2x1x32xf32, #tpu.memory_space<vmem>>, vector<1x1x32xf32>
    %283 = vector.shape_cast %282 : vector<1x1x32xf32> to vector<1x32xf32>
    %284 = vector.broadcast %283 : vector<1x32xf32> to vector<16x32xf32>
    %285 = arith.addf %281, %284 : vector<16x32xf32>
    %286 = arith.addf %285, %258 : vector<16x32xf32>
    %c1_129 = arith.constant 1 : index
    %c0_130 = arith.constant 0 : index
    %c0_131 = arith.constant 0 : index
    %287 = vector.load %arg20[%c1_129, %c0_130, %c0_131] : memref<2x1x32xf32, #tpu.memory_space<vmem>>, vector<1x1x32xf32>
    %288 = vector.shape_cast %287 : vector<1x1x32xf32> to vector<1x32xf32>
    %c1_132 = arith.constant 1 : index
    %c0_133 = arith.constant 0 : index
    %c0_134 = arith.constant 0 : index
    %289 = vector.load %arg21[%c1_132, %c0_133, %c0_134] : memref<2x1x32xf32, #tpu.memory_space<vmem>>, vector<1x1x32xf32>
    %290 = vector.shape_cast %289 : vector<1x1x32xf32> to vector<1x32xf32>
    %cst_135 = arith.constant dense<0.000000e+00> : vector<16xf32>
    %291 = vector.multi_reduction <add>, %286, %cst_135 [1] : vector<16x32xf32> to vector<16xf32>
    %292 = vector.shape_cast %291 : vector<16xf32> to vector<16x1xf32>
    %cst_136 = arith.constant 3.200000e+01 : f32
    %293 = vector.broadcast %cst_136 : f32 to vector<16x1xf32>
    %294 = arith.divf %292, %293 : vector<16x1xf32>
    %295 = vector.broadcast %294 : vector<16x1xf32> to vector<16x32xf32>
    %296 = arith.subf %286, %295 : vector<16x32xf32>
    %297 = arith.mulf %296, %296 : vector<16x32xf32>
    %cst_137 = arith.constant dense<0.000000e+00> : vector<16xf32>
    %298 = vector.multi_reduction <add>, %297, %cst_137 [1] : vector<16x32xf32> to vector<16xf32>
    %299 = vector.shape_cast %298 : vector<16xf32> to vector<16x1xf32>
    %cst_138 = arith.constant 3.200000e+01 : f32
    %300 = vector.broadcast %cst_138 : f32 to vector<16x1xf32>
    %301 = arith.divf %299, %300 : vector<16x1xf32>
    %cst_139 = arith.constant 9.99999996E-13 : f32
    %302 = vector.broadcast %cst_139 : f32 to vector<16x1xf32>
    %303 = arith.addf %301, %302 : vector<16x1xf32>
    %304 = math.rsqrt %303 : vector<16x1xf32>
    %305 = vector.broadcast %304 : vector<16x1xf32> to vector<16x32xf32>
    %306 = arith.mulf %296, %305 : vector<16x32xf32>
    %307 = vector.broadcast %288 : vector<1x32xf32> to vector<16x32xf32>
    %308 = arith.mulf %306, %307 : vector<16x32xf32>
    %309 = vector.broadcast %290 : vector<1x32xf32> to vector<16x32xf32>
    %310 = arith.addf %308, %309 : vector<16x32xf32>
    %c0_140 = arith.constant 0 : index
    %c0_141 = arith.constant 0 : index
    %311 = vector.load %arg5[%c0_140, %c0_141] : memref<2x16xf32, #tpu.memory_space<vmem>>, vector<2x16xf32>
    %cst_142 = arith.constant dense<0.000000e+00> : vector<2x32xf32>
    %312 = tpu.matmul %311, %310, %cst_142 {dimension_numbers = #tpu.dot_dimension_numbers<[1], [0], [0], [1], [0, 0, 1, 1], [], []>} : vector<2x16xf32>, vector<16x32xf32>, vector<2x32xf32> -> vector<2x32xf32>
    %c0_143 = arith.constant 0 : index
    %c0_144 = arith.constant 0 : index
    %313 = vector.load %arg22[%c0_143, %c0_144] : memref<2x32xf32, #tpu.memory_space<vmem>>, vector<2x32xf32>
    tpu.vector_store %arg22[%c0_143, %c0_144], %312 {strides = array<i32>} : memref<2x32xf32, #tpu.memory_space<vmem>>, vector<2x32xf32>,
    return
  }
  func.func @transform_0(%arg0: i32) -> (i32, i32) {
    %c0_i32 = arith.constant 0 : i32
    %c0_i32_0 = arith.constant 0 : i32
    %c0_i32_1 = arith.constant 0 : i32
    return %c0_i32, %c0_i32_0 : i32, i32
  }
  func.func @transform_1(%arg0: i32) -> (i32, i32) {
    %c0_i32 = arith.constant 0 : i32
    %c0_i32_0 = arith.constant 0 : i32
    %c0_i32_1 = arith.constant 0 : i32
    return %c0_i32, %c0_i32_0 : i32, i32
  }
  func.func @transform_2(%arg0: i32) -> (i32, i32, i32) {
    %c0_i32 = arith.constant 0 : i32
    %c0_i32_0 = arith.constant 0 : i32
    %c0_i32_1 = arith.constant 0 : i32
    %c0_i32_2 = arith.constant 0 : i32
    return %c0_i32, %c0_i32_0, %c0_i32_1 : i32, i32, i32
  }
  func.func @transform_3(%arg0: i32) -> (i32, i32) {
    %c0_i32 = arith.constant 0 : i32
    %c0_i32_0 = arith.constant 0 : i32
    %c0_i32_1 = arith.constant 0 : i32
    return %c0_i32, %c0_i32_0 : i32, i32
  }
  func.func @transform_4(%arg0: i32) -> (i32, i32) {
    %c0_i32 = arith.constant 0 : i32
    %c0_i32_0 = arith.constant 0 : i32
    %c0_i32_1 = arith.constant 0 : i32
    return %c0_i32, %c0_i32_0 : i32, i32
  }
  func.func @transform_5(%arg0: i32) -> (i32, i32) {
    %c0_i32 = arith.constant 0 : i32
    %c0_i32_0 = arith.constant 0 : i32
    %c0_i32_1 = arith.constant 0 : i32
    return %c0_i32, %c0_i32_0 : i32, i32
  }
  func.func @transform_6(%arg0: i32) -> (i32, i32) {
    %c0_i32 = arith.constant 0 : i32
    %c0_i32_0 = arith.constant 0 : i32
    %c0_i32_1 = arith.constant 0 : i32
    return %c0_i32, %c0_i32_0 : i32, i32
  }
  func.func @transform_7(%arg0: i32) -> (i32, i32) {
    %c0_i32 = arith.constant 0 : i32
    %c0_i32_0 = arith.constant 0 : i32
    %c0_i32_1 = arith.constant 0 : i32
    return %c0_i32, %c0_i32_0 : i32, i32
  }
  func.func @transform_8(%arg0: i32) -> (i32, i32) {
    %c0_i32 = arith.constant 0 : i32
    %c0_i32_0 = arith.constant 0 : i32
    %c0_i32_1 = arith.constant 0 : i32
    return %c0_i32, %c0_i32_0 : i32, i32
  }
  func.func @transform_9(%arg0: i32) -> (i32, i32, i32) {
    %c0_i32 = arith.constant 0 : i32
    %c0_i32_0 = arith.constant 0 : i32
    %c0_i32_1 = arith.constant 0 : i32
    %c0_i32_2 = arith.constant 0 : i32
    return %c0_i32, %c0_i32_0, %c0_i32_1 : i32, i32, i32
  }
  func.func @transform_10(%arg0: i32) -> (i32, i32, i32) {
    %c0_i32 = arith.constant 0 : i32
    %c0_i32_0 = arith.constant 0 : i32
    %c0_i32_1 = arith.constant 0 : i32
    %c0_i32_2 = arith.constant 0 : i32
    return %c0_i32, %c0_i32_0, %c0_i32_1 : i32, i32, i32
  }
  func.func @transform_11(%arg0: i32) -> (i32, i32, i32) {
    %c0_i32 = arith.constant 0 : i32
    %c0_i32_0 = arith.constant 0 : i32
    %c0_i32_1 = arith.constant 0 : i32
    %c0_i32_2 = arith.constant 0 : i32
    return %c0_i32, %c0_i32_0, %c0_i32_1 : i32, i32, i32
  }
  func.func @transform_12(%arg0: i32) -> (i32, i32, i32) {
    %c0_i32 = arith.constant 0 : i32
    %c0_i32_0 = arith.constant 0 : i32
    %c0_i32_1 = arith.constant 0 : i32
    %c0_i32_2 = arith.constant 0 : i32
    return %c0_i32, %c0_i32_0, %c0_i32_1 : i32, i32, i32
  }
  func.func @transform_13(%arg0: i32) -> (i32, i32, i32) {
    %c0_i32 = arith.constant 0 : i32
    %c0_i32_0 = arith.constant 0 : i32
    %c0_i32_1 = arith.constant 0 : i32
    %c0_i32_2 = arith.constant 0 : i32
    return %c0_i32, %c0_i32_0, %c0_i32_1 : i32, i32, i32
  }
  func.func @transform_14(%arg0: i32) -> (i32, i32, i32) {
    %c0_i32 = arith.constant 0 : i32
    %c0_i32_0 = arith.constant 0 : i32
    %c0_i32_1 = arith.constant 0 : i32
    %c0_i32_2 = arith.constant 0 : i32
    return %c0_i32, %c0_i32_0, %c0_i32_1 : i32, i32, i32
  }
  func.func @transform_15(%arg0: i32) -> (i32, i32, i32) {
    %c0_i32 = arith.constant 0 : i32
    %c0_i32_0 = arith.constant 0 : i32
    %c0_i32_1 = arith.constant 0 : i32
    %c0_i32_2 = arith.constant 0 : i32
    return %c0_i32, %c0_i32_0, %c0_i32_1 : i32, i32, i32
  }
  func.func @transform_16(%arg0: i32) -> (i32, i32, i32) {
    %c0_i32 = arith.constant 0 : i32
    %c0_i32_0 = arith.constant 0 : i32
    %c0_i32_1 = arith.constant 0 : i32
    %c0_i32_2 = arith.constant 0 : i32
    return %c0_i32, %c0_i32_0, %c0_i32_1 : i32, i32, i32
  }
  func.func @transform_17(%arg0: i32) -> (i32, i32, i32) {
    %c0_i32 = arith.constant 0 : i32
    %c0_i32_0 = arith.constant 0 : i32
    %c0_i32_1 = arith.constant 0 : i32
    %c0_i32_2 = arith.constant 0 : i32
    return %c0_i32, %c0_i32_0, %c0_i32_1 : i32, i32, i32
  }
  func.func @transform_18(%arg0: i32) -> (i32, i32, i32) {
    %c0_i32 = arith.constant 0 : i32
    %c0_i32_0 = arith.constant 0 : i32
    %c0_i32_1 = arith.constant 0 : i32
    %c0_i32_2 = arith.constant 0 : i32
    return %c0_i32, %c0_i32_0, %c0_i32_1 : i32, i32, i32
  }
  func.func @transform_19(%arg0: i32) -> (i32, i32, i32) {
    %c0_i32 = arith.constant 0 : i32
    %c0_i32_0 = arith.constant 0 : i32
    %c0_i32_1 = arith.constant 0 : i32
    %c0_i32_2 = arith.constant 0 : i32
    return %c0_i32, %c0_i32_0, %c0_i32_1 : i32, i32, i32
  }
  func.func @transform_20(%arg0: i32) -> (i32, i32, i32) {
    %c0_i32 = arith.constant 0 : i32
    %c0_i32_0 = arith.constant 0 : i32
    %c0_i32_1 = arith.constant 0 : i32
    %c0_i32_2 = arith.constant 0 : i32
    return %c0_i32, %c0_i32_0, %c0_i32_1 : i32, i32, i32
  }
  func.func @transform_21(%arg0: i32) -> (i32, i32) {
    %c0_i32 = arith.constant 0 : i32
    %c0_i32_0 = arith.constant 0 : i32
    %c0_i32_1 = arith.constant 0 : i32
    return %c0_i32, %c0_i32_0 : i32, i32
  }
}

</mosaic_0001>

<llo_original>
// kernel: bert_embeddings_forward.1
$region0: #{bert_embeddings_forward.1}
  #allocation0 [shape = 'u32[]', space=smem, size = 0x4, offset = 0x4, fixed_abs, tag = 'smem constant byte address 0x4 - core index']
  #allocation1 [shape = 'u32[144,128]{1,0:T(1,128)}', space=vmem, size = 0x12000, scoped, tag = 'internal scratch']
  %s0 = inlined_call_operand.vmem [shape: s32[16,1], index: 0, kind: input, shape index: {}]
  %s1 = inlined_call_operand.vmem [shape: s32[16,1], index: 1, kind: input, shape index: {}]
  %s2 = inlined_call_operand.vmem [shape: f32[8,8,8], index: 2, kind: input, shape index: {}]
  %s3 = inlined_call_operand.vmem [shape: f32[16,32], index: 3, kind: input, shape index: {}]
  %s4 = inlined_call_operand.vmem [shape: f32[2,16], index: 4, kind: input, shape index: {}]
  %s5 = inlined_call_operand.vmem [shape: f32[128,32], index: 5, kind: input, shape index: {}]
  %s6 = inlined_call_operand.vmem [shape: f32[2,32], index: 6, kind: input, shape index: {}]
  %s7 = inlined_call_operand.vmem [shape: f32[1,32], index: 7, kind: input, shape index: {}]
  %s8 = inlined_call_operand.vmem [shape: f32[1,32], index: 8, kind: input, shape index: {}]
  %s9 = inlined_call_operand.vmem [shape: f32[2,32,96], index: 9, kind: input, shape index: {}]
  %s10 = inlined_call_operand.vmem [shape: f32[2,1,96], index: 10, kind: input, shape index: {}]
  %s11 = inlined_call_operand.vmem [shape: f32[2,32,32], index: 11, kind: input, shape index: {}]
  %s12 = inlined_call_operand.vmem [shape: f32[2,1,32], index: 12, kind: input, shape index: {}]
  %s13 = inlined_call_operand.vmem [shape: f32[2,1,32], index: 13, kind: input, shape index: {}]
  %s14 = inlined_call_operand.vmem [shape: f32[2,1,32], index: 14, kind: input, shape index: {}]
  %s15 = inlined_call_operand.vmem [shape: f32[2,32,64], index: 15, kind: input, shape index: {}]
  %s16 = inlined_call_operand.vmem [shape: f32[2,1,64], index: 16, kind: input, shape index: {}]
  %s17 = inlined_call_operand.vmem [shape: f32[2,64,32], index: 17, kind: input, shape index: {}]
  %s18 = inlined_call_operand.vmem [shape: f32[2,1,32], index: 18, kind: input, shape index: {}]
  %s19 = inlined_call_operand.vmem [shape: f32[2,1,32], index: 19, kind: input, shape index: {}]
  %s20 = inlined_call_operand.vmem [shape: f32[2,1,32], index: 20, kind: input, shape index: {}]
  %s21 = inlined_call_operand.hbm [shape: f32[2,32], index: 21, kind: output, shape index: {}]
  %s22 = sld [smem:[#allocation0]]
  $region94: #{bert_embeddings_forward.1} parent=0
    _
  %s24 = ssub.s32 1, %s22
  %s25 = scalar_select 0, %s24, %s22
  $region1: #{bert_embeddings_forward.1} parent=0
    #allocation2 [shape = 'u8[1024]{0}', space=vmem, size = 0x400, scoped, tag = 'output window, operand 0, single buffered']
    #allocation3 [shape = 's32[1]{0}', space=sflag, size = 0x4, scoped, tag = 'scoped memory for bert_embeddings_forward.1']
    %26 = vsyncpa [#allocation3], 0
    // Predicated region
    $region2: #{bert_embeddings_forward.1} parent=1 // pred_check
      _
    $region3: #{bert_embeddings_forward.1} parent=1 // pred_check_branch
      %28 = sbr.rel (0) target = $region5
    $region4: #{bert_embeddings_forward.1} parent=1 // pred_region
      _
    $region5: #{bert_embeddings_forward.1} parent=1 // pred_fallthru
      _
    // Predicated region
    $region6: #{bert_embeddings_forward.1} parent=1 // pred_check
      _
    $region7: #{bert_embeddings_forward.1} parent=1 // pred_check_branch
      %30 = sbr.rel (0) target = $region9
    $region8: #{bert_embeddings_forward.1} parent=1 // pred_region
      _
    $region9: #{bert_embeddings_forward.1} parent=1 // pred_fallthru
      _
    // Predicated region
    $region10: #{bert_embeddings_forward.1} parent=1 // pred_check
      _
    $region11: #{bert_embeddings_forward.1} parent=1 // pred_check_branch
      %32 = sbr.rel (0) target = $region13
    $region12: #{bert_embeddings_forward.1} parent=1 // pred_region
      _
    $region13: #{bert_embeddings_forward.1} parent=1 // pred_fallthru
      _
    // Predicated region
    $region14: #{bert_embeddings_forward.1} parent=1 // pred_check
      _
    $region15: #{bert_embeddings_forward.1} parent=1 // pred_check_branch
      %34 = sbr.rel (0) target = $region17
    $region16: #{bert_embeddings_forward.1} parent=1 // pred_region
      _
    $region17: #{bert_embeddings_forward.1} parent=1 // pred_fallthru
      _
    // Predicated region
    $region18: #{bert_embeddings_forward.1} parent=1 // pred_check
      _
    $region19: #{bert_embeddings_forward.1} parent=1 // pred_check_branch
      %36 = sbr.rel (0) target = $region21
    $region20: #{bert_embeddings_forward.1} parent=1 // pred_region
      _
    $region21: #{bert_embeddings_forward.1} parent=1 // pred_fallthru
      _
    // Predicated region
    $region22: #{bert_embeddings_forward.1} parent=1 // pred_check
      _
    $region23: #{bert_embeddings_forward.1} parent=1 // pred_check_branch
      %38 = sbr.rel (0) target = $region25
    $region24: #{bert_embeddings_forward.1} parent=1 // pred_region
      _
    $region25: #{bert_embeddings_forward.1} parent=1 // pred_fallthru
      _
    // Predicated region
    $region26: #{bert_embeddings_forward.1} parent=1 // pred_check
      _
    $region27: #{bert_embeddings_forward.1} parent=1 // pred_check_branch
      %40 = sbr.rel (0) target = $region29
    $region28: #{bert_embeddings_forward.1} parent=1 // pred_region
      _
    $region29: #{bert_embeddings_forward.1} parent=1 // pred_fallthru
      _
    // Predicated region
    $region30: #{bert_embeddings_forward.1} parent=1 // pred_check
      _
    $region31: #{bert_embeddings_forward.1} parent=1 // pred_check_branch
      %42 = sbr.rel (0) target = $region33
    $region32: #{bert_embeddings_forward.1} parent=1 // pred_region
      _
    $region33: #{bert_embeddings_forward.1} parent=1 // pred_fallthru
      _
    // Predicated region
    $region34: #{bert_embeddings_forward.1} parent=1 // pred_check
      _
    $region35: #{bert_embeddings_forward.1} parent=1 // pred_check_branch
      %44 = sbr.rel (0) target = $region37
    $region36: #{bert_embeddings_forward.1} parent=1 // pred_region
      _
    $region37: #{bert_embeddings_forward.1} parent=1 // pred_fallthru
      _
    // Predicated region
    $region38: #{bert_embeddings_forward.1} parent=1 // pred_check
      _
    $region39: #{bert_embeddings_forward.1} parent=1 // pred_check_branch
      %46 = sbr.rel (0) target = $region41
    $region40: #{bert_embeddings_forward.1} parent=1 // pred_region
      _
    $region41: #{bert_embeddings_forward.1} parent=1 // pred_fallthru
      _
    // Predicated region
    $region42: #{bert_embeddings_forward.1} parent=1 // pred_check
      _
    $region43: #{bert_embeddings_forward.1} parent=1 // pred_check_branch
      %48 = sbr.rel (0) target = $region45
    $region44: #{bert_embeddings_forward.1} parent=1 // pred_region
      _
    $region45: #{bert_embeddings_forward.1} parent=1 // pred_fallthru
      _
    // Predicated region
    $region46: #{bert_embeddings_forward.1} parent=1 // pred_check
      _
    $region47: #{bert_embeddings_forward.1} parent=1 // pred_check_branch
      %50 = sbr.rel (0) target = $region49
    $region48: #{bert_embeddings_forward.1} parent=1 // pred_region
      _
    $region49: #{bert_embeddings_forward.1} parent=1 // pred_fallthru
      _
    // Predicated region
    $region50: #{bert_embeddings_forward.1} parent=1 // pred_check
      _
    $region51: #{bert_embeddings_forward.1} parent=1 // pred_check_branch
      %52 = sbr.rel (0) target = $region53
    $region52: #{bert_embeddings_forward.1} parent=1 // pred_region
      _
    $region53: #{bert_embeddings_forward.1} parent=1 // pred_fallthru
      _
    // Predicated region
    $region54: #{bert_embeddings_forward.1} parent=1 // pred_check
      _
    $region55: #{bert_embeddings_forward.1} parent=1 // pred_check_branch
      %54 = sbr.rel (0) target = $region57
    $region56: #{bert_embeddings_forward.1} parent=1 // pred_region
      _
    $region57: #{bert_embeddings_forward.1} parent=1 // pred_fallthru
      _
    // Predicated region
    $region58: #{bert_embeddings_forward.1} parent=1 // pred_check
      _
    $region59: #{bert_embeddings_forward.1} parent=1 // pred_check_branch
      %56 = sbr.rel (0) target = $region61
    $region60: #{bert_embeddings_forward.1} parent=1 // pred_region
      _
    $region61: #{bert_embeddings_forward.1} parent=1 // pred_fallthru
      _
    // Predicated region
    $region62: #{bert_embeddings_forward.1} parent=1 // pred_check
      _
    $region63: #{bert_embeddings_forward.1} parent=1 // pred_check_branch
      %58 = sbr.rel (0) target = $region65
    $region64: #{bert_embeddings_forward.1} parent=1 // pred_region
      _
    $region65: #{bert_embeddings_forward.1} parent=1 // pred_fallthru
      _
    // Predicated region
    $region66: #{bert_embeddings_forward.1} parent=1 // pred_check
      _
    $region67: #{bert_embeddings_forward.1} parent=1 // pred_check_branch
      %60 = sbr.rel (0) target = $region69
    $region68: #{bert_embeddings_forward.1} parent=1 // pred_region
      _
    $region69: #{bert_embeddings_forward.1} parent=1 // pred_fallthru
      _
    // Predicated region
    $region70: #{bert_embeddings_forward.1} parent=1 // pred_check
      _
    $region71: #{bert_embeddings_forward.1} parent=1 // pred_check_branch
      %62 = sbr.rel (0) target = $region73
    $region72: #{bert_embeddings_forward.1} parent=1 // pred_region
      _
    $region73: #{bert_embeddings_forward.1} parent=1 // pred_fallthru
      _
    // Predicated region
    $region74: #{bert_embeddings_forward.1} parent=1 // pred_check
      _
    $region75: #{bert_embeddings_forward.1} parent=1 // pred_check_branch
      %64 = sbr.rel (0) target = $region77
    $region76: #{bert_embeddings_forward.1} parent=1 // pred_region
      _
    $region77: #{bert_embeddings_forward.1} parent=1 // pred_fallthru
      _
    // Predicated region
    $region78: #{bert_embeddings_forward.1} parent=1 // pred_check
      _
    $region79: #{bert_embeddings_forward.1} parent=1 // pred_check_branch
      %66 = sbr.rel (0) target = $region81
    $region80: #{bert_embeddings_forward.1} parent=1 // pred_region
      _
    $region81: #{bert_embeddings_forward.1} parent=1 // pred_fallthru
      _
    // Predicated region
    $region82: #{bert_embeddings_forward.1} parent=1 // pred_check
      _
    $region83: #{bert_embeddings_forward.1} parent=1 // pred_check_branch
      %68 = sbr.rel (0) target = $region85
    $region84: #{bert_embeddings_forward.1} parent=1 // pred_region
      _
    $region85: #{bert_embeddings_forward.1} parent=1 // pred_fallthru
      _
    %v69 = vld [vmem:[%s0] sm:$0xff]
    %v70 = vld [vmem:[%s0 + $0x8] sm:$0xff]
    %v71 = vlaneseq
    %v72 = vand.u32 %v71, 127
    %73 = vset.pattern.permute.xlu0 0
    %74 = vperm.xlu0 %73, %v69
    %v75 = vpop.permute.xlu0 %74
    %76 = vset.pattern.permute.xlu0 0
    %77 = vperm.xlu0 %76, %v70
    %v78 = vpop.permute.xlu0 %77
    %vm79 = vcmp.eq.s32.totalorder %v72, %v75
    %vm80 = vcmp.eq.s32.totalorder %v72, %v78
    %v81 = vsel %vm79, 1, 0
    %v82 = vsel %vm80, 1, 0
    %v83 = vcvt.s32.f32 %v81
    %v84 = vcvt.s32.f32 %v82
    %v85 = vld [vmem:[%s5] sm:$0xff]
    %v86 = vld [vmem:[%s5 + $0x8] sm:$0xff]
    %v87 = vld [vmem:[%s5 + $0x10] sm:$0xff]
    %v88 = vld [vmem:[%s5 + $0x18] sm:$0xff]
    %v89 = vld [vmem:[%s5 + $0x20] sm:$0xff]
    %v90 = vld [vmem:[%s5 + $0x28] sm:$0xff]
    %v91 = vld [vmem:[%s5 + $0x30] sm:$0xff]
    %v92 = vld [vmem:[%s5 + $0x38] sm:$0xff]
    %v93 = vld [vmem:[%s5 + $0x40] sm:$0xff]
    %v94 = vld [vmem:[%s5 + $0x48] sm:$0xff]
    %v95 = vld [vmem:[%s5 + $0x50] sm:$0xff]
    %v96 = vld [vmem:[%s5 + $0x58] sm:$0xff]
    %v97 = vld [vmem:[%s5 + $0x60] sm:$0xff]
    %v98 = vld [vmem:[%s5 + $0x68] sm:$0xff]
    %v99 = vld [vmem:[%s5 + $0x70] sm:$0xff]
    %v100 = vld [vmem:[%s5 + $0x78] sm:$0xff]
    %v101 = vld [vmem:[%s1] sm:$0xff]
    %v102 = vld [vmem:[%s1 + $0x8] sm:$0xff]
    %v103 = vcvt.s32.f32 %v101
    %v104 = vcvt.s32.f32 %v102
    %106 = vset.pattern.permute.xlu0 0
    %107 = vperm.xlu0 %106, %v103
    %v108 = vpop.permute.xlu0 %107
    %111 = vset.pattern.permute.xlu0 0
    %112 = vperm.xlu0 %111, %v104
    %v113 = vpop.permute.xlu0 %112
    %v115 = vld [vmem:[%s6] sm:$0x1]
    %v116 = vld [vmem:[%s6 + $0x1] sm:$0x1]
    %v117 = vsub.f32 %v116, %v115
    %v118 = vlaneseq
    %v119 = vshrl.u32 %v118, 7
    %v120 = vsub.s32 0, %v119
    %v121 = vrot.slane %v115, %v120
    %122 = vmatprep.subr.mxu0 0.0
    %123 = vmatpush1.msra.mxu0 %v100
    %124 = vmatprep.subr.mxu0 0.0
    %125 = vmatpush1.msra.mxu0 %v99
    %126 = vmatprep.subr.mxu0 0.0
    %127 = vmatpush1.msra.mxu0 %v98
    %128 = vmatprep.subr.mxu0 0.0
    %129 = vmatpush1.msra.mxu0 %v97
    %130 = vmatprep.subr.mxu0 0.0
    %131 = vmatpush1.msra.mxu0 %v96
    %132 = vmatprep.subr.mxu0 0.0
    %133 = vmatpush1.msra.mxu0 %v95
    %134 = vmatprep.subr.mxu0 0.0
    %135 = vmatpush1.msra.mxu0 %v94
    %136 = vmatprep.subr.mxu0 0.0
    %137 = vmatpush1.msra.mxu0 %v93
    %138 = vmatprep.subr.mxu0 0.0
    %139 = vmatpush1.msra.mxu0 %v92
    %140 = vmatprep.subr.mxu0 0.0
    %141 = vmatpush1.msra.mxu0 %v91
    %142 = vmatprep.subr.mxu0 0.0
    %143 = vmatpush1.msra.mxu0 %v90
    %144 = vmatprep.subr.mxu0 0.0
    %145 = vmatpush1.msra.mxu0 %v89
    %146 = vmatprep.subr.mxu0 0.0
    %147 = vmatpush1.msra.mxu0 %v88
    %148 = vmatprep.subr.mxu0 0.0
    %149 = vmatpush1.msra.mxu0 %v87
    %150 = vmatprep.subr.mxu0 0.0
    %151 = vmatpush1.msra.mxu0 %v86
    %152 = vmatprep.subr.mxu0 0.0
    %153 = vmatpush1.msra.mxu0 %v85
    %154 = vmatprep.subr.mxu0 0.0
    %155 = vmatpush2.msra.mxu0 0.0
    %156 = vmatprep.subr.mxu0 0.0
    %157 = vmatpush2.msra.mxu0 0.0
    %158 = vmatprep.subr.mxu0 0.0
    %159 = vmatpush2.msra.mxu0 0.0
    %160 = vmatprep.subr.mxu0 0.0
    %161 = vmatpush2.msra.mxu0 0.0
    %162 = vmatprep.subr.mxu0 0.0
    %163 = vmatpush2.msra.mxu0 0.0
    %164 = vmatprep.subr.mxu0 0.0
    %165 = vmatpush2.msra.mxu0 0.0
    %166 = vmatprep.subr.mxu0 0.0
    %167 = vmatpush2.msra.mxu0 0.0
    %168 = vmatprep.subr.mxu0 0.0
    %169 = vmatpush2.msra.mxu0 0.0
    %170 = vmatprep.subr.mxu0 0.0
    %171 = vmatpush2.msra.mxu0 0.0
    %172 = vmatprep.subr.mxu0 0.0
    %173 = vmatpush2.msra.mxu0 0.0
    %174 = vmatprep.subr.mxu0 0.0
    %175 = vmatpush2.msra.mxu0 0.0
    %176 = vmatprep.subr.mxu0 0.0
    %177 = vmatpush2.msra.mxu0 0.0
    %178 = vmatprep.subr.mxu0 0.0
    %179 = vmatpush2.msra.mxu0 0.0
    %180 = vmatprep.subr.mxu0 0.0
    %181 = vmatpush2.msra.mxu0 0.0
    %182 = vmatprep.subr.mxu0 0.0
    %183 = vmatpush2.msra.mxu0 0.0
    %184 = vmatprep.subr.mxu0 0.0
    %185 = vmatpush2.msra.mxu0 0.0
    %186 = vmatprep.mubr.f32.mxu0 0.0
    %187 = vmatmul.mubr.f32.gmra.mxu0 %v83
    %v188 = vpop.f32.mrf.mxu0
    %v189 = vadd.f32 %v121, %v188
    %v190 = vpop.f32.mrf.mxu0
    %191 = vmatprep.mubr.f32.mxu0 0.0
    %192 = vmatmul.mubr.f32.gmra.mxu0 %v84
    %v193 = vpop.f32.mrf.mxu0
    %v194 = vadd.f32 %v121, %v193
    %v195 = vpop.f32.mrf.mxu0
    %196 = vdwg.mxu0
    %v197 = vlaneseq
    %v198 = vshrl.u32 %v197, 7
    %v199 = vsub.s32 0, %v198
    %v200 = vrot.slane %v117, %v199
    %v201 = vmul.f32 %v108, %v200
    %v202 = vmul.f32 %v113, %v200
    %v203 = vadd.f32 %v189, %v201
    %v204 = vadd.f32 %v194, %v202
    %v205 = vld [vmem:[%s3] sm:$0xff]
    %v206 = vld [vmem:[%s3 + $0x8] sm:$0xff]
    %v207 = vadd.f32 %v203, %v205
    %v208 = vadd.f32 %v204, %v206
    %v209 = vld [vmem:[%s7] sm:$0x1]
    %v210 = vld [vmem:[%s8] sm:$0x1]
    %vm211 = vcmask 261120
    %v212 = vsel %vm211, %v207, 0.0
    %213 = vadd.xlane.f32.xlu0 %v212
    %v214 = vpop.xlane.xlu0 %213
    %v215 = vsel %vm211, %v208, 0.0
    %216 = vadd.xlane.f32.xlu0 %v215
    %v217 = vpop.xlane.xlu0 %216
    %v218 = vrcp.pop 32.0
    %v219 = vmul.f32 %v214, %v218
    %v220 = vmul.f32 %v217, %v218
    %v221 = vsub.f32 %v207, %v219
    %v222 = vsub.f32 %v208, %v220
    %v223 = vmul.f32 %v221, %v221
    %v224 = vmul.f32 %v222, %v222
    %v225 = vsel %vm211, %v223, 0.0
    %226 = vadd.xlane.f32.xlu0 %v225
    %v227 = vpop.xlane.xlu0 %226
    %v228 = vsel %vm211, %v224, 0.0
    %229 = vadd.xlane.f32.xlu0 %v228
    %v230 = vpop.xlane.xlu0 %229
    %v231 = vmul.f32 %v227, %v218
    %v232 = vmul.f32 %v230, %v218
    %v233 = vadd.f32 %v231, 1e-12
    %v234 = vadd.f32 %v232, 1e-12
    %v235 = vrsqrt.pop %v233
    %v236 = vrsqrt.pop %v234
    %v237 = vmul.f32 %v221, %v235
    %v238 = vmul.f32 %v222, %v236
    %v240 = vlaneseq
    %v241 = vshrl.u32 %v240, 7
    %v242 = vsub.s32 0, %v241
    %v243 = vrot.slane %v209, %v242
    %v245 = vmul.f32 %v237, %v243
    %v246 = vmul.f32 %v238, %v243
    %v248 = vlaneseq
    %v249 = vshrl.u32 %v248, 7
    %v250 = vsub.s32 0, %v249
    %v251 = vrot.slane %v210, %v250
    %v253 = vadd.f32 %v245, %v251
    %v254 = vadd.f32 %v246, %v251
    %v255 = vld [vmem:[%s2] sm:$0xff]
    %v256 = vld [vmem:[%s2 + $0x8] sm:$0xff]
    %v257 = vld [vmem:[%s2 + $0x10] sm:$0xff]
    %v258 = vld [vmem:[%s2 + $0x18] sm:$0xff]
    %v259 = vld [vmem:[%s2 + $0x20] sm:$0xff]
    %v260 = vld [vmem:[%s2 + $0x28] sm:$0xff]
    %v261 = vld [vmem:[%s2 + $0x30] sm:$0xff]
    %v262 = vld [vmem:[%s2 + $0x38] sm:$0xff]
    %v263 = vld [vmem:[%s9] sm:$0xff]
    %v264 = vld [vmem:[%s9 + $0x8] sm:$0xff]
    %v265 = vld [vmem:[%s9 + $0x10] sm:$0xff]
    %v266 = vld [vmem:[%s9 + $0x18] sm:$0xff]
    %v267 = vld [vmem:[%s10] sm:$0x1]
    %v269 = vlaneseq
    %v270 = vshrl.u32 %v269, 7
    %v271 = vsub.s32 0, %v270
    %v272 = vrot.slane %v267, %v271
    %v275 = vsel %vm211, %v253, 0
    %v278 = vsel %vm211, %v254, 0
    %280 = vmatprep.subr.mxu0 0.0
    %281 = vmatpush1.msra.mxu0 0.0
    %282 = vmatprep.subr.mxu0 0.0
    %283 = vmatpush1.msra.mxu0 0.0
    %284 = vmatprep.subr.mxu0 0.0
    %285 = vmatpush1.msra.mxu0 0.0
    %286 = vmatprep.subr.mxu0 0.0
    %287 = vmatpush1.msra.mxu0 0.0
    %288 = vmatprep.subr.mxu0 0.0
    %289 = vmatpush1.msra.mxu0 0.0
    %290 = vmatprep.subr.mxu0 0.0
    %291 = vmatpush1.msra.mxu0 0.0
    %292 = vmatprep.subr.mxu0 0.0
    %293 = vmatpush1.msra.mxu0 0.0
    %294 = vmatprep.subr.mxu0 0.0
    %295 = vmatpush1.msra.mxu0 0.0
    %296 = vmatprep.subr.mxu0 0.0
    %297 = vmatpush1.msra.mxu0 0.0
    %298 = vmatprep.subr.mxu0 0.0
    %299 = vmatpush1.msra.mxu0 0.0
    %300 = vmatprep.subr.mxu0 0.0
    %301 = vmatpush1.msra.mxu0 0.0
    %302 = vmatprep.subr.mxu0 0.0
    %303 = vmatpush1.msra.mxu0 0.0
    %304 = vmatprep.subr.mxu0 0.0
    %305 = vmatpush1.msra.mxu0 %v266
    %306 = vmatprep.subr.mxu0 0.0
    %307 = vmatpush1.msra.mxu0 %v265
    %308 = vmatprep.subr.mxu0 0.0
    %309 = vmatpush1.msra.mxu0 %v264
    %310 = vmatprep.subr.mxu0 0.0
    %311 = vmatpush1.msra.mxu0 %v263
    %312 = vmatprep.subr.mxu0 0.0
    %313 = vmatpush2.msra.mxu0 0.0
    %314 = vmatprep.subr.mxu0 0.0
    %315 = vmatpush2.msra.mxu0 0.0
    %316 = vmatprep.subr.mxu0 0.0
    %317 = vmatpush2.msra.mxu0 0.0
    %318 = vmatprep.subr.mxu0 0.0
    %319 = vmatpush2.msra.mxu0 0.0
    %320 = vmatprep.subr.mxu0 0.0
    %321 = vmatpush2.msra.mxu0 0.0
    %322 = vmatprep.subr.mxu0 0.0
    %323 = vmatpush2.msra.mxu0 0.0
    %324 = vmatprep.subr.mxu0 0.0
    %325 = vmatpush2.msra.mxu0 0.0
    %326 = vmatprep.subr.mxu0 0.0
    %327 = vmatpush2.msra.mxu0 0.0
    %328 = vmatprep.subr.mxu0 0.0
    %329 = vmatpush2.msra.mxu0 0.0
    %330 = vmatprep.subr.mxu0 0.0
    %331 = vmatpush2.msra.mxu0 0.0
    %332 = vmatprep.subr.mxu0 0.0
    %333 = vmatpush2.msra.mxu0 0.0
    %334 = vmatprep.subr.mxu0 0.0
    %335 = vmatpush2.msra.mxu0 0.0
    %336 = vmatprep.subr.mxu0 0.0
    %337 = vmatpush2.msra.mxu0 0.0
    %338 = vmatprep.subr.mxu0 0.0
    %339 = vmatpush2.msra.mxu0 0.0
    %340 = vmatprep.subr.mxu0 0.0
    %341 = vmatpush2.msra.mxu0 0.0
    %342 = vmatprep.subr.mxu0 0.0
    %343 = vmatpush2.msra.mxu0 0.0
    %344 = vmatprep.mubr.f32.mxu0 0.0
    %345 = vmatmul.mubr.f32.gmra.mxu0 %v275
    %v346 = vpop.f32.mrf.mxu0
    %v347 = vadd.f32 %v272, %v346
    %v348 = vpop.f32.mrf.mxu0
    %349 = vmatprep.mubr.f32.mxu0 0.0
    %350 = vmatmul.mubr.f32.gmra.mxu0 %v278
    %v351 = vpop.f32.mrf.mxu0
    %v352 = vadd.f32 %v272, %v351
    %v353 = vpop.f32.mrf.mxu0
    %354 = vdwg.mxu0
    %357 = vrot.lane.b32.xlu0 %v347, 120
    %v358 = vpop.permute.xlu0 %357
    %359 = vrot.lane.b32.xlu0 %v352, 120
    %v360 = vpop.permute.xlu0 %359
    %361 = vrot.lane.b32.xlu0 %v347, 112
    %v362 = vpop.permute.xlu0 %361
    %363 = vrot.lane.b32.xlu0 %v352, 112
    %v364 = vpop.permute.xlu0 %363
    %365 = vrot.lane.b32.xlu0 %v347, 104
    %v366 = vpop.permute.xlu0 %365
    %367 = vrot.lane.b32.xlu0 %v352, 104
    %v368 = vpop.permute.xlu0 %367
    %369 = vrot.lane.b32.xlu0 %v347, 96
    %v370 = vpop.permute.xlu0 %369
    %vm371 = vcmask 64512
    %v372 = vsel %vm371, %v347, 0
    %v374 = vsel %vm371, %v370, 0
    %376 = vmatprep.subr.mxu0 0.0
    %377 = vmatpush1.xpose.msra.mxu0 0.0
    %378 = vmatprep.subr.mxu0 0.0
    %379 = vmatpush1.xpose.msra.mxu0 0.0
    %380 = vmatprep.subr.mxu0 0.0
    %381 = vmatpush1.xpose.msra.mxu0 0.0
    %382 = vmatprep.subr.mxu0 0.0
    %383 = vmatpush1.xpose.msra.mxu0 0.0
    %384 = vmatprep.subr.mxu0 0.0
    %385 = vmatpush1.xpose.msra.mxu0 0.0
    %386 = vmatprep.subr.mxu0 0.0
    %387 = vmatpush1.xpose.msra.mxu0 0.0
    %388 = vmatprep.subr.mxu0 0.0
    %389 = vmatpush1.xpose.msra.mxu0 0.0
    %390 = vmatprep.subr.mxu0 0.0
    %391 = vmatpush1.xpose.msra.mxu0 0.0
    %392 = vmatprep.subr.mxu0 0.0
    %393 = vmatpush1.xpose.msra.mxu0 0.0
    %394 = vmatprep.subr.mxu0 0.0
    %395 = vmatpush1.xpose.msra.mxu0 0.0
    %396 = vmatprep.subr.mxu0 0.0
    %397 = vmatpush1.xpose.msra.mxu0 0.0
    %398 = vmatprep.subr.mxu0 0.0
    %399 = vmatpush1.xpose.msra.mxu0 0.0
    %400 = vmatprep.subr.mxu0 0.0
    %401 = vmatpush1.xpose.msra.mxu0 0.0
    %402 = vmatprep.subr.mxu0 0.0
    %403 = vmatpush1.xpose.msra.mxu0 0.0
    %404 = vmatprep.subr.mxu0 0.0
    %405 = vmatpush1.xpose.msra.mxu0 0.0
    %406 = vmatprep.subr.mxu0 0.0
    %407 = vmatpush1.xpose.msra.mxu0 %v374
    %408 = vmatprep.subr.mxu0 0.0
    %409 = vmatpush2.xpose.msra.mxu0 0.0
    %410 = vmatprep.subr.mxu0 0.0
    %411 = vmatpush2.xpose.msra.mxu0 0.0
    %412 = vmatprep.subr.mxu0 0.0
    %413 = vmatpush2.xpose.msra.mxu0 0.0
    %414 = vmatprep.subr.mxu0 0.0
    %415 = vmatpush2.xpose.msra.mxu0 0.0
    %416 = vmatprep.subr.mxu0 0.0
    %417 = vmatpush2.xpose.msra.mxu0 0.0
    %418 = vmatprep.subr.mxu0 0.0
    %419 = vmatpush2.xpose.msra.mxu0 0.0
    %420 = vmatprep.subr.mxu0 0.0
    %421 = vmatpush2.xpose.msra.mxu0 0.0
    %422 = vmatprep.subr.mxu0 0.0
    %423 = vmatpush2.xpose.msra.mxu0 0.0
    %424 = vmatprep.subr.mxu0 0.0
    %425 = vmatpush2.xpose.msra.mxu0 0.0
    %426 = vmatprep.subr.mxu0 0.0
    %427 = vmatpush2.xpose.msra.mxu0 0.0
    %428 = vmatprep.subr.mxu0 0.0
    %429 = vmatpush2.xpose.msra.mxu0 0.0
    %430 = vmatprep.subr.mxu0 0.0
    %431 = vmatpush2.xpose.msra.mxu0 0.0
    %432 = vmatprep.subr.mxu0 0.0
    %433 = vmatpush2.xpose.msra.mxu0 0.0
    %434 = vmatprep.subr.mxu0 0.0
    %435 = vmatpush2.xpose.msra.mxu0 0.0
    %436 = vmatprep.subr.mxu0 0.0
    %437 = vmatpush2.xpose.msra.mxu0 0.0
    %438 = vmatprep.subr.mxu0 0.0
    %439 = vmatpush2.xpose.msra.mxu0 0.0
    %440 = vmatprep.mubr.f32.mxu0 0.0
    %441 = vmatmul.mubr.f32.gmra.mxu0 %v372
    %v442 = vpop.f32.mrf.mxu0
    %v443 = vadd.f32 0.0, %v442
    %v444 = vpop.f32.mrf.mxu0
    %445 = vdwg.mxu0
    %446 = vrot.lane.b32.xlu0 %v352, 96
    %v447 = vpop.permute.xlu0 %446
    %v448 = vsel %vm371, %v352, 0
    %v450 = vsel %vm371, %v447, 0
    %452 = vmatprep.subr.mxu0 0.0
    %453 = vmatpush1.xpose.msra.mxu0 0.0
    %454 = vmatprep.subr.mxu0 0.0
    %455 = vmatpush1.xpose.msra.mxu0 0.0
    %456 = vmatprep.subr.mxu0 0.0
    %457 = vmatpush1.xpose.msra.mxu0 0.0
    %458 = vmatprep.subr.mxu0 0.0
    %459 = vmatpush1.xpose.msra.mxu0 0.0
    %460 = vmatprep.subr.mxu0 0.0
    %461 = vmatpush1.xpose.msra.mxu0 0.0
    %462 = vmatprep.subr.mxu0 0.0
    %463 = vmatpush1.xpose.msra.mxu0 0.0
    %464 = vmatprep.subr.mxu0 0.0
    %465 = vmatpush1.xpose.msra.mxu0 0.0
    %466 = vmatprep.subr.mxu0 0.0
    %467 = vmatpush1.xpose.msra.mxu0 0.0
    %468 = vmatprep.subr.mxu0 0.0
    %469 = vmatpush1.xpose.msra.mxu0 0.0
    %470 = vmatprep.subr.mxu0 0.0
    %471 = vmatpush1.xpose.msra.mxu0 0.0
    %472 = vmatprep.subr.mxu0 0.0
    %473 = vmatpush1.xpose.msra.mxu0 0.0
    %474 = vmatprep.subr.mxu0 0.0
    %475 = vmatpush1.xpose.msra.mxu0 0.0
    %476 = vmatprep.subr.mxu0 0.0
    %477 = vmatpush1.xpose.msra.mxu0 0.0
    %478 = vmatprep.subr.mxu0 0.0
    %479 = vmatpush1.xpose.msra.mxu0 0.0
    %480 = vmatprep.subr.mxu0 0.0
    %481 = vmatpush1.xpose.msra.mxu0 0.0
    %482 = vmatprep.subr.mxu0 0.0
    %483 = vmatpush1.xpose.msra.mxu0 %v450
    %484 = vmatprep.subr.mxu0 0.0
    %485 = vmatpush2.xpose.msra.mxu0 0.0
    %486 = vmatprep.subr.mxu0 0.0
    %487 = vmatpush2.xpose.msra.mxu0 0.0
    %488 = vmatprep.subr.mxu0 0.0
    %489 = vmatpush2.xpose.msra.mxu0 0.0
    %490 = vmatprep.subr.mxu0 0.0
    %491 = vmatpush2.xpose.msra.mxu0 0.0
    %492 = vmatprep.subr.mxu0 0.0
    %493 = vmatpush2.xpose.msra.mxu0 0.0
    %494 = vmatprep.subr.mxu0 0.0
    %495 = vmatpush2.xpose.msra.mxu0 0.0
    %496 = vmatprep.subr.mxu0 0.0
    %497 = vmatpush2.xpose.msra.mxu0 0.0
    %498 = vmatprep.subr.mxu0 0.0
    %499 = vmatpush2.xpose.msra.mxu0 0.0
    %500 = vmatprep.subr.mxu0 0.0
    %501 = vmatpush2.xpose.msra.mxu0 0.0
    %502 = vmatprep.subr.mxu0 0.0
    %503 = vmatpush2.xpose.msra.mxu0 0.0
    %504 = vmatprep.subr.mxu0 0.0
    %505 = vmatpush2.xpose.msra.mxu0 0.0
    %506 = vmatprep.subr.mxu0 0.0
    %507 = vmatpush2.xpose.msra.mxu0 0.0
    %508 = vmatprep.subr.mxu0 0.0
    %509 = vmatpush2.xpose.msra.mxu0 0.0
    %510 = vmatprep.subr.mxu0 0.0
    %511 = vmatpush2.xpose.msra.mxu0 0.0
    %512 = vmatprep.subr.mxu0 0.0
    %513 = vmatpush2.xpose.msra.mxu0 0.0
    %514 = vmatprep.subr.mxu0 0.0
    %515 = vmatpush2.xpose.msra.mxu0 0.0
    %516 = vmatprep.mubr.f32.mxu0 0.0
    %517 = vmatmul.mubr.f32.gmra.mxu0 %v448
    %v518 = vpop.f32.mrf.mxu0
    %v519 = vadd.f32 0.0, %v518
    %v520 = vpop.f32.mrf.mxu0
    %521 = vdwg.mxu0
    %522 = vrot.lane.b32.xlu0 %v358, 96
    %v523 = vpop.permute.xlu0 %522
    %v524 = vsel %vm371, %v358, 0
    %v526 = vsel %vm371, %v523, 0
    %528 = vmatprep.subr.mxu0 0.0
    %529 = vmatpush1.xpose.msra.mxu0 0.0
    %530 = vmatprep.subr.mxu0 0.0
    %531 = vmatpush1.xpose.msra.mxu0 0.0
    %532 = vmatprep.subr.mxu0 0.0
    %533 = vmatpush1.xpose.msra.mxu0 0.0
    %534 = vmatprep.subr.mxu0 0.0
    %535 = vmatpush1.xpose.msra.mxu0 0.0
    %536 = vmatprep.subr.mxu0 0.0
    %537 = vmatpush1.xpose.msra.mxu0 0.0
    %538 = vmatprep.subr.mxu0 0.0
    %539 = vmatpush1.xpose.msra.mxu0 0.0
    %540 = vmatprep.subr.mxu0 0.0
    %541 = vmatpush1.xpose.msra.mxu0 0.0
    %542 = vmatprep.subr.mxu0 0.0
    %543 = vmatpush1.xpose.msra.mxu0 0.0
    %544 = vmatprep.subr.mxu0 0.0
    %545 = vmatpush1.xpose.msra.mxu0 0.0
    %546 = vmatprep.subr.mxu0 0.0
    %547 = vmatpush1.xpose.msra.mxu0 0.0
    %548 = vmatprep.subr.mxu0 0.0
    %549 = vmatpush1.xpose.msra.mxu0 0.0
    %550 = vmatprep.subr.mxu0 0.0
    %551 = vmatpush1.xpose.msra.mxu0 0.0
    %552 = vmatprep.subr.mxu0 0.0
    %553 = vmatpush1.xpose.msra.mxu0 0.0
    %554 = vmatprep.subr.mxu0 0.0
    %555 = vmatpush1.xpose.msra.mxu0 0.0
    %556 = vmatprep.subr.mxu0 0.0
    %557 = vmatpush1.xpose.msra.mxu0 0.0
    %558 = vmatprep.subr.mxu0 0.0
    %559 = vmatpush1.xpose.msra.mxu0 %v526
    %560 = vmatprep.subr.mxu0 0.0
    %561 = vmatpush2.xpose.msra.mxu0 0.0
    %562 = vmatprep.subr.mxu0 0.0
    %563 = vmatpush2.xpose.msra.mxu0 0.0
    %564 = vmatprep.subr.mxu0 0.0
    %565 = vmatpush2.xpose.msra.mxu0 0.0
    %566 = vmatprep.subr.mxu0 0.0
    %567 = vmatpush2.xpose.msra.mxu0 0.0
    %568 = vmatprep.subr.mxu0 0.0
    %569 = vmatpush2.xpose.msra.mxu0 0.0
    %570 = vmatprep.subr.mxu0 0.0
    %571 = vmatpush2.xpose.msra.mxu0 0.0
    %572 = vmatprep.subr.mxu0 0.0
    %573 = vmatpush2.xpose.msra.mxu0 0.0
    %574 = vmatprep.subr.mxu0 0.0
    %575 = vmatpush2.xpose.msra.mxu0 0.0
    %576 = vmatprep.subr.mxu0 0.0
    %577 = vmatpush2.xpose.msra.mxu0 0.0
    %578 = vmatprep.subr.mxu0 0.0
    %579 = vmatpush2.xpose.msra.mxu0 0.0
    %580 = vmatprep.subr.mxu0 0.0
    %581 = vmatpush2.xpose.msra.mxu0 0.0
    %582 = vmatprep.subr.mxu0 0.0
    %583 = vmatpush2.xpose.msra.mxu0 0.0
    %584 = vmatprep.subr.mxu0 0.0
    %585 = vmatpush2.xpose.msra.mxu0 0.0
    %586 = vmatprep.subr.mxu0 0.0
    %587 = vmatpush2.xpose.msra.mxu0 0.0
    %588 = vmatprep.subr.mxu0 0.0
    %589 = vmatpush2.xpose.msra.mxu0 0.0
    %590 = vmatprep.subr.mxu0 0.0
    %591 = vmatpush2.xpose.msra.mxu0 0.0
    %592 = vmatprep.mubr.f32.mxu0 0.0
    %593 = vmatmul.mubr.f32.gmra.mxu0 %v524
    %v594 = vpop.f32.mrf.mxu0
    %v595 = vadd.f32 0.0, %v594
    %v596 = vpop.f32.mrf.mxu0
    %597 = vdwg.mxu0
    %598 = vrot.lane.b32.xlu0 %v360, 96
    %v599 = vpop.permute.xlu0 %598
    %v600 = vsel %vm371, %v360, 0
    %v602 = vsel %vm371, %v599, 0
    %604 = vmatprep.subr.mxu0 0.0
    %605 = vmatpush1.xpose.msra.mxu0 0.0
    %606 = vmatprep.subr.mxu0 0.0
    %607 = vmatpush1.xpose.msra.mxu0 0.0
    %608 = vmatprep.subr.mxu0 0.0
    %609 = vmatpush1.xpose.msra.mxu0 0.0
    %610 = vmatprep.subr.mxu0 0.0
    %611 = vmatpush1.xpose.msra.mxu0 0.0
    %612 = vmatprep.subr.mxu0 0.0
    %613 = vmatpush1.xpose.msra.mxu0 0.0
    %614 = vmatprep.subr.mxu0 0.0
    %615 = vmatpush1.xpose.msra.mxu0 0.0
    %616 = vmatprep.subr.mxu0 0.0
    %617 = vmatpush1.xpose.msra.mxu0 0.0
    %618 = vmatprep.subr.mxu0 0.0
    %619 = vmatpush1.xpose.msra.mxu0 0.0
    %620 = vmatprep.subr.mxu0 0.0
    %621 = vmatpush1.xpose.msra.mxu0 0.0
    %622 = vmatprep.subr.mxu0 0.0
    %623 = vmatpush1.xpose.msra.mxu0 0.0
    %624 = vmatprep.subr.mxu0 0.0
    %625 = vmatpush1.xpose.msra.mxu0 0.0
    %626 = vmatprep.subr.mxu0 0.0
    %627 = vmatpush1.xpose.msra.mxu0 0.0
    %628 = vmatprep.subr.mxu0 0.0
    %629 = vmatpush1.xpose.msra.mxu0 0.0
    %630 = vmatprep.subr.mxu0 0.0
    %631 = vmatpush1.xpose.msra.mxu0 0.0
    %632 = vmatprep.subr.mxu0 0.0
    %633 = vmatpush1.xpose.msra.mxu0 0.0
    %634 = vmatprep.subr.mxu0 0.0
    %635 = vmatpush1.xpose.msra.mxu0 %v602
    %636 = vmatprep.subr.mxu0 0.0
    %637 = vmatpush2.xpose.msra.mxu0 0.0
    %638 = vmatprep.subr.mxu0 0.0
    %639 = vmatpush2.xpose.msra.mxu0 0.0
    %640 = vmatprep.subr.mxu0 0.0
    %641 = vmatpush2.xpose.msra.mxu0 0.0
    %642 = vmatprep.subr.mxu0 0.0
    %643 = vmatpush2.xpose.msra.mxu0 0.0
    %644 = vmatprep.subr.mxu0 0.0
    %645 = vmatpush2.xpose.msra.mxu0 0.0
    %646 = vmatprep.subr.mxu0 0.0
    %647 = vmatpush2.xpose.msra.mxu0 0.0
    %648 = vmatprep.subr.mxu0 0.0
    %649 = vmatpush2.xpose.msra.mxu0 0.0
    %650 = vmatprep.subr.mxu0 0.0
    %651 = vmatpush2.xpose.msra.mxu0 0.0
    %652 = vmatprep.subr.mxu0 0.0
    %653 = vmatpush2.xpose.msra.mxu0 0.0
    %654 = vmatprep.subr.mxu0 0.0
    %655 = vmatpush2.xpose.msra.mxu0 0.0
    %656 = vmatprep.subr.mxu0 0.0
    %657 = vmatpush2.xpose.msra.mxu0 0.0
    %658 = vmatprep.subr.mxu0 0.0
    %659 = vmatpush2.xpose.msra.mxu0 0.0
    %660 = vmatprep.subr.mxu0 0.0
    %661 = vmatpush2.xpose.msra.mxu0 0.0
    %662 = vmatprep.subr.mxu0 0.0
    %663 = vmatpush2.xpose.msra.mxu0 0.0
    %664 = vmatprep.subr.mxu0 0.0
    %665 = vmatpush2.xpose.msra.mxu0 0.0
    %666 = vmatprep.subr.mxu0 0.0
    %667 = vmatpush2.xpose.msra.mxu0 0.0
    %668 = vmatprep.mubr.f32.mxu0 0.0
    %669 = vmatmul.mubr.f32.gmra.mxu0 %v600
    %v670 = vpop.f32.mrf.mxu0
    %v671 = vadd.f32 0.0, %v670
    %v672 = vpop.f32.mrf.mxu0
    %673 = vdwg.mxu0
    %674 = vrot.lane.b32.xlu0 %v362, 96
    %v675 = vpop.permute.xlu0 %674
    %v676 = vsel %vm371, %v362, 0
    %v678 = vsel %vm371, %v675, 0
    %680 = vmatprep.subr.mxu0 0.0
    %681 = vmatpush1.xpose.msra.mxu0 0.0
    %682 = vmatprep.subr.mxu0 0.0
    %683 = vmatpush1.xpose.msra.mxu0 0.0
    %684 = vmatprep.subr.mxu0 0.0
    %685 = vmatpush1.xpose.msra.mxu0 0.0
    %686 = vmatprep.subr.mxu0 0.0
    %687 = vmatpush1.xpose.msra.mxu0 0.0
    %688 = vmatprep.subr.mxu0 0.0
    %689 = vmatpush1.xpose.msra.mxu0 0.0
    %690 = vmatprep.subr.mxu0 0.0
    %691 = vmatpush1.xpose.msra.mxu0 0.0
    %692 = vmatprep.subr.mxu0 0.0
    %693 = vmatpush1.xpose.msra.mxu0 0.0
    %694 = vmatprep.subr.mxu0 0.0
    %695 = vmatpush1.xpose.msra.mxu0 0.0
    %696 = vmatprep.subr.mxu0 0.0
    %697 = vmatpush1.xpose.msra.mxu0 0.0
    %698 = vmatprep.subr.mxu0 0.0
    %699 = vmatpush1.xpose.msra.mxu0 0.0
    %700 = vmatprep.subr.mxu0 0.0
    %701 = vmatpush1.xpose.msra.mxu0 0.0
    %702 = vmatprep.subr.mxu0 0.0
    %703 = vmatpush1.xpose.msra.mxu0 0.0
    %704 = vmatprep.subr.mxu0 0.0
    %705 = vmatpush1.xpose.msra.mxu0 0.0
    %706 = vmatprep.subr.mxu0 0.0
    %707 = vmatpush1.xpose.msra.mxu0 0.0
    %708 = vmatprep.subr.mxu0 0.0
    %709 = vmatpush1.xpose.msra.mxu0 0.0
    %710 = vmatprep.subr.mxu0 0.0
    %711 = vmatpush1.xpose.msra.mxu0 %v678
    %712 = vmatprep.subr.mxu0 0.0
    %713 = vmatpush2.xpose.msra.mxu0 0.0
    %714 = vmatprep.subr.mxu0 0.0
    %715 = vmatpush2.xpose.msra.mxu0 0.0
    %716 = vmatprep.subr.mxu0 0.0
    %717 = vmatpush2.xpose.msra.mxu0 0.0
    %718 = vmatprep.subr.mxu0 0.0
    %719 = vmatpush2.xpose.msra.mxu0 0.0
    %720 = vmatprep.subr.mxu0 0.0
    %721 = vmatpush2.xpose.msra.mxu0 0.0
    %722 = vmatprep.subr.mxu0 0.0
    %723 = vmatpush2.xpose.msra.mxu0 0.0
    %724 = vmatprep.subr.mxu0 0.0
    %725 = vmatpush2.xpose.msra.mxu0 0.0
    %726 = vmatprep.subr.mxu0 0.0
    %727 = vmatpush2.xpose.msra.mxu0 0.0
    %728 = vmatprep.subr.mxu0 0.0
    %729 = vmatpush2.xpose.msra.mxu0 0.0
    %730 = vmatprep.subr.mxu0 0.0
    %731 = vmatpush2.xpose.msra.mxu0 0.0
    %732 = vmatprep.subr.mxu0 0.0
    %733 = vmatpush2.xpose.msra.mxu0 0.0
    %734 = vmatprep.subr.mxu0 0.0
    %735 = vmatpush2.xpose.msra.mxu0 0.0
    %736 = vmatprep.subr.mxu0 0.0
    %737 = vmatpush2.xpose.msra.mxu0 0.0
    %738 = vmatprep.subr.mxu0 0.0
    %739 = vmatpush2.xpose.msra.mxu0 0.0
    %740 = vmatprep.subr.mxu0 0.0
    %741 = vmatpush2.xpose.msra.mxu0 0.0
    %742 = vmatprep.subr.mxu0 0.0
    %743 = vmatpush2.xpose.msra.mxu0 0.0
    %744 = vmatprep.mubr.f32.mxu0 0.0
    %745 = vmatmul.mubr.f32.gmra.mxu0 %v676
    %v746 = vpop.f32.mrf.mxu0
    %v747 = vadd.f32 0.0, %v746
    %v748 = vpop.f32.mrf.mxu0
    %749 = vdwg.mxu0
    %750 = vrot.lane.b32.xlu0 %v364, 96
    %v751 = vpop.permute.xlu0 %750
    %v752 = vsel %vm371, %v364, 0
    %v754 = vsel %vm371, %v751, 0
    %756 = vmatprep.subr.mxu0 0.0
    %757 = vmatpush1.xpose.msra.mxu0 0.0
    %758 = vmatprep.subr.mxu0 0.0
    %759 = vmatpush1.xpose.msra.mxu0 0.0
    %760 = vmatprep.subr.mxu0 0.0
    %761 = vmatpush1.xpose.msra.mxu0 0.0
    %762 = vmatprep.subr.mxu0 0.0
    %763 = vmatpush1.xpose.msra.mxu0 0.0
    %764 = vmatprep.subr.mxu0 0.0
    %765 = vmatpush1.xpose.msra.mxu0 0.0
    %766 = vmatprep.subr.mxu0 0.0
    %767 = vmatpush1.xpose.msra.mxu0 0.0
    %768 = vmatprep.subr.mxu0 0.0
    %769 = vmatpush1.xpose.msra.mxu0 0.0
    %770 = vmatprep.subr.mxu0 0.0
    %771 = vmatpush1.xpose.msra.mxu0 0.0
    %772 = vmatprep.subr.mxu0 0.0
    %773 = vmatpush1.xpose.msra.mxu0 0.0
    %774 = vmatprep.subr.mxu0 0.0
    %775 = vmatpush1.xpose.msra.mxu0 0.0
    %776 = vmatprep.subr.mxu0 0.0
    %777 = vmatpush1.xpose.msra.mxu0 0.0
    %778 = vmatprep.subr.mxu0 0.0
    %779 = vmatpush1.xpose.msra.mxu0 0.0
    %780 = vmatprep.subr.mxu0 0.0
    %781 = vmatpush1.xpose.msra.mxu0 0.0
    %782 = vmatprep.subr.mxu0 0.0
    %783 = vmatpush1.xpose.msra.mxu0 0.0
    %784 = vmatprep.subr.mxu0 0.0
    %785 = vmatpush1.xpose.msra.mxu0 0.0
    %786 = vmatprep.subr.mxu0 0.0
    %787 = vmatpush1.xpose.msra.mxu0 %v754
    %788 = vmatprep.subr.mxu0 0.0
    %789 = vmatpush2.xpose.msra.mxu0 0.0
    %790 = vmatprep.subr.mxu0 0.0
    %791 = vmatpush2.xpose.msra.mxu0 0.0
    %792 = vmatprep.subr.mxu0 0.0
    %793 = vmatpush2.xpose.msra.mxu0 0.0
    %794 = vmatprep.subr.mxu0 0.0
    %795 = vmatpush2.xpose.msra.mxu0 0.0
    %796 = vmatprep.subr.mxu0 0.0
    %797 = vmatpush2.xpose.msra.mxu0 0.0
    %798 = vmatprep.subr.mxu0 0.0
    %799 = vmatpush2.xpose.msra.mxu0 0.0
    %800 = vmatprep.subr.mxu0 0.0
    %801 = vmatpush2.xpose.msra.mxu0 0.0
    %802 = vmatprep.subr.mxu0 0.0
    %803 = vmatpush2.xpose.msra.mxu0 0.0
    %804 = vmatprep.subr.mxu0 0.0
    %805 = vmatpush2.xpose.msra.mxu0 0.0
    %806 = vmatprep.subr.mxu0 0.0
    %807 = vmatpush2.xpose.msra.mxu0 0.0
    %808 = vmatprep.subr.mxu0 0.0
    %809 = vmatpush2.xpose.msra.mxu0 0.0
    %810 = vmatprep.subr.mxu0 0.0
    %811 = vmatpush2.xpose.msra.mxu0 0.0
    %812 = vmatprep.subr.mxu0 0.0
    %813 = vmatpush2.xpose.msra.mxu0 0.0
    %814 = vmatprep.subr.mxu0 0.0
    %815 = vmatpush2.xpose.msra.mxu0 0.0
    %816 = vmatprep.subr.mxu0 0.0
    %817 = vmatpush2.xpose.msra.mxu0 0.0
    %818 = vmatprep.subr.mxu0 0.0
    %819 = vmatpush2.xpose.msra.mxu0 0.0
    %820 = vmatprep.mubr.f32.mxu0 0.0
    %821 = vmatmul.mubr.f32.gmra.mxu0 %v752
    %v822 = vpop.f32.mrf.mxu0
    %v823 = vadd.f32 0.0, %v822
    %v824 = vpop.f32.mrf.mxu0
    %825 = vdwg.mxu0
    %826 = vrot.lane.b32.xlu0 %v366, 96
    %v827 = vpop.permute.xlu0 %826
    %v828 = vsel %vm371, %v366, 0
    %v830 = vsel %vm371, %v827, 0
    %832 = vmatprep.subr.mxu0 0.0
    %833 = vmatpush1.xpose.msra.mxu0 0.0
    %834 = vmatprep.subr.mxu0 0.0
    %835 = vmatpush1.xpose.msra.mxu0 0.0
    %836 = vmatprep.subr.mxu0 0.0
    %837 = vmatpush1.xpose.msra.mxu0 0.0
    %838 = vmatprep.subr.mxu0 0.0
    %839 = vmatpush1.xpose.msra.mxu0 0.0
    %840 = vmatprep.subr.mxu0 0.0
    %841 = vmatpush1.xpose.msra.mxu0 0.0
    %842 = vmatprep.subr.mxu0 0.0
    %843 = vmatpush1.xpose.msra.mxu0 0.0
    %844 = vmatprep.subr.mxu0 0.0
    %845 = vmatpush1.xpose.msra.mxu0 0.0
    %846 = vmatprep.subr.mxu0 0.0
    %847 = vmatpush1.xpose.msra.mxu0 0.0
    %848 = vmatprep.subr.mxu0 0.0
    %849 = vmatpush1.xpose.msra.mxu0 0.0
    %850 = vmatprep.subr.mxu0 0.0
    %851 = vmatpush1.xpose.msra.mxu0 0.0
    %852 = vmatprep.subr.mxu0 0.0
    %853 = vmatpush1.xpose.msra.mxu0 0.0
    %854 = vmatprep.subr.mxu0 0.0
    %855 = vmatpush1.xpose.msra.mxu0 0.0
    %856 = vmatprep.subr.mxu0 0.0
    %857 = vmatpush1.xpose.msra.mxu0 0.0
    %858 = vmatprep.subr.mxu0 0.0
    %859 = vmatpush1.xpose.msra.mxu0 0.0
    %860 = vmatprep.subr.mxu0 0.0
    %861 = vmatpush1.xpose.msra.mxu0 0.0
    %862 = vmatprep.subr.mxu0 0.0
    %863 = vmatpush1.xpose.msra.mxu0 %v830
    %864 = vmatprep.subr.mxu0 0.0
    %865 = vmatpush2.xpose.msra.mxu0 0.0
    %866 = vmatprep.subr.mxu0 0.0
    %867 = vmatpush2.xpose.msra.mxu0 0.0
    %868 = vmatprep.subr.mxu0 0.0
    %869 = vmatpush2.xpose.msra.mxu0 0.0
    %870 = vmatprep.subr.mxu0 0.0
    %871 = vmatpush2.xpose.msra.mxu0 0.0
    %872 = vmatprep.subr.mxu0 0.0
    %873 = vmatpush2.xpose.msra.mxu0 0.0
    %874 = vmatprep.subr.mxu0 0.0
    %875 = vmatpush2.xpose.msra.mxu0 0.0
    %876 = vmatprep.subr.mxu0 0.0
    %877 = vmatpush2.xpose.msra.mxu0 0.0
    %878 = vmatprep.subr.mxu0 0.0
    %879 = vmatpush2.xpose.msra.mxu0 0.0
    %880 = vmatprep.subr.mxu0 0.0
    %881 = vmatpush2.xpose.msra.mxu0 0.0
    %882 = vmatprep.subr.mxu0 0.0
    %883 = vmatpush2.xpose.msra.mxu0 0.0
    %884 = vmatprep.subr.mxu0 0.0
    %885 = vmatpush2.xpose.msra.mxu0 0.0
    %886 = vmatprep.subr.mxu0 0.0
    %887 = vmatpush2.xpose.msra.mxu0 0.0
    %888 = vmatprep.subr.mxu0 0.0
    %889 = vmatpush2.xpose.msra.mxu0 0.0
    %890 = vmatprep.subr.mxu0 0.0
    %891 = vmatpush2.xpose.msra.mxu0 0.0
    %892 = vmatprep.subr.mxu0 0.0
    %893 = vmatpush2.xpose.msra.mxu0 0.0
    %894 = vmatprep.subr.mxu0 0.0
    %895 = vmatpush2.xpose.msra.mxu0 0.0
    %896 = vmatprep.mubr.f32.mxu0 0.0
    %897 = vmatmul.mubr.f32.gmra.mxu0 %v828
    %v898 = vpop.f32.mrf.mxu0
    %v899 = vadd.f32 0.0, %v898
    %v900 = vpop.f32.mrf.mxu0
    %901 = vdwg.mxu0
    %902 = vrot.lane.b32.xlu0 %v368, 96
    %v903 = vpop.permute.xlu0 %902
    %v904 = vsel %vm371, %v368, 0
    %v906 = vsel %vm371, %v903, 0
    %908 = vmatprep.subr.mxu0 0.0
    %909 = vmatpush1.xpose.msra.mxu0 0.0
    %910 = vmatprep.subr.mxu0 0.0
    %911 = vmatpush1.xpose.msra.mxu0 0.0
    %912 = vmatprep.subr.mxu0 0.0
    %913 = vmatpush1.xpose.msra.mxu0 0.0
    %914 = vmatprep.subr.mxu0 0.0
    %915 = vmatpush1.xpose.msra.mxu0 0.0
    %916 = vmatprep.subr.mxu0 0.0
    %917 = vmatpush1.xpose.msra.mxu0 0.0
    %918 = vmatprep.subr.mxu0 0.0
    %919 = vmatpush1.xpose.msra.mxu0 0.0
    %920 = vmatprep.subr.mxu0 0.0
    %921 = vmatpush1.xpose.msra.mxu0 0.0
    %922 = vmatprep.subr.mxu0 0.0
    %923 = vmatpush1.xpose.msra.mxu0 0.0
    %924 = vmatprep.subr.mxu0 0.0
    %925 = vmatpush1.xpose.msra.mxu0 0.0
    %926 = vmatprep.subr.mxu0 0.0
    %927 = vmatpush1.xpose.msra.mxu0 0.0
    %928 = vmatprep.subr.mxu0 0.0
    %929 = vmatpush1.xpose.msra.mxu0 0.0
    %930 = vmatprep.subr.mxu0 0.0
    %931 = vmatpush1.xpose.msra.mxu0 0.0
    %932 = vmatprep.subr.mxu0 0.0
    %933 = vmatpush1.xpose.msra.mxu0 0.0
    %934 = vmatprep.subr.mxu0 0.0
    %935 = vmatpush1.xpose.msra.mxu0 0.0
    %936 = vmatprep.subr.mxu0 0.0
    %937 = vmatpush1.xpose.msra.mxu0 0.0
    %938 = vmatprep.subr.mxu0 0.0
    %939 = vmatpush1.xpose.msra.mxu0 %v906
    %940 = vmatprep.subr.mxu0 0.0
    %941 = vmatpush2.xpose.msra.mxu0 0.0
    %942 = vmatprep.subr.mxu0 0.0
    %943 = vmatpush2.xpose.msra.mxu0 0.0
    %944 = vmatprep.subr.mxu0 0.0
    %945 = vmatpush2.xpose.msra.mxu0 0.0
    %946 = vmatprep.subr.mxu0 0.0
    %947 = vmatpush2.xpose.msra.mxu0 0.0
    %948 = vmatprep.subr.mxu0 0.0
    %949 = vmatpush2.xpose.msra.mxu0 0.0
    %950 = vmatprep.subr.mxu0 0.0
    %951 = vmatpush2.xpose.msra.mxu0 0.0
    %952 = vmatprep.subr.mxu0 0.0
    %953 = vmatpush2.xpose.msra.mxu0 0.0
    %954 = vmatprep.subr.mxu0 0.0
    %955 = vmatpush2.xpose.msra.mxu0 0.0
    %956 = vmatprep.subr.mxu0 0.0
    %957 = vmatpush2.xpose.msra.mxu0 0.0
    %958 = vmatprep.subr.mxu0 0.0
    %959 = vmatpush2.xpose.msra.mxu0 0.0
    %960 = vmatprep.subr.mxu0 0.0
    %961 = vmatpush2.xpose.msra.mxu0 0.0
    %962 = vmatprep.subr.mxu0 0.0
    %963 = vmatpush2.xpose.msra.mxu0 0.0
    %964 = vmatprep.subr.mxu0 0.0
    %965 = vmatpush2.xpose.msra.mxu0 0.0
    %966 = vmatprep.subr.mxu0 0.0
    %967 = vmatpush2.xpose.msra.mxu0 0.0
    %968 = vmatprep.subr.mxu0 0.0
    %969 = vmatpush2.xpose.msra.mxu0 0.0
    %970 = vmatprep.subr.mxu0 0.0
    %971 = vmatpush2.xpose.msra.mxu0 0.0
    %972 = vmatprep.mubr.f32.mxu0 0.0
    %973 = vmatmul.mubr.f32.gmra.mxu0 %v904
    %v974 = vpop.f32.mrf.mxu0
    %v975 = vadd.f32 0.0, %v974
    %v976 = vpop.f32.mrf.mxu0
    %977 = vdwg.mxu0
    %v978 = vmul.f32 %v443, 0.35355338
    %v979 = vmul.f32 %v519, 0.35355338
    %v980 = vmul.f32 %v595, 0.35355338
    %v981 = vmul.f32 %v671, 0.35355338
    %v982 = vmul.f32 %v747, 0.35355338
    %v983 = vmul.f32 %v823, 0.35355338
    %v984 = vmul.f32 %v899, 0.35355338
    %v985 = vmul.f32 %v975, 0.35355338
    %v986 = vadd.f32 %v978, %v255
    %v987 = vadd.f32 %v979, %v256
    %v988 = vadd.f32 %v980, %v257
    %v989 = vadd.f32 %v981, %v258
    %v990 = vadd.f32 %v982, %v259
    %v991 = vadd.f32 %v983, %v260
    %v992 = vadd.f32 %v984, %v261
    %v993 = vadd.f32 %v985, %v262
    %v994 = vsel %vm371, %v986, -inf
    %995 = vmax.xlane.f32.xlu0 %v994
    %v996 = vpop.xlane.xlu0 %995
    %v997 = vsel %vm371, %v987, -inf
    %998 = vmax.xlane.f32.xlu0 %v997
    %v999 = vpop.xlane.xlu0 %998
    %v1000 = vsel %vm371, %v988, -inf
    %1001 = vmax.xlane.f32.xlu0 %v1000
    %v1002 = vpop.xlane.xlu0 %1001
    %v1003 = vsel %vm371, %v989, -inf
    %1004 = vmax.xlane.f32.xlu0 %v1003
    %v1005 = vpop.xlane.xlu0 %1004
    %v1006 = vsel %vm371, %v990, -inf
    %1007 = vmax.xlane.f32.xlu0 %v1006
    %v1008 = vpop.xlane.xlu0 %1007
    %v1009 = vsel %vm371, %v991, -inf
    %1010 = vmax.xlane.f32.xlu0 %v1009
    %v1011 = vpop.xlane.xlu0 %1010
    %v1012 = vsel %vm371, %v992, -inf
    %1013 = vmax.xlane.f32.xlu0 %v1012
    %v1014 = vpop.xlane.xlu0 %1013
    %v1015 = vsel %vm371, %v993, -inf
    %1016 = vmax.xlane.f32.xlu0 %v1015
    %v1017 = vpop.xlane.xlu0 %1016
    %v1018 = vsub.f32 %v986, %v996
    %v1019 = vsub.f32 %v987, %v999
    %v1020 = vsub.f32 %v988, %v1002
    %v1021 = vsub.f32 %v989, %v1005
    %v1022 = vsub.f32 %v990, %v1008
    %v1023 = vsub.f32 %v991, %v1011
    %v1024 = vsub.f32 %v992, %v1014
    %v1025 = vsub.f32 %v993, %v1017
    %v1026 = vmul.f32 %v1018, 1.442695
    %v1027 = vpow.pop %v1026
    %v1028 = vmul.f32 %v1019, 1.442695
    %v1029 = vpow.pop %v1028
    %v1030 = vmul.f32 %v1020, 1.442695
    %v1031 = vpow.pop %v1030
    %v1032 = vmul.f32 %v1021, 1.442695
    %v1033 = vpow.pop %v1032
    %v1034 = vmul.f32 %v1022, 1.442695
    %v1035 = vpow.pop %v1034
    %v1036 = vmul.f32 %v1023, 1.442695
    %v1037 = vpow.pop %v1036
    %v1038 = vmul.f32 %v1024, 1.442695
    %v1039 = vpow.pop %v1038
    %v1040 = vmul.f32 %v1025, 1.442695
    %v1041 = vpow.pop %v1040
    %v1042 = vsel %vm371, %v1027, 0.0
    %1043 = vadd.xlane.f32.xlu0 %v1042
    %v1044 = vpop.xlane.xlu0 %1043
    %v1045 = vsel %vm371, %v1029, 0.0
    %1046 = vadd.xlane.f32.xlu0 %v1045
    %v1047 = vpop.xlane.xlu0 %1046
    %v1048 = vsel %vm371, %v1031, 0.0
    %1049 = vadd.xlane.f32.xlu0 %v1048
    %v1050 = vpop.xlane.xlu0 %1049
    %v1051 = vsel %vm371, %v1033, 0.0
    %1052 = vadd.xlane.f32.xlu0 %v1051
    %v1053 = vpop.xlane.xlu0 %1052
    %v1054 = vsel %vm371, %v1035, 0.0
    %1055 = vadd.xlane.f32.xlu0 %v1054
    %v1056 = vpop.xlane.xlu0 %1055
    %v1057 = vsel %vm371, %v1037, 0.0
    %1058 = vadd.xlane.f32.xlu0 %v1057
    %v1059 = vpop.xlane.xlu0 %1058
    %v1060 = vsel %vm371, %v1039, 0.0
    %1061 = vadd.xlane.f32.xlu0 %v1060
    %v1062 = vpop.xlane.xlu0 %1061
    %v1063 = vsel %vm371, %v1041, 0.0
    %1064 = vadd.xlane.f32.xlu0 %v1063
    %v1065 = vpop.xlane.xlu0 %1064
    %v1066 = vrcp.pop %v1044
    %v1067 = vrcp.pop %v1047
    %v1068 = vrcp.pop %v1050
    %v1069 = vrcp.pop %v1053
    %v1070 = vrcp.pop %v1056
    %v1071 = vrcp.pop %v1059
    %v1072 = vrcp.pop %v1062
    %v1073 = vrcp.pop %v1065
    %v1074 = vmul.f32 %v1027, %v1066
    %v1075 = vmul.f32 %v1029, %v1067
    %v1076 = vmul.f32 %v1031, %v1068
    %v1077 = vmul.f32 %v1033, %v1069
    %v1078 = vmul.f32 %v1035, %v1070
    %v1079 = vmul.f32 %v1037, %v1071
    %v1080 = vmul.f32 %v1039, %v1072
    %v1081 = vmul.f32 %v1041, %v1073
    %1082 = vrot.lane.b32.xlu0 %v347, 64
    %v1083 = vpop.permute.xlu0 %1082
    %v1086 = vsel %vm371, %v1074, 0
    %1088 = vmatprep.subr.mxu0 0.0
    %1089 = vmatpush1.msra.mxu0 0.0
    %1090 = vmatprep.subr.mxu0 0.0
    %1091 = vmatpush1.msra.mxu0 0.0
    %1092 = vmatprep.subr.mxu0 0.0
    %1093 = vmatpush1.msra.mxu0 0.0
    %1094 = vmatprep.subr.mxu0 0.0
    %1095 = vmatpush1.msra.mxu0 0.0
    %1096 = vmatprep.subr.mxu0 0.0
    %1097 = vmatpush1.msra.mxu0 0.0
    %1098 = vmatprep.subr.mxu0 0.0
    %1099 = vmatpush1.msra.mxu0 0.0
    %1100 = vmatprep.subr.mxu0 0.0
    %1101 = vmatpush1.msra.mxu0 0.0
    %1102 = vmatprep.subr.mxu0 0.0
    %1103 = vmatpush1.msra.mxu0 0.0
    %1104 = vmatprep.subr.mxu0 0.0
    %1105 = vmatpush1.msra.mxu0 0.0
    %1106 = vmatprep.subr.mxu0 0.0
    %1107 = vmatpush1.msra.mxu0 0.0
    %1108 = vmatprep.subr.mxu0 0.0
    %1109 = vmatpush1.msra.mxu0 0.0
    %1110 = vmatprep.subr.mxu0 0.0
    %1111 = vmatpush1.msra.mxu0 0.0
    %1112 = vmatprep.subr.mxu0 0.0
    %1113 = vmatpush1.msra.mxu0 0.0
    %1114 = vmatprep.subr.mxu0 0.0
    %1115 = vmatpush1.msra.mxu0 0.0
    %1116 = vmatprep.subr.mxu0 0.0
    %1117 = vmatpush1.msra.mxu0 0.0
    %1118 = vmatprep.subr.mxu0 0.0
    %1119 = vmatpush1.msra.mxu0 %v1083
    %1120 = vmatprep.subr.mxu0 0.0
    %1121 = vmatpush2.msra.mxu0 0.0
    %1122 = vmatprep.subr.mxu0 0.0
    %1123 = vmatpush2.msra.mxu0 0.0
    %1124 = vmatprep.subr.mxu0 0.0
    %1125 = vmatpush2.msra.mxu0 0.0
    %1126 = vmatprep.subr.mxu0 0.0
    %1127 = vmatpush2.msra.mxu0 0.0
    %1128 = vmatprep.subr.mxu0 0.0
    %1129 = vmatpush2.msra.mxu0 0.0
    %1130 = vmatprep.subr.mxu0 0.0
    %1131 = vmatpush2.msra.mxu0 0.0
    %1132 = vmatprep.subr.mxu0 0.0
    %1133 = vmatpush2.msra.mxu0 0.0
    %1134 = vmatprep.subr.mxu0 0.0
    %1135 = vmatpush2.msra.mxu0 0.0
    %1136 = vmatprep.subr.mxu0 0.0
    %1137 = vmatpush2.msra.mxu0 0.0
    %1138 = vmatprep.subr.mxu0 0.0
    %1139 = vmatpush2.msra.mxu0 0.0
    %1140 = vmatprep.subr.mxu0 0.0
    %1141 = vmatpush2.msra.mxu0 0.0
    %1142 = vmatprep.subr.mxu0 0.0
    %1143 = vmatpush2.msra.mxu0 0.0
    %1144 = vmatprep.subr.mxu0 0.0
    %1145 = vmatpush2.msra.mxu0 0.0
    %1146 = vmatprep.subr.mxu0 0.0
    %1147 = vmatpush2.msra.mxu0 0.0
    %1148 = vmatprep.subr.mxu0 0.0
    %1149 = vmatpush2.msra.mxu0 0.0
    %1150 = vmatprep.subr.mxu0 0.0
    %1151 = vmatpush2.msra.mxu0 0.0
    %1152 = vmatprep.mubr.f32.mxu0 0.0
    %1153 = vmatmul.mubr.f32.gmra.mxu0 %v1086
    %v1154 = vpop.f32.mrf.mxu0
    %v1155 = vadd.f32 0.0, %v1154
    %v1156 = vpop.f32.mrf.mxu0
    %1157 = vdwg.mxu0
    %1158 = vrot.lane.b32.xlu0 %v352, 64
    %v1159 = vpop.permute.xlu0 %1158
    %v1162 = vsel %vm371, %v1075, 0
    %1164 = vmatprep.subr.mxu0 0.0
    %1165 = vmatpush1.msra.mxu0 0.0
    %1166 = vmatprep.subr.mxu0 0.0
    %1167 = vmatpush1.msra.mxu0 0.0
    %1168 = vmatprep.subr.mxu0 0.0
    %1169 = vmatpush1.msra.mxu0 0.0
    %1170 = vmatprep.subr.mxu0 0.0
    %1171 = vmatpush1.msra.mxu0 0.0
    %1172 = vmatprep.subr.mxu0 0.0
    %1173 = vmatpush1.msra.mxu0 0.0
    %1174 = vmatprep.subr.mxu0 0.0
    %1175 = vmatpush1.msra.mxu0 0.0
    %1176 = vmatprep.subr.mxu0 0.0
    %1177 = vmatpush1.msra.mxu0 0.0
    %1178 = vmatprep.subr.mxu0 0.0
    %1179 = vmatpush1.msra.mxu0 0.0
    %1180 = vmatprep.subr.mxu0 0.0
    %1181 = vmatpush1.msra.mxu0 0.0
    %1182 = vmatprep.subr.mxu0 0.0
    %1183 = vmatpush1.msra.mxu0 0.0
    %1184 = vmatprep.subr.mxu0 0.0
    %1185 = vmatpush1.msra.mxu0 0.0
    %1186 = vmatprep.subr.mxu0 0.0
    %1187 = vmatpush1.msra.mxu0 0.0
    %1188 = vmatprep.subr.mxu0 0.0
    %1189 = vmatpush1.msra.mxu0 0.0
    %1190 = vmatprep.subr.mxu0 0.0
    %1191 = vmatpush1.msra.mxu0 0.0
    %1192 = vmatprep.subr.mxu0 0.0
    %1193 = vmatpush1.msra.mxu0 0.0
    %1194 = vmatprep.subr.mxu0 0.0
    %1195 = vmatpush1.msra.mxu0 %v1159
    %1196 = vmatprep.subr.mxu0 0.0
    %1197 = vmatpush2.msra.mxu0 0.0
    %1198 = vmatprep.subr.mxu0 0.0
    %1199 = vmatpush2.msra.mxu0 0.0
    %1200 = vmatprep.subr.mxu0 0.0
    %1201 = vmatpush2.msra.mxu0 0.0
    %1202 = vmatprep.subr.mxu0 0.0
    %1203 = vmatpush2.msra.mxu0 0.0
    %1204 = vmatprep.subr.mxu0 0.0
    %1205 = vmatpush2.msra.mxu0 0.0
    %1206 = vmatprep.subr.mxu0 0.0
    %1207 = vmatpush2.msra.mxu0 0.0
    %1208 = vmatprep.subr.mxu0 0.0
    %1209 = vmatpush2.msra.mxu0 0.0
    %1210 = vmatprep.subr.mxu0 0.0
    %1211 = vmatpush2.msra.mxu0 0.0
    %1212 = vmatprep.subr.mxu0 0.0
    %1213 = vmatpush2.msra.mxu0 0.0
    %1214 = vmatprep.subr.mxu0 0.0
    %1215 = vmatpush2.msra.mxu0 0.0
    %1216 = vmatprep.subr.mxu0 0.0
    %1217 = vmatpush2.msra.mxu0 0.0
    %1218 = vmatprep.subr.mxu0 0.0
    %1219 = vmatpush2.msra.mxu0 0.0
    %1220 = vmatprep.subr.mxu0 0.0
    %1221 = vmatpush2.msra.mxu0 0.0
    %1222 = vmatprep.subr.mxu0 0.0
    %1223 = vmatpush2.msra.mxu0 0.0
    %1224 = vmatprep.subr.mxu0 0.0
    %1225 = vmatpush2.msra.mxu0 0.0
    %1226 = vmatprep.subr.mxu0 0.0
    %1227 = vmatpush2.msra.mxu0 0.0
    %1228 = vmatprep.mubr.f32.mxu0 0.0
    %1229 = vmatmul.mubr.f32.gmra.mxu0 %v1162
    %v1230 = vpop.f32.mrf.mxu0
    %v1231 = vadd.f32 0.0, %v1230
    %v1232 = vpop.f32.mrf.mxu0
    %1233 = vdwg.mxu0
    %1234 = vrot.lane.b32.xlu0 %v358, 64
    %v1235 = vpop.permute.xlu0 %1234
    %v1238 = vsel %vm371, %v1076, 0
    %1240 = vmatprep.subr.mxu0 0.0
    %1241 = vmatpush1.msra.mxu0 0.0
    %1242 = vmatprep.subr.mxu0 0.0
    %1243 = vmatpush1.msra.mxu0 0.0
    %1244 = vmatprep.subr.mxu0 0.0
    %1245 = vmatpush1.msra.mxu0 0.0
    %1246 = vmatprep.subr.mxu0 0.0
    %1247 = vmatpush1.msra.mxu0 0.0
    %1248 = vmatprep.subr.mxu0 0.0
    %1249 = vmatpush1.msra.mxu0 0.0
    %1250 = vmatprep.subr.mxu0 0.0
    %1251 = vmatpush1.msra.mxu0 0.0
    %1252 = vmatprep.subr.mxu0 0.0
    %1253 = vmatpush1.msra.mxu0 0.0
    %1254 = vmatprep.subr.mxu0 0.0
    %1255 = vmatpush1.msra.mxu0 0.0
    %1256 = vmatprep.subr.mxu0 0.0
    %1257 = vmatpush1.msra.mxu0 0.0
    %1258 = vmatprep.subr.mxu0 0.0
    %1259 = vmatpush1.msra.mxu0 0.0
    %1260 = vmatprep.subr.mxu0 0.0
    %1261 = vmatpush1.msra.mxu0 0.0
    %1262 = vmatprep.subr.mxu0 0.0
    %1263 = vmatpush1.msra.mxu0 0.0
    %1264 = vmatprep.subr.mxu0 0.0
    %1265 = vmatpush1.msra.mxu0 0.0
    %1266 = vmatprep.subr.mxu0 0.0
    %1267 = vmatpush1.msra.mxu0 0.0
    %1268 = vmatprep.subr.mxu0 0.0
    %1269 = vmatpush1.msra.mxu0 0.0
    %1270 = vmatprep.subr.mxu0 0.0
    %1271 = vmatpush1.msra.mxu0 %v1235
    %1272 = vmatprep.subr.mxu0 0.0
    %1273 = vmatpush2.msra.mxu0 0.0
    %1274 = vmatprep.subr.mxu0 0.0
    %1275 = vmatpush2.msra.mxu0 0.0
    %1276 = vmatprep.subr.mxu0 0.0
    %1277 = vmatpush2.msra.mxu0 0.0
    %1278 = vmatprep.subr.mxu0 0.0
    %1279 = vmatpush2.msra.mxu0 0.0
    %1280 = vmatprep.subr.mxu0 0.0
    %1281 = vmatpush2.msra.mxu0 0.0
    %1282 = vmatprep.subr.mxu0 0.0
    %1283 = vmatpush2.msra.mxu0 0.0
    %1284 = vmatprep.subr.mxu0 0.0
    %1285 = vmatpush2.msra.mxu0 0.0
    %1286 = vmatprep.subr.mxu0 0.0
    %1287 = vmatpush2.msra.mxu0 0.0
    %1288 = vmatprep.subr.mxu0 0.0
    %1289 = vmatpush2.msra.mxu0 0.0
    %1290 = vmatprep.subr.mxu0 0.0
    %1291 = vmatpush2.msra.mxu0 0.0
    %1292 = vmatprep.subr.mxu0 0.0
    %1293 = vmatpush2.msra.mxu0 0.0
    %1294 = vmatprep.subr.mxu0 0.0
    %1295 = vmatpush2.msra.mxu0 0.0
    %1296 = vmatprep.subr.mxu0 0.0
    %1297 = vmatpush2.msra.mxu0 0.0
    %1298 = vmatprep.subr.mxu0 0.0
    %1299 = vmatpush2.msra.mxu0 0.0
    %1300 = vmatprep.subr.mxu0 0.0
    %1301 = vmatpush2.msra.mxu0 0.0
    %1302 = vmatprep.subr.mxu0 0.0
    %1303 = vmatpush2.msra.mxu0 0.0
    %1304 = vmatprep.mubr.f32.mxu0 0.0
    %1305 = vmatmul.mubr.f32.gmra.mxu0 %v1238
    %v1306 = vpop.f32.mrf.mxu0
    %v1307 = vadd.f32 0.0, %v1306
    %v1308 = vpop.f32.mrf.mxu0
    %1309 = vdwg.mxu0
    %1310 = vrot.lane.b32.xlu0 %v360, 64
    %v1311 = vpop.permute.xlu0 %1310
    %v1314 = vsel %vm371, %v1077, 0
    %1316 = vmatprep.subr.mxu0 0.0
    %1317 = vmatpush1.msra.mxu0 0.0
    %1318 = vmatprep.subr.mxu0 0.0
    %1319 = vmatpush1.msra.mxu0 0.0
    %1320 = vmatprep.subr.mxu0 0.0
    %1321 = vmatpush1.msra.mxu0 0.0
    %1322 = vmatprep.subr.mxu0 0.0
    %1323 = vmatpush1.msra.mxu0 0.0
    %1324 = vmatprep.subr.mxu0 0.0
    %1325 = vmatpush1.msra.mxu0 0.0
    %1326 = vmatprep.subr.mxu0 0.0
    %1327 = vmatpush1.msra.mxu0 0.0
    %1328 = vmatprep.subr.mxu0 0.0
    %1329 = vmatpush1.msra.mxu0 0.0
    %1330 = vmatprep.subr.mxu0 0.0
    %1331 = vmatpush1.msra.mxu0 0.0
    %1332 = vmatprep.subr.mxu0 0.0
    %1333 = vmatpush1.msra.mxu0 0.0
    %1334 = vmatprep.subr.mxu0 0.0
    %1335 = vmatpush1.msra.mxu0 0.0
    %1336 = vmatprep.subr.mxu0 0.0
    %1337 = vmatpush1.msra.mxu0 0.0
    %1338 = vmatprep.subr.mxu0 0.0
    %1339 = vmatpush1.msra.mxu0 0.0
    %1340 = vmatprep.subr.mxu0 0.0
    %1341 = vmatpush1.msra.mxu0 0.0
    %1342 = vmatprep.subr.mxu0 0.0
    %1343 = vmatpush1.msra.mxu0 0.0
    %1344 = vmatprep.subr.mxu0 0.0
    %1345 = vmatpush1.msra.mxu0 0.0
    %1346 = vmatprep.subr.mxu0 0.0
    %1347 = vmatpush1.msra.mxu0 %v1311
    %1348 = vmatprep.subr.mxu0 0.0
    %1349 = vmatpush2.msra.mxu0 0.0
    %1350 = vmatprep.subr.mxu0 0.0
    %1351 = vmatpush2.msra.mxu0 0.0
    %1352 = vmatprep.subr.mxu0 0.0
    %1353 = vmatpush2.msra.mxu0 0.0
    %1354 = vmatprep.subr.mxu0 0.0
    %1355 = vmatpush2.msra.mxu0 0.0
    %1356 = vmatprep.subr.mxu0 0.0
    %1357 = vmatpush2.msra.mxu0 0.0
    %1358 = vmatprep.subr.mxu0 0.0
    %1359 = vmatpush2.msra.mxu0 0.0
    %1360 = vmatprep.subr.mxu0 0.0
    %1361 = vmatpush2.msra.mxu0 0.0
    %1362 = vmatprep.subr.mxu0 0.0
    %1363 = vmatpush2.msra.mxu0 0.0
    %1364 = vmatprep.subr.mxu0 0.0
    %1365 = vmatpush2.msra.mxu0 0.0
    %1366 = vmatprep.subr.mxu0 0.0
    %1367 = vmatpush2.msra.mxu0 0.0
    %1368 = vmatprep.subr.mxu0 0.0
    %1369 = vmatpush2.msra.mxu0 0.0
    %1370 = vmatprep.subr.mxu0 0.0
    %1371 = vmatpush2.msra.mxu0 0.0
    %1372 = vmatprep.subr.mxu0 0.0
    %1373 = vmatpush2.msra.mxu0 0.0
    %1374 = vmatprep.subr.mxu0 0.0
    %1375 = vmatpush2.msra.mxu0 0.0
    %1376 = vmatprep.subr.mxu0 0.0
    %1377 = vmatpush2.msra.mxu0 0.0
    %1378 = vmatprep.subr.mxu0 0.0
    %1379 = vmatpush2.msra.mxu0 0.0
    %1380 = vmatprep.mubr.f32.mxu0 0.0
    %1381 = vmatmul.mubr.f32.gmra.mxu0 %v1314
    %v1382 = vpop.f32.mrf.mxu0
    %v1383 = vadd.f32 0.0, %v1382
    %v1384 = vpop.f32.mrf.mxu0
    %1385 = vdwg.mxu0
    %1386 = vrot.lane.b32.xlu0 %v362, 64
    %v1387 = vpop.permute.xlu0 %1386
    %v1390 = vsel %vm371, %v1078, 0
    %1392 = vmatprep.subr.mxu0 0.0
    %1393 = vmatpush1.msra.mxu0 0.0
    %1394 = vmatprep.subr.mxu0 0.0
    %1395 = vmatpush1.msra.mxu0 0.0
    %1396 = vmatprep.subr.mxu0 0.0
    %1397 = vmatpush1.msra.mxu0 0.0
    %1398 = vmatprep.subr.mxu0 0.0
    %1399 = vmatpush1.msra.mxu0 0.0
    %1400 = vmatprep.subr.mxu0 0.0
    %1401 = vmatpush1.msra.mxu0 0.0
    %1402 = vmatprep.subr.mxu0 0.0
    %1403 = vmatpush1.msra.mxu0 0.0
    %1404 = vmatprep.subr.mxu0 0.0
    %1405 = vmatpush1.msra.mxu0 0.0
    %1406 = vmatprep.subr.mxu0 0.0
    %1407 = vmatpush1.msra.mxu0 0.0
    %1408 = vmatprep.subr.mxu0 0.0
    %1409 = vmatpush1.msra.mxu0 0.0
    %1410 = vmatprep.subr.mxu0 0.0
    %1411 = vmatpush1.msra.mxu0 0.0
    %1412 = vmatprep.subr.mxu0 0.0
    %1413 = vmatpush1.msra.mxu0 0.0
    %1414 = vmatprep.subr.mxu0 0.0
    %1415 = vmatpush1.msra.mxu0 0.0
    %1416 = vmatprep.subr.mxu0 0.0
    %1417 = vmatpush1.msra.mxu0 0.0
    %1418 = vmatprep.subr.mxu0 0.0
    %1419 = vmatpush1.msra.mxu0 0.0
    %1420 = vmatprep.subr.mxu0 0.0
    %1421 = vmatpush1.msra.mxu0 0.0
    %1422 = vmatprep.subr.mxu0 0.0
    %1423 = vmatpush1.msra.mxu0 %v1387
    %1424 = vmatprep.subr.mxu0 0.0
    %1425 = vmatpush2.msra.mxu0 0.0
    %1426 = vmatprep.subr.mxu0 0.0
    %1427 = vmatpush2.msra.mxu0 0.0
    %1428 = vmatprep.subr.mxu0 0.0
    %1429 = vmatpush2.msra.mxu0 0.0
    %1430 = vmatprep.subr.mxu0 0.0
    %1431 = vmatpush2.msra.mxu0 0.0
    %1432 = vmatprep.subr.mxu0 0.0
    %1433 = vmatpush2.msra.mxu0 0.0
    %1434 = vmatprep.subr.mxu0 0.0
    %1435 = vmatpush2.msra.mxu0 0.0
    %1436 = vmatprep.subr.mxu0 0.0
    %1437 = vmatpush2.msra.mxu0 0.0
    %1438 = vmatprep.subr.mxu0 0.0
    %1439 = vmatpush2.msra.mxu0 0.0
    %1440 = vmatprep.subr.mxu0 0.0
    %1441 = vmatpush2.msra.mxu0 0.0
    %1442 = vmatprep.subr.mxu0 0.0
    %1443 = vmatpush2.msra.mxu0 0.0
    %1444 = vmatprep.subr.mxu0 0.0
    %1445 = vmatpush2.msra.mxu0 0.0
    %1446 = vmatprep.subr.mxu0 0.0
    %1447 = vmatpush2.msra.mxu0 0.0
    %1448 = vmatprep.subr.mxu0 0.0
    %1449 = vmatpush2.msra.mxu0 0.0
    %1450 = vmatprep.subr.mxu0 0.0
    %1451 = vmatpush2.msra.mxu0 0.0
    %1452 = vmatprep.subr.mxu0 0.0
    %1453 = vmatpush2.msra.mxu0 0.0
    %1454 = vmatprep.subr.mxu0 0.0
    %1455 = vmatpush2.msra.mxu0 0.0
    %1456 = vmatprep.mubr.f32.mxu0 0.0
    %1457 = vmatmul.mubr.f32.gmra.mxu0 %v1390
    %v1458 = vpop.f32.mrf.mxu0
    %v1459 = vadd.f32 0.0, %v1458
    %v1460 = vpop.f32.mrf.mxu0
    %1461 = vdwg.mxu0
    %1462 = vrot.lane.b32.xlu0 %v364, 64
    %v1463 = vpop.permute.xlu0 %1462
    %v1466 = vsel %vm371, %v1079, 0
    %1468 = vmatprep.subr.mxu0 0.0
    %1469 = vmatpush1.msra.mxu0 0.0
    %1470 = vmatprep.subr.mxu0 0.0
    %1471 = vmatpush1.msra.mxu0 0.0
    %1472 = vmatprep.subr.mxu0 0.0
    %1473 = vmatpush1.msra.mxu0 0.0
    %1474 = vmatprep.subr.mxu0 0.0
    %1475 = vmatpush1.msra.mxu0 0.0
    %1476 = vmatprep.subr.mxu0 0.0
    %1477 = vmatpush1.msra.mxu0 0.0
    %1478 = vmatprep.subr.mxu0 0.0
    %1479 = vmatpush1.msra.mxu0 0.0
    %1480 = vmatprep.subr.mxu0 0.0
    %1481 = vmatpush1.msra.mxu0 0.0
    %1482 = vmatprep.subr.mxu0 0.0
    %1483 = vmatpush1.msra.mxu0 0.0
    %1484 = vmatprep.subr.mxu0 0.0
    %1485 = vmatpush1.msra.mxu0 0.0
    %1486 = vmatprep.subr.mxu0 0.0
    %1487 = vmatpush1.msra.mxu0 0.0
    %1488 = vmatprep.subr.mxu0 0.0
    %1489 = vmatpush1.msra.mxu0 0.0
    %1490 = vmatprep.subr.mxu0 0.0
    %1491 = vmatpush1.msra.mxu0 0.0
    %1492 = vmatprep.subr.mxu0 0.0
    %1493 = vmatpush1.msra.mxu0 0.0
    %1494 = vmatprep.subr.mxu0 0.0
    %1495 = vmatpush1.msra.mxu0 0.0
    %1496 = vmatprep.subr.mxu0 0.0
    %1497 = vmatpush1.msra.mxu0 0.0
    %1498 = vmatprep.subr.mxu0 0.0
    %1499 = vmatpush1.msra.mxu0 %v1463
    %1500 = vmatprep.subr.mxu0 0.0
    %1501 = vmatpush2.msra.mxu0 0.0
    %1502 = vmatprep.subr.mxu0 0.0
    %1503 = vmatpush2.msra.mxu0 0.0
    %1504 = vmatprep.subr.mxu0 0.0
    %1505 = vmatpush2.msra.mxu0 0.0
    %1506 = vmatprep.subr.mxu0 0.0
    %1507 = vmatpush2.msra.mxu0 0.0
    %1508 = vmatprep.subr.mxu0 0.0
    %1509 = vmatpush2.msra.mxu0 0.0
    %1510 = vmatprep.subr.mxu0 0.0
    %1511 = vmatpush2.msra.mxu0 0.0
    %1512 = vmatprep.subr.mxu0 0.0
    %1513 = vmatpush2.msra.mxu0 0.0
    %1514 = vmatprep.subr.mxu0 0.0
    %1515 = vmatpush2.msra.mxu0 0.0
    %1516 = vmatprep.subr.mxu0 0.0
    %1517 = vmatpush2.msra.mxu0 0.0
    %1518 = vmatprep.subr.mxu0 0.0
    %1519 = vmatpush2.msra.mxu0 0.0
    %1520 = vmatprep.subr.mxu0 0.0
    %1521 = vmatpush2.msra.mxu0 0.0
    %1522 = vmatprep.subr.mxu0 0.0
    %1523 = vmatpush2.msra.mxu0 0.0
    %1524 = vmatprep.subr.mxu0 0.0
    %1525 = vmatpush2.msra.mxu0 0.0
    %1526 = vmatprep.subr.mxu0 0.0
    %1527 = vmatpush2.msra.mxu0 0.0
    %1528 = vmatprep.subr.mxu0 0.0
    %1529 = vmatpush2.msra.mxu0 0.0
    %1530 = vmatprep.subr.mxu0 0.0
    %1531 = vmatpush2.msra.mxu0 0.0
    %1532 = vmatprep.mubr.f32.mxu0 0.0
    %1533 = vmatmul.mubr.f32.gmra.mxu0 %v1466
    %v1534 = vpop.f32.mrf.mxu0
    %v1535 = vadd.f32 0.0, %v1534
    %v1536 = vpop.f32.mrf.mxu0
    %1537 = vdwg.mxu0
    %1538 = vrot.lane.b32.xlu0 %v366, 64
    %v1539 = vpop.permute.xlu0 %1538
    %v1542 = vsel %vm371, %v1080, 0
    %1544 = vmatprep.subr.mxu0 0.0
    %1545 = vmatpush1.msra.mxu0 0.0
    %1546 = vmatprep.subr.mxu0 0.0
    %1547 = vmatpush1.msra.mxu0 0.0
    %1548 = vmatprep.subr.mxu0 0.0
    %1549 = vmatpush1.msra.mxu0 0.0
    %1550 = vmatprep.subr.mxu0 0.0
    %1551 = vmatpush1.msra.mxu0 0.0
    %1552 = vmatprep.subr.mxu0 0.0
    %1553 = vmatpush1.msra.mxu0 0.0
    %1554 = vmatprep.subr.mxu0 0.0
    %1555 = vmatpush1.msra.mxu0 0.0
    %1556 = vmatprep.subr.mxu0 0.0
    %1557 = vmatpush1.msra.mxu0 0.0
    %1558 = vmatprep.subr.mxu0 0.0
    %1559 = vmatpush1.msra.mxu0 0.0
    %1560 = vmatprep.subr.mxu0 0.0
    %1561 = vmatpush1.msra.mxu0 0.0
    %1562 = vmatprep.subr.mxu0 0.0
    %1563 = vmatpush1.msra.mxu0 0.0
    %1564 = vmatprep.subr.mxu0 0.0
    %1565 = vmatpush1.msra.mxu0 0.0
    %1566 = vmatprep.subr.mxu0 0.0
    %1567 = vmatpush1.msra.mxu0 0.0
    %1568 = vmatprep.subr.mxu0 0.0
    %1569 = vmatpush1.msra.mxu0 0.0
    %1570 = vmatprep.subr.mxu0 0.0
    %1571 = vmatpush1.msra.mxu0 0.0
    %1572 = vmatprep.subr.mxu0 0.0
    %1573 = vmatpush1.msra.mxu0 0.0
    %1574 = vmatprep.subr.mxu0 0.0
    %1575 = vmatpush1.msra.mxu0 %v1539
    %1576 = vmatprep.subr.mxu0 0.0
    %1577 = vmatpush2.msra.mxu0 0.0
    %1578 = vmatprep.subr.mxu0 0.0
    %1579 = vmatpush2.msra.mxu0 0.0
    %1580 = vmatprep.subr.mxu0 0.0
    %1581 = vmatpush2.msra.mxu0 0.0
    %1582 = vmatprep.subr.mxu0 0.0
    %1583 = vmatpush2.msra.mxu0 0.0
    %1584 = vmatprep.subr.mxu0 0.0
    %1585 = vmatpush2.msra.mxu0 0.0
    %1586 = vmatprep.subr.mxu0 0.0
    %1587 = vmatpush2.msra.mxu0 0.0
    %1588 = vmatprep.subr.mxu0 0.0
    %1589 = vmatpush2.msra.mxu0 0.0
    %1590 = vmatprep.subr.mxu0 0.0
    %1591 = vmatpush2.msra.mxu0 0.0
    %1592 = vmatprep.subr.mxu0 0.0
    %1593 = vmatpush2.msra.mxu0 0.0
    %1594 = vmatprep.subr.mxu0 0.0
    %1595 = vmatpush2.msra.mxu0 0.0
    %1596 = vmatprep.subr.mxu0 0.0
    %1597 = vmatpush2.msra.mxu0 0.0
    %1598 = vmatprep.subr.mxu0 0.0
    %1599 = vmatpush2.msra.mxu0 0.0
    %1600 = vmatprep.subr.mxu0 0.0
    %1601 = vmatpush2.msra.mxu0 0.0
    %1602 = vmatprep.subr.mxu0 0.0
    %1603 = vmatpush2.msra.mxu0 0.0
    %1604 = vmatprep.subr.mxu0 0.0
    %1605 = vmatpush2.msra.mxu0 0.0
    %1606 = vmatprep.subr.mxu0 0.0
    %1607 = vmatpush2.msra.mxu0 0.0
    %1608 = vmatprep.mubr.f32.mxu0 0.0
    %1609 = vmatmul.mubr.f32.gmra.mxu0 %v1542
    %v1610 = vpop.f32.mrf.mxu0
    %v1611 = vadd.f32 0.0, %v1610
    %v1612 = vpop.f32.mrf.mxu0
    %1613 = vdwg.mxu0
    %1614 = vrot.lane.b32.xlu0 %v368, 64
    %v1615 = vpop.permute.xlu0 %1614
    %v1618 = vsel %vm371, %v1081, 0
    %1620 = vmatprep.subr.mxu0 0.0
    %1621 = vmatpush1.msra.mxu0 0.0
    %1622 = vmatprep.subr.mxu0 0.0
    %1623 = vmatpush1.msra.mxu0 0.0
    %1624 = vmatprep.subr.mxu0 0.0
    %1625 = vmatpush1.msra.mxu0 0.0
    %1626 = vmatprep.subr.mxu0 0.0
    %1627 = vmatpush1.msra.mxu0 0.0
    %1628 = vmatprep.subr.mxu0 0.0
    %1629 = vmatpush1.msra.mxu0 0.0
    %1630 = vmatprep.subr.mxu0 0.0
    %1631 = vmatpush1.msra.mxu0 0.0
    %1632 = vmatprep.subr.mxu0 0.0
    %1633 = vmatpush1.msra.mxu0 0.0
    %1634 = vmatprep.subr.mxu0 0.0
    %1635 = vmatpush1.msra.mxu0 0.0
    %1636 = vmatprep.subr.mxu0 0.0
    %1637 = vmatpush1.msra.mxu0 0.0
    %1638 = vmatprep.subr.mxu0 0.0
    %1639 = vmatpush1.msra.mxu0 0.0
    %1640 = vmatprep.subr.mxu0 0.0
    %1641 = vmatpush1.msra.mxu0 0.0
    %1642 = vmatprep.subr.mxu0 0.0
    %1643 = vmatpush1.msra.mxu0 0.0
    %1644 = vmatprep.subr.mxu0 0.0
    %1645 = vmatpush1.msra.mxu0 0.0
    %1646 = vmatprep.subr.mxu0 0.0
    %1647 = vmatpush1.msra.mxu0 0.0
    %1648 = vmatprep.subr.mxu0 0.0
    %1649 = vmatpush1.msra.mxu0 0.0
    %1650 = vmatprep.subr.mxu0 0.0
    %1651 = vmatpush1.msra.mxu0 %v1615
    %1652 = vmatprep.subr.mxu0 0.0
    %1653 = vmatpush2.msra.mxu0 0.0
    %1654 = vmatprep.subr.mxu0 0.0
    %1655 = vmatpush2.msra.mxu0 0.0
    %1656 = vmatprep.subr.mxu0 0.0
    %1657 = vmatpush2.msra.mxu0 0.0
    %1658 = vmatprep.subr.mxu0 0.0
    %1659 = vmatpush2.msra.mxu0 0.0
    %1660 = vmatprep.subr.mxu0 0.0
    %1661 = vmatpush2.msra.mxu0 0.0
    %1662 = vmatprep.subr.mxu0 0.0
    %1663 = vmatpush2.msra.mxu0 0.0
    %1664 = vmatprep.subr.mxu0 0.0
    %1665 = vmatpush2.msra.mxu0 0.0
    %1666 = vmatprep.subr.mxu0 0.0
    %1667 = vmatpush2.msra.mxu0 0.0
    %1668 = vmatprep.subr.mxu0 0.0
    %1669 = vmatpush2.msra.mxu0 0.0
    %1670 = vmatprep.subr.mxu0 0.0
    %1671 = vmatpush2.msra.mxu0 0.0
    %1672 = vmatprep.subr.mxu0 0.0
    %1673 = vmatpush2.msra.mxu0 0.0
    %1674 = vmatprep.subr.mxu0 0.0
    %1675 = vmatpush2.msra.mxu0 0.0
    %1676 = vmatprep.subr.mxu0 0.0
    %1677 = vmatpush2.msra.mxu0 0.0
    %1678 = vmatprep.subr.mxu0 0.0
    %1679 = vmatpush2.msra.mxu0 0.0
    %1680 = vmatprep.subr.mxu0 0.0
    %1681 = vmatpush2.msra.mxu0 0.0
    %1682 = vmatprep.subr.mxu0 0.0
    %1683 = vmatpush2.msra.mxu0 0.0
    %1684 = vmatprep.mubr.f32.mxu0 0.0
    %1685 = vmatmul.mubr.f32.gmra.mxu0 %v1618
    %v1686 = vpop.f32.mrf.mxu0
    %v1687 = vadd.f32 0.0, %v1686
    %v1688 = vpop.f32.mrf.mxu0
    %1689 = vdwg.mxu0
    %1692 = vrot.lane.b32.xlu0 %v1307, 8
    %v1693 = vpop.permute.xlu0 %1692
    %1694 = vrot.lane.b32.xlu0 %v1383, 8
    %v1695 = vpop.permute.xlu0 %1694
    %1700 = vrot.lane.b32.xlu0 %v1459, 16
    %v1701 = vpop.permute.xlu0 %1700
    %1702 = vrot.lane.b32.xlu0 %v1535, 16
    %v1703 = vpop.permute.xlu0 %1702
    %1708 = vrot.lane.b32.xlu0 %v1611, 24
    %v1709 = vpop.permute.xlu0 %1708
    %1710 = vrot.lane.b32.xlu0 %v1687, 24
    %v1711 = vpop.permute.xlu0 %1710
    %v1714 = vsel %vm371, %v1155, %v1693
    %v1715 = vsel %vm371, %v1231, %v1695
    %vm1716 = vcmask 130048
    %v1717 = vsel %vm1716, %v1714, %v1701
    %v1718 = vsel %vm1716, %v1715, %v1703
    %vm1719 = vcmask 195584
    %v1720 = vsel %vm1719, %v1717, %v1709
    %v1721 = vsel %vm1719, %v1718, %v1711
    %v1722 = vld [vmem:[%s11] sm:$0xff]
    %v1723 = vld [vmem:[%s11 + $0x8] sm:$0xff]
    %v1724 = vld [vmem:[%s11 + $0x10] sm:$0xff]
    %v1725 = vld [vmem:[%s11 + $0x18] sm:$0xff]
    %v1726 = vld [vmem:[%s12] sm:$0x1]
    %v1728 = vlaneseq
    %v1729 = vshrl.u32 %v1728, 7
    %v1730 = vsub.s32 0, %v1729
    %v1731 = vrot.slane %v1726, %v1730
    %v1734 = vsel %vm211, %v1720, 0
    %v1737 = vsel %vm211, %v1721, 0
    %1739 = vmatprep.subr.mxu0 0.0
    %1740 = vmatpush1.msra.mxu0 0.0
    %1741 = vmatprep.subr.mxu0 0.0
    %1742 = vmatpush1.msra.mxu0 0.0
    %1743 = vmatprep.subr.mxu0 0.0
    %1744 = vmatpush1.msra.mxu0 0.0
    %1745 = vmatprep.subr.mxu0 0.0
    %1746 = vmatpush1.msra.mxu0 0.0
    %1747 = vmatprep.subr.mxu0 0.0
    %1748 = vmatpush1.msra.mxu0 0.0
    %1749 = vmatprep.subr.mxu0 0.0
    %1750 = vmatpush1.msra.mxu0 0.0
    %1751 = vmatprep.subr.mxu0 0.0
    %1752 = vmatpush1.msra.mxu0 0.0
    %1753 = vmatprep.subr.mxu0 0.0
    %1754 = vmatpush1.msra.mxu0 0.0
    %1755 = vmatprep.subr.mxu0 0.0
    %1756 = vmatpush1.msra.mxu0 0.0
    %1757 = vmatprep.subr.mxu0 0.0
    %1758 = vmatpush1.msra.mxu0 0.0
    %1759 = vmatprep.subr.mxu0 0.0
    %1760 = vmatpush1.msra.mxu0 0.0
    %1761 = vmatprep.subr.mxu0 0.0
    %1762 = vmatpush1.msra.mxu0 0.0
    %1763 = vmatprep.subr.mxu0 0.0
    %1764 = vmatpush1.msra.mxu0 %v1725
    %1765 = vmatprep.subr.mxu0 0.0
    %1766 = vmatpush1.msra.mxu0 %v1724
    %1767 = vmatprep.subr.mxu0 0.0
    %1768 = vmatpush1.msra.mxu0 %v1723
    %1769 = vmatprep.subr.mxu0 0.0
    %1770 = vmatpush1.msra.mxu0 %v1722
    %1771 = vmatprep.subr.mxu0 0.0
    %1772 = vmatpush2.msra.mxu0 0.0
    %1773 = vmatprep.subr.mxu0 0.0
    %1774 = vmatpush2.msra.mxu0 0.0
    %1775 = vmatprep.subr.mxu0 0.0
    %1776 = vmatpush2.msra.mxu0 0.0
    %1777 = vmatprep.subr.mxu0 0.0
    %1778 = vmatpush2.msra.mxu0 0.0
    %1779 = vmatprep.subr.mxu0 0.0
    %1780 = vmatpush2.msra.mxu0 0.0
    %1781 = vmatprep.subr.mxu0 0.0
    %1782 = vmatpush2.msra.mxu0 0.0
    %1783 = vmatprep.subr.mxu0 0.0
    %1784 = vmatpush2.msra.mxu0 0.0
    %1785 = vmatprep.subr.mxu0 0.0
    %1786 = vmatpush2.msra.mxu0 0.0
    %1787 = vmatprep.subr.mxu0 0.0
    %1788 = vmatpush2.msra.mxu0 0.0
    %1789 = vmatprep.subr.mxu0 0.0
    %1790 = vmatpush2.msra.mxu0 0.0
    %1791 = vmatprep.subr.mxu0 0.0
    %1792 = vmatpush2.msra.mxu0 0.0
    %1793 = vmatprep.subr.mxu0 0.0
    %1794 = vmatpush2.msra.mxu0 0.0
    %1795 = vmatprep.subr.mxu0 0.0
    %1796 = vmatpush2.msra.mxu0 0.0
    %1797 = vmatprep.subr.mxu0 0.0
    %1798 = vmatpush2.msra.mxu0 0.0
    %1799 = vmatprep.subr.mxu0 0.0
    %1800 = vmatpush2.msra.mxu0 0.0
    %1801 = vmatprep.subr.mxu0 0.0
    %1802 = vmatpush2.msra.mxu0 0.0
    %1803 = vmatprep.mubr.f32.mxu0 0.0
    %1804 = vmatmul.mubr.f32.gmra.mxu0 %v1734
    %v1805 = vpop.f32.mrf.mxu0
    %v1806 = vadd.f32 %v1731, %v1805
    %v1807 = vpop.f32.mrf.mxu0
    %1808 = vmatprep.mubr.f32.mxu0 0.0
    %1809 = vmatmul.mubr.f32.gmra.mxu0 %v1737
    %v1810 = vpop.f32.mrf.mxu0
    %v1811 = vadd.f32 %v1731, %v1810
    %v1812 = vpop.f32.mrf.mxu0
    %1813 = vdwg.mxu0
    %v1814 = vadd.f32 %v1806, %v253
    %v1815 = vadd.f32 %v1811, %v254
    %v1816 = vld [vmem:[%s13] sm:$0x1]
    %v1817 = vld [vmem:[%s14] sm:$0x1]
    %v1818 = vsel %vm211, %v1814, 0.0
    %1819 = vadd.xlane.f32.xlu0 %v1818
    %v1820 = vpop.xlane.xlu0 %1819
    %v1821 = vsel %vm211, %v1815, 0.0
    %1822 = vadd.xlane.f32.xlu0 %v1821
    %v1823 = vpop.xlane.xlu0 %1822
    %v1824 = vmul.f32 %v1820, %v218
    %v1825 = vmul.f32 %v1823, %v218
    %v1826 = vsub.f32 %v1814, %v1824
    %v1827 = vsub.f32 %v1815, %v1825
    %v1828 = vmul.f32 %v1826, %v1826
    %v1829 = vmul.f32 %v1827, %v1827
    %v1830 = vsel %vm211, %v1828, 0.0
    %1831 = vadd.xlane.f32.xlu0 %v1830
    %v1832 = vpop.xlane.xlu0 %1831
    %v1833 = vsel %vm211, %v1829, 0.0
    %1834 = vadd.xlane.f32.xlu0 %v1833
    %v1835 = vpop.xlane.xlu0 %1834
    %v1836 = vmul.f32 %v1832, %v218
    %v1837 = vmul.f32 %v1835, %v218
    %v1838 = vadd.f32 %v1836, 1e-12
    %v1839 = vadd.f32 %v1837, 1e-12
    %v1840 = vrsqrt.pop %v1838
    %v1841 = vrsqrt.pop %v1839
    %v1842 = vmul.f32 %v1826, %v1840
    %v1843 = vmul.f32 %v1827, %v1841
    %v1845 = vlaneseq
    %v1846 = vshrl.u32 %v1845, 7
    %v1847 = vsub.s32 0, %v1846
    %v1848 = vrot.slane %v1816, %v1847
    %v1850 = vmul.f32 %v1842, %v1848
    %v1851 = vmul.f32 %v1843, %v1848
    %v1853 = vlaneseq
    %v1854 = vshrl.u32 %v1853, 7
    %v1855 = vsub.s32 0, %v1854
    %v1856 = vrot.slane %v1817, %v1855
    %v1858 = vadd.f32 %v1850, %v1856
    %v1859 = vadd.f32 %v1851, %v1856
    %v1860 = vld [vmem:[%s15] sm:$0xff]
    %v1861 = vld [vmem:[%s15 + $0x8] sm:$0xff]
    %v1862 = vld [vmem:[%s15 + $0x10] sm:$0xff]
    %v1863 = vld [vmem:[%s15 + $0x18] sm:$0xff]
    %v1864 = vld [vmem:[%s16] sm:$0x1]
    %v1866 = vlaneseq
    %v1867 = vshrl.u32 %v1866, 7
    %v1868 = vsub.s32 0, %v1867
    %v1869 = vrot.slane %v1864, %v1868
    %v1872 = vsel %vm211, %v1858, 0
    %v1875 = vsel %vm211, %v1859, 0
    %1877 = vmatprep.subr.mxu0 0.0
    %1878 = vmatpush1.msra.mxu0 0.0
    %1879 = vmatprep.subr.mxu0 0.0
    %1880 = vmatpush1.msra.mxu0 0.0
    %1881 = vmatprep.subr.mxu0 0.0
    %1882 = vmatpush1.msra.mxu0 0.0
    %1883 = vmatprep.subr.mxu0 0.0
    %1884 = vmatpush1.msra.mxu0 0.0
    %1885 = vmatprep.subr.mxu0 0.0
    %1886 = vmatpush1.msra.mxu0 0.0
    %1887 = vmatprep.subr.mxu0 0.0
    %1888 = vmatpush1.msra.mxu0 0.0
    %1889 = vmatprep.subr.mxu0 0.0
    %1890 = vmatpush1.msra.mxu0 0.0
    %1891 = vmatprep.subr.mxu0 0.0
    %1892 = vmatpush1.msra.mxu0 0.0
    %1893 = vmatprep.subr.mxu0 0.0
    %1894 = vmatpush1.msra.mxu0 0.0
    %1895 = vmatprep.subr.mxu0 0.0
    %1896 = vmatpush1.msra.mxu0 0.0
    %1897 = vmatprep.subr.mxu0 0.0
    %1898 = vmatpush1.msra.mxu0 0.0
    %1899 = vmatprep.subr.mxu0 0.0
    %1900 = vmatpush1.msra.mxu0 0.0
    %1901 = vmatprep.subr.mxu0 0.0
    %1902 = vmatpush1.msra.mxu0 %v1863
    %1903 = vmatprep.subr.mxu0 0.0
    %1904 = vmatpush1.msra.mxu0 %v1862
    %1905 = vmatprep.subr.mxu0 0.0
    %1906 = vmatpush1.msra.mxu0 %v1861
    %1907 = vmatprep.subr.mxu0 0.0
    %1908 = vmatpush1.msra.mxu0 %v1860
    %1909 = vmatprep.subr.mxu0 0.0
    %1910 = vmatpush2.msra.mxu0 0.0
    %1911 = vmatprep.subr.mxu0 0.0
    %1912 = vmatpush2.msra.mxu0 0.0
    %1913 = vmatprep.subr.mxu0 0.0
    %1914 = vmatpush2.msra.mxu0 0.0
    %1915 = vmatprep.subr.mxu0 0.0
    %1916 = vmatpush2.msra.mxu0 0.0
    %1917 = vmatprep.subr.mxu0 0.0
    %1918 = vmatpush2.msra.mxu0 0.0
    %1919 = vmatprep.subr.mxu0 0.0
    %1920 = vmatpush2.msra.mxu0 0.0
    %1921 = vmatprep.subr.mxu0 0.0
    %1922 = vmatpush2.msra.mxu0 0.0
    %1923 = vmatprep.subr.mxu0 0.0
    %1924 = vmatpush2.msra.mxu0 0.0
    %1925 = vmatprep.subr.mxu0 0.0
    %1926 = vmatpush2.msra.mxu0 0.0
    %1927 = vmatprep.subr.mxu0 0.0
    %1928 = vmatpush2.msra.mxu0 0.0
    %1929 = vmatprep.subr.mxu0 0.0
    %1930 = vmatpush2.msra.mxu0 0.0
    %1931 = vmatprep.subr.mxu0 0.0
    %1932 = vmatpush2.msra.mxu0 0.0
    %1933 = vmatprep.subr.mxu0 0.0
    %1934 = vmatpush2.msra.mxu0 0.0
    %1935 = vmatprep.subr.mxu0 0.0
    %1936 = vmatpush2.msra.mxu0 0.0
    %1937 = vmatprep.subr.mxu0 0.0
    %1938 = vmatpush2.msra.mxu0 0.0
    %1939 = vmatprep.subr.mxu0 0.0
    %1940 = vmatpush2.msra.mxu0 0.0
    %1941 = vmatprep.mubr.f32.mxu0 0.0
    %1942 = vmatmul.mubr.f32.gmra.mxu0 %v1872
    %v1943 = vpop.f32.mrf.mxu0
    %v1944 = vadd.f32 %v1869, %v1943
    %v1945 = vpop.f32.mrf.mxu0
    %1946 = vmatprep.mubr.f32.mxu0 0.0
    %1947 = vmatmul.mubr.f32.gmra.mxu0 %v1875
    %v1948 = vpop.f32.mrf.mxu0
    %v1949 = vadd.f32 %v1869, %v1948
    %v1950 = vpop.f32.mrf.mxu0
    %1951 = vdwg.mxu0
    %v1952 = vmul.f32 %v1944, 0.5
    %v1953 = vmul.f32 %v1949, 0.5
    %v1954 = vmul.f32 %v1944, 0.044715
    %v1955 = vmul.f32 %v1949, 0.044715
    %v1956 = vmul.f32 %v1954, %v1944
    %v1957 = vmul.f32 %v1955, %v1949
    %v1958 = vmul.f32 %v1956, %v1944
    %v1959 = vmul.f32 %v1957, %v1949
    %v1960 = vadd.f32 %v1944, %v1958
    %v1961 = vadd.f32 %v1949, %v1959
    %v1962 = vmul.f32 %v1960, 0.7978846
    %v1963 = vmul.f32 %v1961, 0.7978846
    %v1964 = vtanh.pop %v1962
    %v1965 = vtanh.pop %v1963
    %v1966 = vadd.f32 %v1964, 1.0
    %v1967 = vadd.f32 %v1965, 1.0
    %v1968 = vmul.f32 %v1952, %v1966
    %v1969 = vmul.f32 %v1953, %v1967
    %v1970 = vld [vmem:[%s17] sm:$0xff]
    %v1971 = vld [vmem:[%s17 + $0x8] sm:$0xff]
    %v1972 = vld [vmem:[%s17 + $0x10] sm:$0xff]
    %v1973 = vld [vmem:[%s17 + $0x18] sm:$0xff]
    %v1974 = vld [vmem:[%s17 + $0x20] sm:$0xff]
    %v1975 = vld [vmem:[%s17 + $0x28] sm:$0xff]
    %v1976 = vld [vmem:[%s17 + $0x30] sm:$0xff]
    %v1977 = vld [vmem:[%s17 + $0x38] sm:$0xff]
    %v1978 = vld [vmem:[%s18] sm:$0x1]
    %v1980 = vlaneseq
    %v1981 = vshrl.u32 %v1980, 7
    %v1982 = vsub.s32 0, %v1981
    %v1983 = vrot.slane %v1978, %v1982
    %vm1985 = vcmask 523264
    %v1987 = vsel %vm1985, %v1968, 0
    %v1990 = vsel %vm1985, %v1969, 0
    %1992 = vmatprep.subr.mxu0 0.0
    %1993 = vmatpush1.msra.mxu0 0.0
    %1994 = vmatprep.subr.mxu0 0.0
    %1995 = vmatpush1.msra.mxu0 0.0
    %1996 = vmatprep.subr.mxu0 0.0
    %1997 = vmatpush1.msra.mxu0 0.0
    %1998 = vmatprep.subr.mxu0 0.0
    %1999 = vmatpush1.msra.mxu0 0.0
    %2000 = vmatprep.subr.mxu0 0.0
    %2001 = vmatpush1.msra.mxu0 0.0
    %2002 = vmatprep.subr.mxu0 0.0
    %2003 = vmatpush1.msra.mxu0 0.0
    %2004 = vmatprep.subr.mxu0 0.0
    %2005 = vmatpush1.msra.mxu0 0.0
    %2006 = vmatprep.subr.mxu0 0.0
    %2007 = vmatpush1.msra.mxu0 0.0
    %2008 = vmatprep.subr.mxu0 0.0
    %2009 = vmatpush1.msra.mxu0 %v1977
    %2010 = vmatprep.subr.mxu0 0.0
    %2011 = vmatpush1.msra.mxu0 %v1976
    %2012 = vmatprep.subr.mxu0 0.0
    %2013 = vmatpush1.msra.mxu0 %v1975
    %2014 = vmatprep.subr.mxu0 0.0
    %2015 = vmatpush1.msra.mxu0 %v1974
    %2016 = vmatprep.subr.mxu0 0.0
    %2017 = vmatpush1.msra.mxu0 %v1973
    %2018 = vmatprep.subr.mxu0 0.0
    %2019 = vmatpush1.msra.mxu0 %v1972
    %2020 = vmatprep.subr.mxu0 0.0
    %2021 = vmatpush1.msra.mxu0 %v1971
    %2022 = vmatprep.subr.mxu0 0.0
    %2023 = vmatpush1.msra.mxu0 %v1970
    %2024 = vmatprep.subr.mxu0 0.0
    %2025 = vmatpush2.msra.mxu0 0.0
    %2026 = vmatprep.subr.mxu0 0.0
    %2027 = vmatpush2.msra.mxu0 0.0
    %2028 = vmatprep.subr.mxu0 0.0
    %2029 = vmatpush2.msra.mxu0 0.0
    %2030 = vmatprep.subr.mxu0 0.0
    %2031 = vmatpush2.msra.mxu0 0.0
    %2032 = vmatprep.subr.mxu0 0.0
    %2033 = vmatpush2.msra.mxu0 0.0
    %2034 = vmatprep.subr.mxu0 0.0
    %2035 = vmatpush2.msra.mxu0 0.0
    %2036 = vmatprep.subr.mxu0 0.0
    %2037 = vmatpush2.msra.mxu0 0.0
    %2038 = vmatprep.subr.mxu0 0.0
    %2039 = vmatpush2.msra.mxu0 0.0
    %2040 = vmatprep.subr.mxu0 0.0
    %2041 = vmatpush2.msra.mxu0 0.0
    %2042 = vmatprep.subr.mxu0 0.0
    %2043 = vmatpush2.msra.mxu0 0.0
    %2044 = vmatprep.subr.mxu0 0.0
    %2045 = vmatpush2.msra.mxu0 0.0
    %2046 = vmatprep.subr.mxu0 0.0
    %2047 = vmatpush2.msra.mxu0 0.0
    %2048 = vmatprep.subr.mxu0 0.0
    %2049 = vmatpush2.msra.mxu0 0.0
    %2050 = vmatprep.subr.mxu0 0.0
    %2051 = vmatpush2.msra.mxu0 0.0
    %2052 = vmatprep.subr.mxu0 0.0
    %2053 = vmatpush2.msra.mxu0 0.0
    %2054 = vmatprep.subr.mxu0 0.0
    %2055 = vmatpush2.msra.mxu0 0.0
    %2056 = vmatprep.mubr.f32.mxu0 0.0
    %2057 = vmatmul.mubr.f32.gmra.mxu0 %v1987
    %v2058 = vpop.f32.mrf.mxu0
    %v2059 = vadd.f32 %v1983, %v2058
    %v2060 = vpop.f32.mrf.mxu0
    %2061 = vmatprep.mubr.f32.mxu0 0.0
    %2062 = vmatmul.mubr.f32.gmra.mxu0 %v1990
    %v2063 = vpop.f32.mrf.mxu0
    %v2064 = vadd.f32 %v1983, %v2063
    %v2065 = vpop.f32.mrf.mxu0
    %2066 = vdwg.mxu0
    %v2067 = vadd.f32 %v2059, %v1858
    %v2068 = vadd.f32 %v2064, %v1859
    %v2069 = vld [vmem:[%s19] sm:$0x1]
    %v2070 = vld [vmem:[%s20] sm:$0x1]
    %v2071 = vsel %vm211, %v2067, 0.0
    %2072 = vadd.xlane.f32.xlu0 %v2071
    %v2073 = vpop.xlane.xlu0 %2072
    %v2074 = vsel %vm211, %v2068, 0.0
    %2075 = vadd.xlane.f32.xlu0 %v2074
    %v2076 = vpop.xlane.xlu0 %2075
    %v2077 = vmul.f32 %v2073, %v218
    %v2078 = vmul.f32 %v2076, %v218
    %v2079 = vsub.f32 %v2067, %v2077
    %v2080 = vsub.f32 %v2068, %v2078
    %v2081 = vmul.f32 %v2079, %v2079
    %v2082 = vmul.f32 %v2080, %v2080
    %v2083 = vsel %vm211, %v2081, 0.0
    %2084 = vadd.xlane.f32.xlu0 %v2083
    %v2085 = vpop.xlane.xlu0 %2084
    %v2086 = vsel %vm211, %v2082, 0.0
    %2087 = vadd.xlane.f32.xlu0 %v2086
    %v2088 = vpop.xlane.xlu0 %2087
    %v2089 = vmul.f32 %v2085, %v218
    %v2090 = vmul.f32 %v2088, %v218
    %v2091 = vadd.f32 %v2089, 1e-12
    %v2092 = vadd.f32 %v2090, 1e-12
    %v2093 = vrsqrt.pop %v2091
    %v2094 = vrsqrt.pop %v2092
    %v2095 = vmul.f32 %v2079, %v2093
    %v2096 = vmul.f32 %v2080, %v2094
    %v2098 = vlaneseq
    %v2099 = vshrl.u32 %v2098, 7
    %v2100 = vsub.s32 0, %v2099
    %v2101 = vrot.slane %v2069, %v2100
    %v2103 = vmul.f32 %v2095, %v2101
    %v2104 = vmul.f32 %v2096, %v2101
    %v2106 = vlaneseq
    %v2107 = vshrl.u32 %v2106, 7
    %v2108 = vsub.s32 0, %v2107
    %v2109 = vrot.slane %v2070, %v2108
    %v2111 = vadd.f32 %v2103, %v2109
    %v2112 = vadd.f32 %v2104, %v2109
    %s2113 = scalar_lea.vmem %s9, 32
    %v2114 = vld [vmem:[%s2113] sm:$0xff]
    %v2115 = vld [vmem:[%s2113 + $0x8] sm:$0xff]
    %v2116 = vld [vmem:[%s2113 + $0x10] sm:$0xff]
    %v2117 = vld [vmem:[%s2113 + $0x18] sm:$0xff]
    %s2118 = scalar_lea.vmem %s10, 1
    %v2119 = vld [vmem:[%s2118] sm:$0x1]
    %v2121 = vlaneseq
    %v2122 = vshrl.u32 %v2121, 7
    %v2123 = vsub.s32 0, %v2122
    %v2124 = vrot.slane %v2119, %v2123
    %v2127 = vsel %vm211, %v2111, 0
    %v2130 = vsel %vm211, %v2112, 0
    %2132 = vmatprep.subr.mxu0 0.0
    %2133 = vmatpush1.msra.mxu0 0.0
    %2134 = vmatprep.subr.mxu0 0.0
    %2135 = vmatpush1.msra.mxu0 0.0
    %2136 = vmatprep.subr.mxu0 0.0
    %2137 = vmatpush1.msra.mxu0 0.0
    %2138 = vmatprep.subr.mxu0 0.0
    %2139 = vmatpush1.msra.mxu0 0.0
    %2140 = vmatprep.subr.mxu0 0.0
    %2141 = vmatpush1.msra.mxu0 0.0
    %2142 = vmatprep.subr.mxu0 0.0
    %2143 = vmatpush1.msra.mxu0 0.0
    %2144 = vmatprep.subr.mxu0 0.0
    %2145 = vmatpush1.msra.mxu0 0.0
    %2146 = vmatprep.subr.mxu0 0.0
    %2147 = vmatpush1.msra.mxu0 0.0
    %2148 = vmatprep.subr.mxu0 0.0
    %2149 = vmatpush1.msra.mxu0 0.0
    %2150 = vmatprep.subr.mxu0 0.0
    %2151 = vmatpush1.msra.mxu0 0.0
    %2152 = vmatprep.subr.mxu0 0.0
    %2153 = vmatpush1.msra.mxu0 0.0
    %2154 = vmatprep.subr.mxu0 0.0
    %2155 = vmatpush1.msra.mxu0 0.0
    %2156 = vmatprep.subr.mxu0 0.0
    %2157 = vmatpush1.msra.mxu0 %v2117
    %2158 = vmatprep.subr.mxu0 0.0
    %2159 = vmatpush1.msra.mxu0 %v2116
    %2160 = vmatprep.subr.mxu0 0.0
    %2161 = vmatpush1.msra.mxu0 %v2115
    %2162 = vmatprep.subr.mxu0 0.0
    %2163 = vmatpush1.msra.mxu0 %v2114
    %2164 = vmatprep.subr.mxu0 0.0
    %2165 = vmatpush2.msra.mxu0 0.0
    %2166 = vmatprep.subr.mxu0 0.0
    %2167 = vmatpush2.msra.mxu0 0.0
    %2168 = vmatprep.subr.mxu0 0.0
    %2169 = vmatpush2.msra.mxu0 0.0
    %2170 = vmatprep.subr.mxu0 0.0
    %2171 = vmatpush2.msra.mxu0 0.0
    %2172 = vmatprep.subr.mxu0 0.0
    %2173 = vmatpush2.msra.mxu0 0.0
    %2174 = vmatprep.subr.mxu0 0.0
    %2175 = vmatpush2.msra.mxu0 0.0
    %2176 = vmatprep.subr.mxu0 0.0
    %2177 = vmatpush2.msra.mxu0 0.0
    %2178 = vmatprep.subr.mxu0 0.0
    %2179 = vmatpush2.msra.mxu0 0.0
    %2180 = vmatprep.subr.mxu0 0.0
    %2181 = vmatpush2.msra.mxu0 0.0
    %2182 = vmatprep.subr.mxu0 0.0
    %2183 = vmatpush2.msra.mxu0 0.0
    %2184 = vmatprep.subr.mxu0 0.0
    %2185 = vmatpush2.msra.mxu0 0.0
    %2186 = vmatprep.subr.mxu0 0.0
    %2187 = vmatpush2.msra.mxu0 0.0
    %2188 = vmatprep.subr.mxu0 0.0
    %2189 = vmatpush2.msra.mxu0 0.0
    %2190 = vmatprep.subr.mxu0 0.0
    %2191 = vmatpush2.msra.mxu0 0.0
    %2192 = vmatprep.subr.mxu0 0.0
    %2193 = vmatpush2.msra.mxu0 0.0
    %2194 = vmatprep.subr.mxu0 0.0
    %2195 = vmatpush2.msra.mxu0 0.0
    %2196 = vmatprep.mubr.f32.mxu0 0.0
    %2197 = vmatmul.mubr.f32.gmra.mxu0 %v2127
    %v2198 = vpop.f32.mrf.mxu0
    %v2199 = vadd.f32 %v2124, %v2198
    %v2200 = vpop.f32.mrf.mxu0
    %2201 = vmatprep.mubr.f32.mxu0 0.0
    %2202 = vmatmul.mubr.f32.gmra.mxu0 %v2130
    %v2203 = vpop.f32.mrf.mxu0
    %v2204 = vadd.f32 %v2124, %v2203
    %v2205 = vpop.f32.mrf.mxu0
    %2206 = vdwg.mxu0
    %2209 = vrot.lane.b32.xlu0 %v2199, 120
    %v2210 = vpop.permute.xlu0 %2209
    %2211 = vrot.lane.b32.xlu0 %v2204, 120
    %v2212 = vpop.permute.xlu0 %2211
    %2213 = vrot.lane.b32.xlu0 %v2199, 112
    %v2214 = vpop.permute.xlu0 %2213
    %2215 = vrot.lane.b32.xlu0 %v2204, 112
    %v2216 = vpop.permute.xlu0 %2215
    %2217 = vrot.lane.b32.xlu0 %v2199, 104
    %v2218 = vpop.permute.xlu0 %2217
    %2219 = vrot.lane.b32.xlu0 %v2204, 104
    %v2220 = vpop.permute.xlu0 %2219
    %2221 = vrot.lane.b32.xlu0 %v2199, 96
    %v2222 = vpop.permute.xlu0 %2221
    %v2223 = vsel %vm371, %v2199, 0
    %v2225 = vsel %vm371, %v2222, 0
    %2227 = vmatprep.subr.mxu0 0.0
    %2228 = vmatpush1.xpose.msra.mxu0 0.0
    %2229 = vmatprep.subr.mxu0 0.0
    %2230 = vmatpush1.xpose.msra.mxu0 0.0
    %2231 = vmatprep.subr.mxu0 0.0
    %2232 = vmatpush1.xpose.msra.mxu0 0.0
    %2233 = vmatprep.subr.mxu0 0.0
    %2234 = vmatpush1.xpose.msra.mxu0 0.0
    %2235 = vmatprep.subr.mxu0 0.0
    %2236 = vmatpush1.xpose.msra.mxu0 0.0
    %2237 = vmatprep.subr.mxu0 0.0
    %2238 = vmatpush1.xpose.msra.mxu0 0.0
    %2239 = vmatprep.subr.mxu0 0.0
    %2240 = vmatpush1.xpose.msra.mxu0 0.0
    %2241 = vmatprep.subr.mxu0 0.0
    %2242 = vmatpush1.xpose.msra.mxu0 0.0
    %2243 = vmatprep.subr.mxu0 0.0
    %2244 = vmatpush1.xpose.msra.mxu0 0.0
    %2245 = vmatprep.subr.mxu0 0.0
    %2246 = vmatpush1.xpose.msra.mxu0 0.0
    %2247 = vmatprep.subr.mxu0 0.0
    %2248 = vmatpush1.xpose.msra.mxu0 0.0
    %2249 = vmatprep.subr.mxu0 0.0
    %2250 = vmatpush1.xpose.msra.mxu0 0.0
    %2251 = vmatprep.subr.mxu0 0.0
    %2252 = vmatpush1.xpose.msra.mxu0 0.0
    %2253 = vmatprep.subr.mxu0 0.0
    %2254 = vmatpush1.xpose.msra.mxu0 0.0
    %2255 = vmatprep.subr.mxu0 0.0
    %2256 = vmatpush1.xpose.msra.mxu0 0.0
    %2257 = vmatprep.subr.mxu0 0.0
    %2258 = vmatpush1.xpose.msra.mxu0 %v2225
    %2259 = vmatprep.subr.mxu0 0.0
    %2260 = vmatpush2.xpose.msra.mxu0 0.0
    %2261 = vmatprep.subr.mxu0 0.0
    %2262 = vmatpush2.xpose.msra.mxu0 0.0
    %2263 = vmatprep.subr.mxu0 0.0
    %2264 = vmatpush2.xpose.msra.mxu0 0.0
    %2265 = vmatprep.subr.mxu0 0.0
    %2266 = vmatpush2.xpose.msra.mxu0 0.0
    %2267 = vmatprep.subr.mxu0 0.0
    %2268 = vmatpush2.xpose.msra.mxu0 0.0
    %2269 = vmatprep.subr.mxu0 0.0
    %2270 = vmatpush2.xpose.msra.mxu0 0.0
    %2271 = vmatprep.subr.mxu0 0.0
    %2272 = vmatpush2.xpose.msra.mxu0 0.0
    %2273 = vmatprep.subr.mxu0 0.0
    %2274 = vmatpush2.xpose.msra.mxu0 0.0
    %2275 = vmatprep.subr.mxu0 0.0
    %2276 = vmatpush2.xpose.msra.mxu0 0.0
    %2277 = vmatprep.subr.mxu0 0.0
    %2278 = vmatpush2.xpose.msra.mxu0 0.0
    %2279 = vmatprep.subr.mxu0 0.0
    %2280 = vmatpush2.xpose.msra.mxu0 0.0
    %2281 = vmatprep.subr.mxu0 0.0
    %2282 = vmatpush2.xpose.msra.mxu0 0.0
    %2283 = vmatprep.subr.mxu0 0.0
    %2284 = vmatpush2.xpose.msra.mxu0 0.0
    %2285 = vmatprep.subr.mxu0 0.0
    %2286 = vmatpush2.xpose.msra.mxu0 0.0
    %2287 = vmatprep.subr.mxu0 0.0
    %2288 = vmatpush2.xpose.msra.mxu0 0.0
    %2289 = vmatprep.subr.mxu0 0.0
    %2290 = vmatpush2.xpose.msra.mxu0 0.0
    %2291 = vmatprep.mubr.f32.mxu0 0.0
    %2292 = vmatmul.mubr.f32.gmra.mxu0 %v2223
    %v2293 = vpop.f32.mrf.mxu0
    %v2294 = vadd.f32 0.0, %v2293
    %v2295 = vpop.f32.mrf.mxu0
    %2296 = vdwg.mxu0
    %2297 = vrot.lane.b32.xlu0 %v2204, 96
    %v2298 = vpop.permute.xlu0 %2297
    %v2299 = vsel %vm371, %v2204, 0
    %v2301 = vsel %vm371, %v2298, 0
    %2303 = vmatprep.subr.mxu0 0.0
    %2304 = vmatpush1.xpose.msra.mxu0 0.0
    %2305 = vmatprep.subr.mxu0 0.0
    %2306 = vmatpush1.xpose.msra.mxu0 0.0
    %2307 = vmatprep.subr.mxu0 0.0
    %2308 = vmatpush1.xpose.msra.mxu0 0.0
    %2309 = vmatprep.subr.mxu0 0.0
    %2310 = vmatpush1.xpose.msra.mxu0 0.0
    %2311 = vmatprep.subr.mxu0 0.0
    %2312 = vmatpush1.xpose.msra.mxu0 0.0
    %2313 = vmatprep.subr.mxu0 0.0
    %2314 = vmatpush1.xpose.msra.mxu0 0.0
    %2315 = vmatprep.subr.mxu0 0.0
    %2316 = vmatpush1.xpose.msra.mxu0 0.0
    %2317 = vmatprep.subr.mxu0 0.0
    %2318 = vmatpush1.xpose.msra.mxu0 0.0
    %2319 = vmatprep.subr.mxu0 0.0
    %2320 = vmatpush1.xpose.msra.mxu0 0.0
    %2321 = vmatprep.subr.mxu0 0.0
    %2322 = vmatpush1.xpose.msra.mxu0 0.0
    %2323 = vmatprep.subr.mxu0 0.0
    %2324 = vmatpush1.xpose.msra.mxu0 0.0
    %2325 = vmatprep.subr.mxu0 0.0
    %2326 = vmatpush1.xpose.msra.mxu0 0.0
    %2327 = vmatprep.subr.mxu0 0.0
    %2328 = vmatpush1.xpose.msra.mxu0 0.0
    %2329 = vmatprep.subr.mxu0 0.0
    %2330 = vmatpush1.xpose.msra.mxu0 0.0
    %2331 = vmatprep.subr.mxu0 0.0
    %2332 = vmatpush1.xpose.msra.mxu0 0.0
    %2333 = vmatprep.subr.mxu0 0.0
    %2334 = vmatpush1.xpose.msra.mxu0 %v2301
    %2335 = vmatprep.subr.mxu0 0.0
    %2336 = vmatpush2.xpose.msra.mxu0 0.0
    %2337 = vmatprep.subr.mxu0 0.0
    %2338 = vmatpush2.xpose.msra.mxu0 0.0
    %2339 = vmatprep.subr.mxu0 0.0
    %2340 = vmatpush2.xpose.msra.mxu0 0.0
    %2341 = vmatprep.subr.mxu0 0.0
    %2342 = vmatpush2.xpose.msra.mxu0 0.0
    %2343 = vmatprep.subr.mxu0 0.0
    %2344 = vmatpush2.xpose.msra.mxu0 0.0
    %2345 = vmatprep.subr.mxu0 0.0
    %2346 = vmatpush2.xpose.msra.mxu0 0.0
    %2347 = vmatprep.subr.mxu0 0.0
    %2348 = vmatpush2.xpose.msra.mxu0 0.0
    %2349 = vmatprep.subr.mxu0 0.0
    %2350 = vmatpush2.xpose.msra.mxu0 0.0
    %2351 = vmatprep.subr.mxu0 0.0
    %2352 = vmatpush2.xpose.msra.mxu0 0.0
    %2353 = vmatprep.subr.mxu0 0.0
    %2354 = vmatpush2.xpose.msra.mxu0 0.0
    %2355 = vmatprep.subr.mxu0 0.0
    %2356 = vmatpush2.xpose.msra.mxu0 0.0
    %2357 = vmatprep.subr.mxu0 0.0
    %2358 = vmatpush2.xpose.msra.mxu0 0.0
    %2359 = vmatprep.subr.mxu0 0.0
    %2360 = vmatpush2.xpose.msra.mxu0 0.0
    %2361 = vmatprep.subr.mxu0 0.0
    %2362 = vmatpush2.xpose.msra.mxu0 0.0
    %2363 = vmatprep.subr.mxu0 0.0
    %2364 = vmatpush2.xpose.msra.mxu0 0.0
    %2365 = vmatprep.subr.mxu0 0.0
    %2366 = vmatpush2.xpose.msra.mxu0 0.0
    %2367 = vmatprep.mubr.f32.mxu0 0.0
    %2368 = vmatmul.mubr.f32.gmra.mxu0 %v2299
    %v2369 = vpop.f32.mrf.mxu0
    %v2370 = vadd.f32 0.0, %v2369
    %v2371 = vpop.f32.mrf.mxu0
    %2372 = vdwg.mxu0
    %2373 = vrot.lane.b32.xlu0 %v2210, 96
    %v2374 = vpop.permute.xlu0 %2373
    %v2375 = vsel %vm371, %v2210, 0
    %v2377 = vsel %vm371, %v2374, 0
    %2379 = vmatprep.subr.mxu0 0.0
    %2380 = vmatpush1.xpose.msra.mxu0 0.0
    %2381 = vmatprep.subr.mxu0 0.0
    %2382 = vmatpush1.xpose.msra.mxu0 0.0
    %2383 = vmatprep.subr.mxu0 0.0
    %2384 = vmatpush1.xpose.msra.mxu0 0.0
    %2385 = vmatprep.subr.mxu0 0.0
    %2386 = vmatpush1.xpose.msra.mxu0 0.0
    %2387 = vmatprep.subr.mxu0 0.0
    %2388 = vmatpush1.xpose.msra.mxu0 0.0
    %2389 = vmatprep.subr.mxu0 0.0
    %2390 = vmatpush1.xpose.msra.mxu0 0.0
    %2391 = vmatprep.subr.mxu0 0.0
    %2392 = vmatpush1.xpose.msra.mxu0 0.0
    %2393 = vmatprep.subr.mxu0 0.0
    %2394 = vmatpush1.xpose.msra.mxu0 0.0
    %2395 = vmatprep.subr.mxu0 0.0
    %2396 = vmatpush1.xpose.msra.mxu0 0.0
    %2397 = vmatprep.subr.mxu0 0.0
    %2398 = vmatpush1.xpose.msra.mxu0 0.0
    %2399 = vmatprep.subr.mxu0 0.0
    %2400 = vmatpush1.xpose.msra.mxu0 0.0
    %2401 = vmatprep.subr.mxu0 0.0
    %2402 = vmatpush1.xpose.msra.mxu0 0.0
    %2403 = vmatprep.subr.mxu0 0.0
    %2404 = vmatpush1.xpose.msra.mxu0 0.0
    %2405 = vmatprep.subr.mxu0 0.0
    %2406 = vmatpush1.xpose.msra.mxu0 0.0
    %2407 = vmatprep.subr.mxu0 0.0
    %2408 = vmatpush1.xpose.msra.mxu0 0.0
    %2409 = vmatprep.subr.mxu0 0.0
    %2410 = vmatpush1.xpose.msra.mxu0 %v2377
    %2411 = vmatprep.subr.mxu0 0.0
    %2412 = vmatpush2.xpose.msra.mxu0 0.0
    %2413 = vmatprep.subr.mxu0 0.0
    %2414 = vmatpush2.xpose.msra.mxu0 0.0
    %2415 = vmatprep.subr.mxu0 0.0
    %2416 = vmatpush2.xpose.msra.mxu0 0.0
    %2417 = vmatprep.subr.mxu0 0.0
    %2418 = vmatpush2.xpose.msra.mxu0 0.0
    %2419 = vmatprep.subr.mxu0 0.0
    %2420 = vmatpush2.xpose.msra.mxu0 0.0
    %2421 = vmatprep.subr.mxu0 0.0
    %2422 = vmatpush2.xpose.msra.mxu0 0.0
    %2423 = vmatprep.subr.mxu0 0.0
    %2424 = vmatpush2.xpose.msra.mxu0 0.0
    %2425 = vmatprep.subr.mxu0 0.0
    %2426 = vmatpush2.xpose.msra.mxu0 0.0
    %2427 = vmatprep.subr.mxu0 0.0
    %2428 = vmatpush2.xpose.msra.mxu0 0.0
    %2429 = vmatprep.subr.mxu0 0.0
    %2430 = vmatpush2.xpose.msra.mxu0 0.0
    %2431 = vmatprep.subr.mxu0 0.0
    %2432 = vmatpush2.xpose.msra.mxu0 0.0
    %2433 = vmatprep.subr.mxu0 0.0
    %2434 = vmatpush2.xpose.msra.mxu0 0.0
    %2435 = vmatprep.subr.mxu0 0.0
    %2436 = vmatpush2.xpose.msra.mxu0 0.0
    %2437 = vmatprep.subr.mxu0 0.0
    %2438 = vmatpush2.xpose.msra.mxu0 0.0
    %2439 = vmatprep.subr.mxu0 0.0
    %2440 = vmatpush2.xpose.msra.mxu0 0.0
    %2441 = vmatprep.subr.mxu0 0.0
    %2442 = vmatpush2.xpose.msra.mxu0 0.0
    %2443 = vmatprep.mubr.f32.mxu0 0.0
    %2444 = vmatmul.mubr.f32.gmra.mxu0 %v2375
    %v2445 = vpop.f32.mrf.mxu0
    %v2446 = vadd.f32 0.0, %v2445
    %v2447 = vpop.f32.mrf.mxu0
    %2448 = vdwg.mxu0
    %2449 = vrot.lane.b32.xlu0 %v2212, 96
    %v2450 = vpop.permute.xlu0 %2449
    %v2451 = vsel %vm371, %v2212, 0
    %v2453 = vsel %vm371, %v2450, 0
    %2455 = vmatprep.subr.mxu0 0.0
    %2456 = vmatpush1.xpose.msra.mxu0 0.0
    %2457 = vmatprep.subr.mxu0 0.0
    %2458 = vmatpush1.xpose.msra.mxu0 0.0
    %2459 = vmatprep.subr.mxu0 0.0
    %2460 = vmatpush1.xpose.msra.mxu0 0.0
    %2461 = vmatprep.subr.mxu0 0.0
    %2462 = vmatpush1.xpose.msra.mxu0 0.0
    %2463 = vmatprep.subr.mxu0 0.0
    %2464 = vmatpush1.xpose.msra.mxu0 0.0
    %2465 = vmatprep.subr.mxu0 0.0
    %2466 = vmatpush1.xpose.msra.mxu0 0.0
    %2467 = vmatprep.subr.mxu0 0.0
    %2468 = vmatpush1.xpose.msra.mxu0 0.0
    %2469 = vmatprep.subr.mxu0 0.0
    %2470 = vmatpush1.xpose.msra.mxu0 0.0
    %2471 = vmatprep.subr.mxu0 0.0
    %2472 = vmatpush1.xpose.msra.mxu0 0.0
    %2473 = vmatprep.subr.mxu0 0.0
    %2474 = vmatpush1.xpose.msra.mxu0 0.0
    %2475 = vmatprep.subr.mxu0 0.0
    %2476 = vmatpush1.xpose.msra.mxu0 0.0
    %2477 = vmatprep.subr.mxu0 0.0
    %2478 = vmatpush1.xpose.msra.mxu0 0.0
    %2479 = vmatprep.subr.mxu0 0.0
    %2480 = vmatpush1.xpose.msra.mxu0 0.0
    %2481 = vmatprep.subr.mxu0 0.0
    %2482 = vmatpush1.xpose.msra.mxu0 0.0
    %2483 = vmatprep.subr.mxu0 0.0
    %2484 = vmatpush1.xpose.msra.mxu0 0.0
    %2485 = vmatprep.subr.mxu0 0.0
    %2486 = vmatpush1.xpose.msra.mxu0 %v2453
    %2487 = vmatprep.subr.mxu0 0.0
    %2488 = vmatpush2.xpose.msra.mxu0 0.0
    %2489 = vmatprep.subr.mxu0 0.0
    %2490 = vmatpush2.xpose.msra.mxu0 0.0
    %2491 = vmatprep.subr.mxu0 0.0
    %2492 = vmatpush2.xpose.msra.mxu0 0.0
    %2493 = vmatprep.subr.mxu0 0.0
    %2494 = vmatpush2.xpose.msra.mxu0 0.0
    %2495 = vmatprep.subr.mxu0 0.0
    %2496 = vmatpush2.xpose.msra.mxu0 0.0
    %2497 = vmatprep.subr.mxu0 0.0
    %2498 = vmatpush2.xpose.msra.mxu0 0.0
    %2499 = vmatprep.subr.mxu0 0.0
    %2500 = vmatpush2.xpose.msra.mxu0 0.0
    %2501 = vmatprep.subr.mxu0 0.0
    %2502 = vmatpush2.xpose.msra.mxu0 0.0
    %2503 = vmatprep.subr.mxu0 0.0
    %2504 = vmatpush2.xpose.msra.mxu0 0.0
    %2505 = vmatprep.subr.mxu0 0.0
    %2506 = vmatpush2.xpose.msra.mxu0 0.0
    %2507 = vmatprep.subr.mxu0 0.0
    %2508 = vmatpush2.xpose.msra.mxu0 0.0
    %2509 = vmatprep.subr.mxu0 0.0
    %2510 = vmatpush2.xpose.msra.mxu0 0.0
    %2511 = vmatprep.subr.mxu0 0.0
    %2512 = vmatpush2.xpose.msra.mxu0 0.0
    %2513 = vmatprep.subr.mxu0 0.0
    %2514 = vmatpush2.xpose.msra.mxu0 0.0
    %2515 = vmatprep.subr.mxu0 0.0
    %2516 = vmatpush2.xpose.msra.mxu0 0.0
    %2517 = vmatprep.subr.mxu0 0.0
    %2518 = vmatpush2.xpose.msra.mxu0 0.0
    %2519 = vmatprep.mubr.f32.mxu0 0.0
    %2520 = vmatmul.mubr.f32.gmra.mxu0 %v2451
    %v2521 = vpop.f32.mrf.mxu0
    %v2522 = vadd.f32 0.0, %v2521
    %v2523 = vpop.f32.mrf.mxu0
    %2524 = vdwg.mxu0
    %2525 = vrot.lane.b32.xlu0 %v2214, 96
    %v2526 = vpop.permute.xlu0 %2525
    %v2527 = vsel %vm371, %v2214, 0
    %v2529 = vsel %vm371, %v2526, 0
    %2531 = vmatprep.subr.mxu0 0.0
    %2532 = vmatpush1.xpose.msra.mxu0 0.0
    %2533 = vmatprep.subr.mxu0 0.0
    %2534 = vmatpush1.xpose.msra.mxu0 0.0
    %2535 = vmatprep.subr.mxu0 0.0
    %2536 = vmatpush1.xpose.msra.mxu0 0.0
    %2537 = vmatprep.subr.mxu0 0.0
    %2538 = vmatpush1.xpose.msra.mxu0 0.0
    %2539 = vmatprep.subr.mxu0 0.0
    %2540 = vmatpush1.xpose.msra.mxu0 0.0
    %2541 = vmatprep.subr.mxu0 0.0
    %2542 = vmatpush1.xpose.msra.mxu0 0.0
    %2543 = vmatprep.subr.mxu0 0.0
    %2544 = vmatpush1.xpose.msra.mxu0 0.0
    %2545 = vmatprep.subr.mxu0 0.0
    %2546 = vmatpush1.xpose.msra.mxu0 0.0
    %2547 = vmatprep.subr.mxu0 0.0
    %2548 = vmatpush1.xpose.msra.mxu0 0.0
    %2549 = vmatprep.subr.mxu0 0.0
    %2550 = vmatpush1.xpose.msra.mxu0 0.0
    %2551 = vmatprep.subr.mxu0 0.0
    %2552 = vmatpush1.xpose.msra.mxu0 0.0
    %2553 = vmatprep.subr.mxu0 0.0
    %2554 = vmatpush1.xpose.msra.mxu0 0.0
    %2555 = vmatprep.subr.mxu0 0.0
    %2556 = vmatpush1.xpose.msra.mxu0 0.0
    %2557 = vmatprep.subr.mxu0 0.0
    %2558 = vmatpush1.xpose.msra.mxu0 0.0
    %2559 = vmatprep.subr.mxu0 0.0
    %2560 = vmatpush1.xpose.msra.mxu0 0.0
    %2561 = vmatprep.subr.mxu0 0.0
    %2562 = vmatpush1.xpose.msra.mxu0 %v2529
    %2563 = vmatprep.subr.mxu0 0.0
    %2564 = vmatpush2.xpose.msra.mxu0 0.0
    %2565 = vmatprep.subr.mxu0 0.0
    %2566 = vmatpush2.xpose.msra.mxu0 0.0
    %2567 = vmatprep.subr.mxu0 0.0
    %2568 = vmatpush2.xpose.msra.mxu0 0.0
    %2569 = vmatprep.subr.mxu0 0.0
    %2570 = vmatpush2.xpose.msra.mxu0 0.0
    %2571 = vmatprep.subr.mxu0 0.0
    %2572 = vmatpush2.xpose.msra.mxu0 0.0
    %2573 = vmatprep.subr.mxu0 0.0
    %2574 = vmatpush2.xpose.msra.mxu0 0.0
    %2575 = vmatprep.subr.mxu0 0.0
    %2576 = vmatpush2.xpose.msra.mxu0 0.0
    %2577 = vmatprep.subr.mxu0 0.0
    %2578 = vmatpush2.xpose.msra.mxu0 0.0
    %2579 = vmatprep.subr.mxu0 0.0
    %2580 = vmatpush2.xpose.msra.mxu0 0.0
    %2581 = vmatprep.subr.mxu0 0.0
    %2582 = vmatpush2.xpose.msra.mxu0 0.0
    %2583 = vmatprep.subr.mxu0 0.0
    %2584 = vmatpush2.xpose.msra.mxu0 0.0
    %2585 = vmatprep.subr.mxu0 0.0
    %2586 = vmatpush2.xpose.msra.mxu0 0.0
    %2587 = vmatprep.subr.mxu0 0.0
    %2588 = vmatpush2.xpose.msra.mxu0 0.0
    %2589 = vmatprep.subr.mxu0 0.0
    %2590 = vmatpush2.xpose.msra.mxu0 0.0
    %2591 = vmatprep.subr.mxu0 0.0
    %2592 = vmatpush2.xpose.msra.mxu0 0.0
    %2593 = vmatprep.subr.mxu0 0.0
    %2594 = vmatpush2.xpose.msra.mxu0 0.0
    %2595 = vmatprep.mubr.f32.mxu0 0.0
    %2596 = vmatmul.mubr.f32.gmra.mxu0 %v2527
    %v2597 = vpop.f32.mrf.mxu0
    %v2598 = vadd.f32 0.0, %v2597
    %v2599 = vpop.f32.mrf.mxu0
    %2600 = vdwg.mxu0
    %2601 = vrot.lane.b32.xlu0 %v2216, 96
    %v2602 = vpop.permute.xlu0 %2601
    %v2603 = vsel %vm371, %v2216, 0
    %v2605 = vsel %vm371, %v2602, 0
    %2607 = vmatprep.subr.mxu0 0.0
    %2608 = vmatpush1.xpose.msra.mxu0 0.0
    %2609 = vmatprep.subr.mxu0 0.0
    %2610 = vmatpush1.xpose.msra.mxu0 0.0
    %2611 = vmatprep.subr.mxu0 0.0
    %2612 = vmatpush1.xpose.msra.mxu0 0.0
    %2613 = vmatprep.subr.mxu0 0.0
    %2614 = vmatpush1.xpose.msra.mxu0 0.0
    %2615 = vmatprep.subr.mxu0 0.0
    %2616 = vmatpush1.xpose.msra.mxu0 0.0
    %2617 = vmatprep.subr.mxu0 0.0
    %2618 = vmatpush1.xpose.msra.mxu0 0.0
    %2619 = vmatprep.subr.mxu0 0.0
    %2620 = vmatpush1.xpose.msra.mxu0 0.0
    %2621 = vmatprep.subr.mxu0 0.0
    %2622 = vmatpush1.xpose.msra.mxu0 0.0
    %2623 = vmatprep.subr.mxu0 0.0
    %2624 = vmatpush1.xpose.msra.mxu0 0.0
    %2625 = vmatprep.subr.mxu0 0.0
    %2626 = vmatpush1.xpose.msra.mxu0 0.0
    %2627 = vmatprep.subr.mxu0 0.0
    %2628 = vmatpush1.xpose.msra.mxu0 0.0
    %2629 = vmatprep.subr.mxu0 0.0
    %2630 = vmatpush1.xpose.msra.mxu0 0.0
    %2631 = vmatprep.subr.mxu0 0.0
    %2632 = vmatpush1.xpose.msra.mxu0 0.0
    %2633 = vmatprep.subr.mxu0 0.0
    %2634 = vmatpush1.xpose.msra.mxu0 0.0
    %2635 = vmatprep.subr.mxu0 0.0
    %2636 = vmatpush1.xpose.msra.mxu0 0.0
    %2637 = vmatprep.subr.mxu0 0.0
    %2638 = vmatpush1.xpose.msra.mxu0 %v2605
    %2639 = vmatprep.subr.mxu0 0.0
    %2640 = vmatpush2.xpose.msra.mxu0 0.0
    %2641 = vmatprep.subr.mxu0 0.0
    %2642 = vmatpush2.xpose.msra.mxu0 0.0
    %2643 = vmatprep.subr.mxu0 0.0
    %2644 = vmatpush2.xpose.msra.mxu0 0.0
    %2645 = vmatprep.subr.mxu0 0.0
    %2646 = vmatpush2.xpose.msra.mxu0 0.0
    %2647 = vmatprep.subr.mxu0 0.0
    %2648 = vmatpush2.xpose.msra.mxu0 0.0
    %2649 = vmatprep.subr.mxu0 0.0
    %2650 = vmatpush2.xpose.msra.mxu0 0.0
    %2651 = vmatprep.subr.mxu0 0.0
    %2652 = vmatpush2.xpose.msra.mxu0 0.0
    %2653 = vmatprep.subr.mxu0 0.0
    %2654 = vmatpush2.xpose.msra.mxu0 0.0
    %2655 = vmatprep.subr.mxu0 0.0
    %2656 = vmatpush2.xpose.msra.mxu0 0.0
    %2657 = vmatprep.subr.mxu0 0.0
    %2658 = vmatpush2.xpose.msra.mxu0 0.0
    %2659 = vmatprep.subr.mxu0 0.0
    %2660 = vmatpush2.xpose.msra.mxu0 0.0
    %2661 = vmatprep.subr.mxu0 0.0
    %2662 = vmatpush2.xpose.msra.mxu0 0.0
    %2663 = vmatprep.subr.mxu0 0.0
    %2664 = vmatpush2.xpose.msra.mxu0 0.0
    %2665 = vmatprep.subr.mxu0 0.0
    %2666 = vmatpush2.xpose.msra.mxu0 0.0
    %2667 = vmatprep.subr.mxu0 0.0
    %2668 = vmatpush2.xpose.msra.mxu0 0.0
    %2669 = vmatprep.subr.mxu0 0.0
    %2670 = vmatpush2.xpose.msra.mxu0 0.0
    %2671 = vmatprep.mubr.f32.mxu0 0.0
    %2672 = vmatmul.mubr.f32.gmra.mxu0 %v2603
    %v2673 = vpop.f32.mrf.mxu0
    %v2674 = vadd.f32 0.0, %v2673
    %v2675 = vpop.f32.mrf.mxu0
    %2676 = vdwg.mxu0
    %2677 = vrot.lane.b32.xlu0 %v2218, 96
    %v2678 = vpop.permute.xlu0 %2677
    %v2679 = vsel %vm371, %v2218, 0
    %v2681 = vsel %vm371, %v2678, 0
    %2683 = vmatprep.subr.mxu0 0.0
    %2684 = vmatpush1.xpose.msra.mxu0 0.0
    %2685 = vmatprep.subr.mxu0 0.0
    %2686 = vmatpush1.xpose.msra.mxu0 0.0
    %2687 = vmatprep.subr.mxu0 0.0
    %2688 = vmatpush1.xpose.msra.mxu0 0.0
    %2689 = vmatprep.subr.mxu0 0.0
    %2690 = vmatpush1.xpose.msra.mxu0 0.0
    %2691 = vmatprep.subr.mxu0 0.0
    %2692 = vmatpush1.xpose.msra.mxu0 0.0
    %2693 = vmatprep.subr.mxu0 0.0
    %2694 = vmatpush1.xpose.msra.mxu0 0.0
    %2695 = vmatprep.subr.mxu0 0.0
    %2696 = vmatpush1.xpose.msra.mxu0 0.0
    %2697 = vmatprep.subr.mxu0 0.0
    %2698 = vmatpush1.xpose.msra.mxu0 0.0
    %2699 = vmatprep.subr.mxu0 0.0
    %2700 = vmatpush1.xpose.msra.mxu0 0.0
    %2701 = vmatprep.subr.mxu0 0.0
    %2702 = vmatpush1.xpose.msra.mxu0 0.0
    %2703 = vmatprep.subr.mxu0 0.0
    %2704 = vmatpush1.xpose.msra.mxu0 0.0
    %2705 = vmatprep.subr.mxu0 0.0
    %2706 = vmatpush1.xpose.msra.mxu0 0.0
    %2707 = vmatprep.subr.mxu0 0.0
    %2708 = vmatpush1.xpose.msra.mxu0 0.0
    %2709 = vmatprep.subr.mxu0 0.0
    %2710 = vmatpush1.xpose.msra.mxu0 0.0
    %2711 = vmatprep.subr.mxu0 0.0
    %2712 = vmatpush1.xpose.msra.mxu0 0.0
    %2713 = vmatprep.subr.mxu0 0.0
    %2714 = vmatpush1.xpose.msra.mxu0 %v2681
    %2715 = vmatprep.subr.mxu0 0.0
    %2716 = vmatpush2.xpose.msra.mxu0 0.0
    %2717 = vmatprep.subr.mxu0 0.0
    %2718 = vmatpush2.xpose.msra.mxu0 0.0
    %2719 = vmatprep.subr.mxu0 0.0
    %2720 = vmatpush2.xpose.msra.mxu0 0.0
    %2721 = vmatprep.subr.mxu0 0.0
    %2722 = vmatpush2.xpose.msra.mxu0 0.0
    %2723 = vmatprep.subr.mxu0 0.0
    %2724 = vmatpush2.xpose.msra.mxu0 0.0
    %2725 = vmatprep.subr.mxu0 0.0
    %2726 = vmatpush2.xpose.msra.mxu0 0.0
    %2727 = vmatprep.subr.mxu0 0.0
    %2728 = vmatpush2.xpose.msra.mxu0 0.0
    %2729 = vmatprep.subr.mxu0 0.0
    %2730 = vmatpush2.xpose.msra.mxu0 0.0
    %2731 = vmatprep.subr.mxu0 0.0
    %2732 = vmatpush2.xpose.msra.mxu0 0.0
    %2733 = vmatprep.subr.mxu0 0.0
    %2734 = vmatpush2.xpose.msra.mxu0 0.0
    %2735 = vmatprep.subr.mxu0 0.0
    %2736 = vmatpush2.xpose.msra.mxu0 0.0
    %2737 = vmatprep.subr.mxu0 0.0
    %2738 = vmatpush2.xpose.msra.mxu0 0.0
    %2739 = vmatprep.subr.mxu0 0.0
    %2740 = vmatpush2.xpose.msra.mxu0 0.0
    %2741 = vmatprep.subr.mxu0 0.0
    %2742 = vmatpush2.xpose.msra.mxu0 0.0
    %2743 = vmatprep.subr.mxu0 0.0
    %2744 = vmatpush2.xpose.msra.mxu0 0.0
    %2745 = vmatprep.subr.mxu0 0.0
    %2746 = vmatpush2.xpose.msra.mxu0 0.0
    %2747 = vmatprep.mubr.f32.mxu0 0.0
    %2748 = vmatmul.mubr.f32.gmra.mxu0 %v2679
    %v2749 = vpop.f32.mrf.mxu0
    %v2750 = vadd.f32 0.0, %v2749
    %v2751 = vpop.f32.mrf.mxu0
    %2752 = vdwg.mxu0
    %2753 = vrot.lane.b32.xlu0 %v2220, 96
    %v2754 = vpop.permute.xlu0 %2753
    %v2755 = vsel %vm371, %v2220, 0
    %v2757 = vsel %vm371, %v2754, 0
    %2759 = vmatprep.subr.mxu0 0.0
    %2760 = vmatpush1.xpose.msra.mxu0 0.0
    %2761 = vmatprep.subr.mxu0 0.0
    %2762 = vmatpush1.xpose.msra.mxu0 0.0
    %2763 = vmatprep.subr.mxu0 0.0
    %2764 = vmatpush1.xpose.msra.mxu0 0.0
    %2765 = vmatprep.subr.mxu0 0.0
    %2766 = vmatpush1.xpose.msra.mxu0 0.0
    %2767 = vmatprep.subr.mxu0 0.0
    %2768 = vmatpush1.xpose.msra.mxu0 0.0
    %2769 = vmatprep.subr.mxu0 0.0
    %2770 = vmatpush1.xpose.msra.mxu0 0.0
    %2771 = vmatprep.subr.mxu0 0.0
    %2772 = vmatpush1.xpose.msra.mxu0 0.0
    %2773 = vmatprep.subr.mxu0 0.0
    %2774 = vmatpush1.xpose.msra.mxu0 0.0
    %2775 = vmatprep.subr.mxu0 0.0
    %2776 = vmatpush1.xpose.msra.mxu0 0.0
    %2777 = vmatprep.subr.mxu0 0.0
    %2778 = vmatpush1.xpose.msra.mxu0 0.0
    %2779 = vmatprep.subr.mxu0 0.0
    %2780 = vmatpush1.xpose.msra.mxu0 0.0
    %2781 = vmatprep.subr.mxu0 0.0
    %2782 = vmatpush1.xpose.msra.mxu0 0.0
    %2783 = vmatprep.subr.mxu0 0.0
    %2784 = vmatpush1.xpose.msra.mxu0 0.0
    %2785 = vmatprep.subr.mxu0 0.0
    %2786 = vmatpush1.xpose.msra.mxu0 0.0
    %2787 = vmatprep.subr.mxu0 0.0
    %2788 = vmatpush1.xpose.msra.mxu0 0.0
    %2789 = vmatprep.subr.mxu0 0.0
    %2790 = vmatpush1.xpose.msra.mxu0 %v2757
    %2791 = vmatprep.subr.mxu0 0.0
    %2792 = vmatpush2.xpose.msra.mxu0 0.0
    %2793 = vmatprep.subr.mxu0 0.0
    %2794 = vmatpush2.xpose.msra.mxu0 0.0
    %2795 = vmatprep.subr.mxu0 0.0
    %2796 = vmatpush2.xpose.msra.mxu0 0.0
    %2797 = vmatprep.subr.mxu0 0.0
    %2798 = vmatpush2.xpose.msra.mxu0 0.0
    %2799 = vmatprep.subr.mxu0 0.0
    %2800 = vmatpush2.xpose.msra.mxu0 0.0
    %2801 = vmatprep.subr.mxu0 0.0
    %2802 = vmatpush2.xpose.msra.mxu0 0.0
    %2803 = vmatprep.subr.mxu0 0.0
    %2804 = vmatpush2.xpose.msra.mxu0 0.0
    %2805 = vmatprep.subr.mxu0 0.0
    %2806 = vmatpush2.xpose.msra.mxu0 0.0
    %2807 = vmatprep.subr.mxu0 0.0
    %2808 = vmatpush2.xpose.msra.mxu0 0.0
    %2809 = vmatprep.subr.mxu0 0.0
    %2810 = vmatpush2.xpose.msra.mxu0 0.0
    %2811 = vmatprep.subr.mxu0 0.0
    %2812 = vmatpush2.xpose.msra.mxu0 0.0
    %2813 = vmatprep.subr.mxu0 0.0
    %2814 = vmatpush2.xpose.msra.mxu0 0.0
    %2815 = vmatprep.subr.mxu0 0.0
    %2816 = vmatpush2.xpose.msra.mxu0 0.0
    %2817 = vmatprep.subr.mxu0 0.0
    %2818 = vmatpush2.xpose.msra.mxu0 0.0
    %2819 = vmatprep.subr.mxu0 0.0
    %2820 = vmatpush2.xpose.msra.mxu0 0.0
    %2821 = vmatprep.subr.mxu0 0.0
    %2822 = vmatpush2.xpose.msra.mxu0 0.0
    %2823 = vmatprep.mubr.f32.mxu0 0.0
    %2824 = vmatmul.mubr.f32.gmra.mxu0 %v2755
    %v2825 = vpop.f32.mrf.mxu0
    %v2826 = vadd.f32 0.0, %v2825
    %v2827 = vpop.f32.mrf.mxu0
    %2828 = vdwg.mxu0
    %v2829 = vmul.f32 %v2294, 0.35355338
    %v2830 = vmul.f32 %v2370, 0.35355338
    %v2831 = vmul.f32 %v2446, 0.35355338
    %v2832 = vmul.f32 %v2522, 0.35355338
    %v2833 = vmul.f32 %v2598, 0.35355338
    %v2834 = vmul.f32 %v2674, 0.35355338
    %v2835 = vmul.f32 %v2750, 0.35355338
    %v2836 = vmul.f32 %v2826, 0.35355338
    %v2837 = vadd.f32 %v2829, %v255
    %v2838 = vadd.f32 %v2830, %v256
    %v2839 = vadd.f32 %v2831, %v257
    %v2840 = vadd.f32 %v2832, %v258
    %v2841 = vadd.f32 %v2833, %v259
    %v2842 = vadd.f32 %v2834, %v260
    %v2843 = vadd.f32 %v2835, %v261
    %v2844 = vadd.f32 %v2836, %v262
    %v2845 = vsel %vm371, %v2837, -inf
    %2846 = vmax.xlane.f32.xlu0 %v2845
    %v2847 = vpop.xlane.xlu0 %2846
    %v2848 = vsel %vm371, %v2838, -inf
    %2849 = vmax.xlane.f32.xlu0 %v2848
    %v2850 = vpop.xlane.xlu0 %2849
    %v2851 = vsel %vm371, %v2839, -inf
    %2852 = vmax.xlane.f32.xlu0 %v2851
    %v2853 = vpop.xlane.xlu0 %2852
    %v2854 = vsel %vm371, %v2840, -inf
    %2855 = vmax.xlane.f32.xlu0 %v2854
    %v2856 = vpop.xlane.xlu0 %2855
    %v2857 = vsel %vm371, %v2841, -inf
    %2858 = vmax.xlane.f32.xlu0 %v2857
    %v2859 = vpop.xlane.xlu0 %2858
    %v2860 = vsel %vm371, %v2842, -inf
    %2861 = vmax.xlane.f32.xlu0 %v2860
    %v2862 = vpop.xlane.xlu0 %2861
    %v2863 = vsel %vm371, %v2843, -inf
    %2864 = vmax.xlane.f32.xlu0 %v2863
    %v2865 = vpop.xlane.xlu0 %2864
    %v2866 = vsel %vm371, %v2844, -inf
    %2867 = vmax.xlane.f32.xlu0 %v2866
    %v2868 = vpop.xlane.xlu0 %2867
    %v2869 = vsub.f32 %v2837, %v2847
    %v2870 = vsub.f32 %v2838, %v2850
    %v2871 = vsub.f32 %v2839, %v2853
    %v2872 = vsub.f32 %v2840, %v2856
    %v2873 = vsub.f32 %v2841, %v2859
    %v2874 = vsub.f32 %v2842, %v2862
    %v2875 = vsub.f32 %v2843, %v2865
    %v2876 = vsub.f32 %v2844, %v2868
    %v2877 = vmul.f32 %v2869, 1.442695
    %v2878 = vpow.pop %v2877
    %v2879 = vmul.f32 %v2870, 1.442695
    %v2880 = vpow.pop %v2879
    %v2881 = vmul.f32 %v2871, 1.442695
    %v2882 = vpow.pop %v2881
    %v2883 = vmul.f32 %v2872, 1.442695
    %v2884 = vpow.pop %v2883
    %v2885 = vmul.f32 %v2873, 1.442695
    %v2886 = vpow.pop %v2885
    %v2887 = vmul.f32 %v2874, 1.442695
    %v2888 = vpow.pop %v2887
    %v2889 = vmul.f32 %v2875, 1.442695
    %v2890 = vpow.pop %v2889
    %v2891 = vmul.f32 %v2876, 1.442695
    %v2892 = vpow.pop %v2891
    %v2893 = vsel %vm371, %v2878, 0.0
    %2894 = vadd.xlane.f32.xlu0 %v2893
    %v2895 = vpop.xlane.xlu0 %2894
    %v2896 = vsel %vm371, %v2880, 0.0
    %2897 = vadd.xlane.f32.xlu0 %v2896
    %v2898 = vpop.xlane.xlu0 %2897
    %v2899 = vsel %vm371, %v2882, 0.0
    %2900 = vadd.xlane.f32.xlu0 %v2899
    %v2901 = vpop.xlane.xlu0 %2900
    %v2902 = vsel %vm371, %v2884, 0.0
    %2903 = vadd.xlane.f32.xlu0 %v2902
    %v2904 = vpop.xlane.xlu0 %2903
    %v2905 = vsel %vm371, %v2886, 0.0
    %2906 = vadd.xlane.f32.xlu0 %v2905
    %v2907 = vpop.xlane.xlu0 %2906
    %v2908 = vsel %vm371, %v2888, 0.0
    %2909 = vadd.xlane.f32.xlu0 %v2908
    %v2910 = vpop.xlane.xlu0 %2909
    %v2911 = vsel %vm371, %v2890, 0.0
    %2912 = vadd.xlane.f32.xlu0 %v2911
    %v2913 = vpop.xlane.xlu0 %2912
    %v2914 = vsel %vm371, %v2892, 0.0
    %2915 = vadd.xlane.f32.xlu0 %v2914
    %v2916 = vpop.xlane.xlu0 %2915
    %v2917 = vrcp.pop %v2895
    %v2918 = vrcp.pop %v2898
    %v2919 = vrcp.pop %v2901
    %v2920 = vrcp.pop %v2904
    %v2921 = vrcp.pop %v2907
    %v2922 = vrcp.pop %v2910
    %v2923 = vrcp.pop %v2913
    %v2924 = vrcp.pop %v2916
    %v2925 = vmul.f32 %v2878, %v2917
    %v2926 = vmul.f32 %v2880, %v2918
    %v2927 = vmul.f32 %v2882, %v2919
    %v2928 = vmul.f32 %v2884, %v2920
    %v2929 = vmul.f32 %v2886, %v2921
    %v2930 = vmul.f32 %v2888, %v2922
    %v2931 = vmul.f32 %v2890, %v2923
    %v2932 = vmul.f32 %v2892, %v2924
    %2933 = vrot.lane.b32.xlu0 %v2199, 64
    %v2934 = vpop.permute.xlu0 %2933
    %v2937 = vsel %vm371, %v2925, 0
    %2939 = vmatprep.subr.mxu0 0.0
    %2940 = vmatpush1.msra.mxu0 0.0
    %2941 = vmatprep.subr.mxu0 0.0
    %2942 = vmatpush1.msra.mxu0 0.0
    %2943 = vmatprep.subr.mxu0 0.0
    %2944 = vmatpush1.msra.mxu0 0.0
    %2945 = vmatprep.subr.mxu0 0.0
    %2946 = vmatpush1.msra.mxu0 0.0
    %2947 = vmatprep.subr.mxu0 0.0
    %2948 = vmatpush1.msra.mxu0 0.0
    %2949 = vmatprep.subr.mxu0 0.0
    %2950 = vmatpush1.msra.mxu0 0.0
    %2951 = vmatprep.subr.mxu0 0.0
    %2952 = vmatpush1.msra.mxu0 0.0
    %2953 = vmatprep.subr.mxu0 0.0
    %2954 = vmatpush1.msra.mxu0 0.0
    %2955 = vmatprep.subr.mxu0 0.0
    %2956 = vmatpush1.msra.mxu0 0.0
    %2957 = vmatprep.subr.mxu0 0.0
    %2958 = vmatpush1.msra.mxu0 0.0
    %2959 = vmatprep.subr.mxu0 0.0
    %2960 = vmatpush1.msra.mxu0 0.0
    %2961 = vmatprep.subr.mxu0 0.0
    %2962 = vmatpush1.msra.mxu0 0.0
    %2963 = vmatprep.subr.mxu0 0.0
    %2964 = vmatpush1.msra.mxu0 0.0
    %2965 = vmatprep.subr.mxu0 0.0
    %2966 = vmatpush1.msra.mxu0 0.0
    %2967 = vmatprep.subr.mxu0 0.0
    %2968 = vmatpush1.msra.mxu0 0.0
    %2969 = vmatprep.subr.mxu0 0.0
    %2970 = vmatpush1.msra.mxu0 %v2934
    %2971 = vmatprep.subr.mxu0 0.0
    %2972 = vmatpush2.msra.mxu0 0.0
    %2973 = vmatprep.subr.mxu0 0.0
    %2974 = vmatpush2.msra.mxu0 0.0
    %2975 = vmatprep.subr.mxu0 0.0
    %2976 = vmatpush2.msra.mxu0 0.0
    %2977 = vmatprep.subr.mxu0 0.0
    %2978 = vmatpush2.msra.mxu0 0.0
    %2979 = vmatprep.subr.mxu0 0.0
    %2980 = vmatpush2.msra.mxu0 0.0
    %2981 = vmatprep.subr.mxu0 0.0
    %2982 = vmatpush2.msra.mxu0 0.0
    %2983 = vmatprep.subr.mxu0 0.0
    %2984 = vmatpush2.msra.mxu0 0.0
    %2985 = vmatprep.subr.mxu0 0.0
    %2986 = vmatpush2.msra.mxu0 0.0
    %2987 = vmatprep.subr.mxu0 0.0
    %2988 = vmatpush2.msra.mxu0 0.0
    %2989 = vmatprep.subr.mxu0 0.0
    %2990 = vmatpush2.msra.mxu0 0.0
    %2991 = vmatprep.subr.mxu0 0.0
    %2992 = vmatpush2.msra.mxu0 0.0
    %2993 = vmatprep.subr.mxu0 0.0
    %2994 = vmatpush2.msra.mxu0 0.0
    %2995 = vmatprep.subr.mxu0 0.0
    %2996 = vmatpush2.msra.mxu0 0.0
    %2997 = vmatprep.subr.mxu0 0.0
    %2998 = vmatpush2.msra.mxu0 0.0
    %2999 = vmatprep.subr.mxu0 0.0
    %3000 = vmatpush2.msra.mxu0 0.0
    %3001 = vmatprep.subr.mxu0 0.0
    %3002 = vmatpush2.msra.mxu0 0.0
    %3003 = vmatprep.mubr.f32.mxu0 0.0
    %3004 = vmatmul.mubr.f32.gmra.mxu0 %v2937
    %v3005 = vpop.f32.mrf.mxu0
    %v3006 = vadd.f32 0.0, %v3005
    %v3007 = vpop.f32.mrf.mxu0
    %3008 = vdwg.mxu0
    %3009 = vrot.lane.b32.xlu0 %v2204, 64
    %v3010 = vpop.permute.xlu0 %3009
    %v3013 = vsel %vm371, %v2926, 0
    %3015 = vmatprep.subr.mxu0 0.0
    %3016 = vmatpush1.msra.mxu0 0.0
    %3017 = vmatprep.subr.mxu0 0.0
    %3018 = vmatpush1.msra.mxu0 0.0
    %3019 = vmatprep.subr.mxu0 0.0
    %3020 = vmatpush1.msra.mxu0 0.0
    %3021 = vmatprep.subr.mxu0 0.0
    %3022 = vmatpush1.msra.mxu0 0.0
    %3023 = vmatprep.subr.mxu0 0.0
    %3024 = vmatpush1.msra.mxu0 0.0
    %3025 = vmatprep.subr.mxu0 0.0
    %3026 = vmatpush1.msra.mxu0 0.0
    %3027 = vmatprep.subr.mxu0 0.0
    %3028 = vmatpush1.msra.mxu0 0.0
    %3029 = vmatprep.subr.mxu0 0.0
    %3030 = vmatpush1.msra.mxu0 0.0
    %3031 = vmatprep.subr.mxu0 0.0
    %3032 = vmatpush1.msra.mxu0 0.0
    %3033 = vmatprep.subr.mxu0 0.0
    %3034 = vmatpush1.msra.mxu0 0.0
    %3035 = vmatprep.subr.mxu0 0.0
    %3036 = vmatpush1.msra.mxu0 0.0
    %3037 = vmatprep.subr.mxu0 0.0
    %3038 = vmatpush1.msra.mxu0 0.0
    %3039 = vmatprep.subr.mxu0 0.0
    %3040 = vmatpush1.msra.mxu0 0.0
    %3041 = vmatprep.subr.mxu0 0.0
    %3042 = vmatpush1.msra.mxu0 0.0
    %3043 = vmatprep.subr.mxu0 0.0
    %3044 = vmatpush1.msra.mxu0 0.0
    %3045 = vmatprep.subr.mxu0 0.0
    %3046 = vmatpush1.msra.mxu0 %v3010
    %3047 = vmatprep.subr.mxu0 0.0
    %3048 = vmatpush2.msra.mxu0 0.0
    %3049 = vmatprep.subr.mxu0 0.0
    %3050 = vmatpush2.msra.mxu0 0.0
    %3051 = vmatprep.subr.mxu0 0.0
    %3052 = vmatpush2.msra.mxu0 0.0
    %3053 = vmatprep.subr.mxu0 0.0
    %3054 = vmatpush2.msra.mxu0 0.0
    %3055 = vmatprep.subr.mxu0 0.0
    %3056 = vmatpush2.msra.mxu0 0.0
    %3057 = vmatprep.subr.mxu0 0.0
    %3058 = vmatpush2.msra.mxu0 0.0
    %3059 = vmatprep.subr.mxu0 0.0
    %3060 = vmatpush2.msra.mxu0 0.0
    %3061 = vmatprep.subr.mxu0 0.0
    %3062 = vmatpush2.msra.mxu0 0.0
    %3063 = vmatprep.subr.mxu0 0.0
    %3064 = vmatpush2.msra.mxu0 0.0
    %3065 = vmatprep.subr.mxu0 0.0
    %3066 = vmatpush2.msra.mxu0 0.0
    %3067 = vmatprep.subr.mxu0 0.0
    %3068 = vmatpush2.msra.mxu0 0.0
    %3069 = vmatprep.subr.mxu0 0.0
    %3070 = vmatpush2.msra.mxu0 0.0
    %3071 = vmatprep.subr.mxu0 0.0
    %3072 = vmatpush2.msra.mxu0 0.0
    %3073 = vmatprep.subr.mxu0 0.0
    %3074 = vmatpush2.msra.mxu0 0.0
    %3075 = vmatprep.subr.mxu0 0.0
    %3076 = vmatpush2.msra.mxu0 0.0
    %3077 = vmatprep.subr.mxu0 0.0
    %3078 = vmatpush2.msra.mxu0 0.0
    %3079 = vmatprep.mubr.f32.mxu0 0.0
    %3080 = vmatmul.mubr.f32.gmra.mxu0 %v3013
    %v3081 = vpop.f32.mrf.mxu0
    %v3082 = vadd.f32 0.0, %v3081
    %v3083 = vpop.f32.mrf.mxu0
    %3084 = vdwg.mxu0
    %3085 = vrot.lane.b32.xlu0 %v2210, 64
    %v3086 = vpop.permute.xlu0 %3085
    %v3089 = vsel %vm371, %v2927, 0
    %3091 = vmatprep.subr.mxu0 0.0
    %3092 = vmatpush1.msra.mxu0 0.0
    %3093 = vmatprep.subr.mxu0 0.0
    %3094 = vmatpush1.msra.mxu0 0.0
    %3095 = vmatprep.subr.mxu0 0.0
    %3096 = vmatpush1.msra.mxu0 0.0
    %3097 = vmatprep.subr.mxu0 0.0
    %3098 = vmatpush1.msra.mxu0 0.0
    %3099 = vmatprep.subr.mxu0 0.0
    %3100 = vmatpush1.msra.mxu0 0.0
    %3101 = vmatprep.subr.mxu0 0.0
    %3102 = vmatpush1.msra.mxu0 0.0
    %3103 = vmatprep.subr.mxu0 0.0
    %3104 = vmatpush1.msra.mxu0 0.0
    %3105 = vmatprep.subr.mxu0 0.0
    %3106 = vmatpush1.msra.mxu0 0.0
    %3107 = vmatprep.subr.mxu0 0.0
    %3108 = vmatpush1.msra.mxu0 0.0
    %3109 = vmatprep.subr.mxu0 0.0
    %3110 = vmatpush1.msra.mxu0 0.0
    %3111 = vmatprep.subr.mxu0 0.0
    %3112 = vmatpush1.msra.mxu0 0.0
    %3113 = vmatprep.subr.mxu0 0.0
    %3114 = vmatpush1.msra.mxu0 0.0
    %3115 = vmatprep.subr.mxu0 0.0
    %3116 = vmatpush1.msra.mxu0 0.0
    %3117 = vmatprep.subr.mxu0 0.0
    %3118 = vmatpush1.msra.mxu0 0.0
    %3119 = vmatprep.subr.mxu0 0.0
    %3120 = vmatpush1.msra.mxu0 0.0
    %3121 = vmatprep.subr.mxu0 0.0
    %3122 = vmatpush1.msra.mxu0 %v3086
    %3123 = vmatprep.subr.mxu0 0.0
    %3124 = vmatpush2.msra.mxu0 0.0
    %3125 = vmatprep.subr.mxu0 0.0
    %3126 = vmatpush2.msra.mxu0 0.0
    %3127 = vmatprep.subr.mxu0 0.0
    %3128 = vmatpush2.msra.mxu0 0.0
    %3129 = vmatprep.subr.mxu0 0.0
    %3130 = vmatpush2.msra.mxu0 0.0
    %3131 = vmatprep.subr.mxu0 0.0
    %3132 = vmatpush2.msra.mxu0 0.0
    %3133 = vmatprep.subr.mxu0 0.0
    %3134 = vmatpush2.msra.mxu0 0.0
    %3135 = vmatprep.subr.mxu0 0.0
    %3136 = vmatpush2.msra.mxu0 0.0
    %3137 = vmatprep.subr.mxu0 0.0
    %3138 = vmatpush2.msra.mxu0 0.0
    %3139 = vmatprep.subr.mxu0 0.0
    %3140 = vmatpush2.msra.mxu0 0.0
    %3141 = vmatprep.subr.mxu0 0.0
    %3142 = vmatpush2.msra.mxu0 0.0
    %3143 = vmatprep.subr.mxu0 0.0
    %3144 = vmatpush2.msra.mxu0 0.0
    %3145 = vmatprep.subr.mxu0 0.0
    %3146 = vmatpush2.msra.mxu0 0.0
    %3147 = vmatprep.subr.mxu0 0.0
    %3148 = vmatpush2.msra.mxu0 0.0
    %3149 = vmatprep.subr.mxu0 0.0
    %3150 = vmatpush2.msra.mxu0 0.0
    %3151 = vmatprep.subr.mxu0 0.0
    %3152 = vmatpush2.msra.mxu0 0.0
    %3153 = vmatprep.subr.mxu0 0.0
    %3154 = vmatpush2.msra.mxu0 0.0
    %3155 = vmatprep.mubr.f32.mxu0 0.0
    %3156 = vmatmul.mubr.f32.gmra.mxu0 %v3089
    %v3157 = vpop.f32.mrf.mxu0
    %v3158 = vadd.f32 0.0, %v3157
    %v3159 = vpop.f32.mrf.mxu0
    %3160 = vdwg.mxu0
    %3161 = vrot.lane.b32.xlu0 %v2212, 64
    %v3162 = vpop.permute.xlu0 %3161
    %v3165 = vsel %vm371, %v2928, 0
    %3167 = vmatprep.subr.mxu0 0.0
    %3168 = vmatpush1.msra.mxu0 0.0
    %3169 = vmatprep.subr.mxu0 0.0
    %3170 = vmatpush1.msra.mxu0 0.0
    %3171 = vmatprep.subr.mxu0 0.0
    %3172 = vmatpush1.msra.mxu0 0.0
    %3173 = vmatprep.subr.mxu0 0.0
    %3174 = vmatpush1.msra.mxu0 0.0
    %3175 = vmatprep.subr.mxu0 0.0
    %3176 = vmatpush1.msra.mxu0 0.0
    %3177 = vmatprep.subr.mxu0 0.0
    %3178 = vmatpush1.msra.mxu0 0.0
    %3179 = vmatprep.subr.mxu0 0.0
    %3180 = vmatpush1.msra.mxu0 0.0
    %3181 = vmatprep.subr.mxu0 0.0
    %3182 = vmatpush1.msra.mxu0 0.0
    %3183 = vmatprep.subr.mxu0 0.0
    %3184 = vmatpush1.msra.mxu0 0.0
    %3185 = vmatprep.subr.mxu0 0.0
    %3186 = vmatpush1.msra.mxu0 0.0
    %3187 = vmatprep.subr.mxu0 0.0
    %3188 = vmatpush1.msra.mxu0 0.0
    %3189 = vmatprep.subr.mxu0 0.0
    %3190 = vmatpush1.msra.mxu0 0.0
    %3191 = vmatprep.subr.mxu0 0.0
    %3192 = vmatpush1.msra.mxu0 0.0
    %3193 = vmatprep.subr.mxu0 0.0
    %3194 = vmatpush1.msra.mxu0 0.0
    %3195 = vmatprep.subr.mxu0 0.0
    %3196 = vmatpush1.msra.mxu0 0.0
    %3197 = vmatprep.subr.mxu0 0.0
    %3198 = vmatpush1.msra.mxu0 %v3162
    %3199 = vmatprep.subr.mxu0 0.0
    %3200 = vmatpush2.msra.mxu0 0.0
    %3201 = vmatprep.subr.mxu0 0.0
    %3202 = vmatpush2.msra.mxu0 0.0
    %3203 = vmatprep.subr.mxu0 0.0
    %3204 = vmatpush2.msra.mxu0 0.0
    %3205 = vmatprep.subr.mxu0 0.0
    %3206 = vmatpush2.msra.mxu0 0.0
    %3207 = vmatprep.subr.mxu0 0.0
    %3208 = vmatpush2.msra.mxu0 0.0
    %3209 = vmatprep.subr.mxu0 0.0
    %3210 = vmatpush2.msra.mxu0 0.0
    %3211 = vmatprep.subr.mxu0 0.0
    %3212 = vmatpush2.msra.mxu0 0.0
    %3213 = vmatprep.subr.mxu0 0.0
    %3214 = vmatpush2.msra.mxu0 0.0
    %3215 = vmatprep.subr.mxu0 0.0
    %3216 = vmatpush2.msra.mxu0 0.0
    %3217 = vmatprep.subr.mxu0 0.0
    %3218 = vmatpush2.msra.mxu0 0.0
    %3219 = vmatprep.subr.mxu0 0.0
    %3220 = vmatpush2.msra.mxu0 0.0
    %3221 = vmatprep.subr.mxu0 0.0
    %3222 = vmatpush2.msra.mxu0 0.0
    %3223 = vmatprep.subr.mxu0 0.0
    %3224 = vmatpush2.msra.mxu0 0.0
    %3225 = vmatprep.subr.mxu0 0.0
    %3226 = vmatpush2.msra.mxu0 0.0
    %3227 = vmatprep.subr.mxu0 0.0
    %3228 = vmatpush2.msra.mxu0 0.0
    %3229 = vmatprep.subr.mxu0 0.0
    %3230 = vmatpush2.msra.mxu0 0.0
    %3231 = vmatprep.mubr.f32.mxu0 0.0
    %3232 = vmatmul.mubr.f32.gmra.mxu0 %v3165
    %v3233 = vpop.f32.mrf.mxu0
    %v3234 = vadd.f32 0.0, %v3233
    %v3235 = vpop.f32.mrf.mxu0
    %3236 = vdwg.mxu0
    %3237 = vrot.lane.b32.xlu0 %v2214, 64
    %v3238 = vpop.permute.xlu0 %3237
    %v3241 = vsel %vm371, %v2929, 0
    %3243 = vmatprep.subr.mxu0 0.0
    %3244 = vmatpush1.msra.mxu0 0.0
    %3245 = vmatprep.subr.mxu0 0.0
    %3246 = vmatpush1.msra.mxu0 0.0
    %3247 = vmatprep.subr.mxu0 0.0
    %3248 = vmatpush1.msra.mxu0 0.0
    %3249 = vmatprep.subr.mxu0 0.0
    %3250 = vmatpush1.msra.mxu0 0.0
    %3251 = vmatprep.subr.mxu0 0.0
    %3252 = vmatpush1.msra.mxu0 0.0
    %3253 = vmatprep.subr.mxu0 0.0
    %3254 = vmatpush1.msra.mxu0 0.0
    %3255 = vmatprep.subr.mxu0 0.0
    %3256 = vmatpush1.msra.mxu0 0.0
    %3257 = vmatprep.subr.mxu0 0.0
    %3258 = vmatpush1.msra.mxu0 0.0
    %3259 = vmatprep.subr.mxu0 0.0
    %3260 = vmatpush1.msra.mxu0 0.0
    %3261 = vmatprep.subr.mxu0 0.0
    %3262 = vmatpush1.msra.mxu0 0.0
    %3263 = vmatprep.subr.mxu0 0.0
    %3264 = vmatpush1.msra.mxu0 0.0
    %3265 = vmatprep.subr.mxu0 0.0
    %3266 = vmatpush1.msra.mxu0 0.0
    %3267 = vmatprep.subr.mxu0 0.0
    %3268 = vmatpush1.msra.mxu0 0.0
    %3269 = vmatprep.subr.mxu0 0.0
    %3270 = vmatpush1.msra.mxu0 0.0
    %3271 = vmatprep.subr.mxu0 0.0
    %3272 = vmatpush1.msra.mxu0 0.0
    %3273 = vmatprep.subr.mxu0 0.0
    %3274 = vmatpush1.msra.mxu0 %v3238
    %3275 = vmatprep.subr.mxu0 0.0
    %3276 = vmatpush2.msra.mxu0 0.0
    %3277 = vmatprep.subr.mxu0 0.0
    %3278 = vmatpush2.msra.mxu0 0.0
    %3279 = vmatprep.subr.mxu0 0.0
    %3280 = vmatpush2.msra.mxu0 0.0
    %3281 = vmatprep.subr.mxu0 0.0
    %3282 = vmatpush2.msra.mxu0 0.0
    %3283 = vmatprep.subr.mxu0 0.0
    %3284 = vmatpush2.msra.mxu0 0.0
    %3285 = vmatprep.subr.mxu0 0.0
    %3286 = vmatpush2.msra.mxu0 0.0
    %3287 = vmatprep.subr.mxu0 0.0
    %3288 = vmatpush2.msra.mxu0 0.0
    %3289 = vmatprep.subr.mxu0 0.0
    %3290 = vmatpush2.msra.mxu0 0.0
    %3291 = vmatprep.subr.mxu0 0.0
    %3292 = vmatpush2.msra.mxu0 0.0
    %3293 = vmatprep.subr.mxu0 0.0
    %3294 = vmatpush2.msra.mxu0 0.0
    %3295 = vmatprep.subr.mxu0 0.0
    %3296 = vmatpush2.msra.mxu0 0.0
    %3297 = vmatprep.subr.mxu0 0.0
    %3298 = vmatpush2.msra.mxu0 0.0
    %3299 = vmatprep.subr.mxu0 0.0
    %3300 = vmatpush2.msra.mxu0 0.0
    %3301 = vmatprep.subr.mxu0 0.0
    %3302 = vmatpush2.msra.mxu0 0.0
    %3303 = vmatprep.subr.mxu0 0.0
    %3304 = vmatpush2.msra.mxu0 0.0
    %3305 = vmatprep.subr.mxu0 0.0
    %3306 = vmatpush2.msra.mxu0 0.0
    %3307 = vmatprep.mubr.f32.mxu0 0.0
    %3308 = vmatmul.mubr.f32.gmra.mxu0 %v3241
    %v3309 = vpop.f32.mrf.mxu0
    %v3310 = vadd.f32 0.0, %v3309
    %v3311 = vpop.f32.mrf.mxu0
    %3312 = vdwg.mxu0
    %3313 = vrot.lane.b32.xlu0 %v2216, 64
    %v3314 = vpop.permute.xlu0 %3313
    %v3317 = vsel %vm371, %v2930, 0
    %3319 = vmatprep.subr.mxu0 0.0
    %3320 = vmatpush1.msra.mxu0 0.0
    %3321 = vmatprep.subr.mxu0 0.0
    %3322 = vmatpush1.msra.mxu0 0.0
    %3323 = vmatprep.subr.mxu0 0.0
    %3324 = vmatpush1.msra.mxu0 0.0
    %3325 = vmatprep.subr.mxu0 0.0
    %3326 = vmatpush1.msra.mxu0 0.0
    %3327 = vmatprep.subr.mxu0 0.0
    %3328 = vmatpush1.msra.mxu0 0.0
    %3329 = vmatprep.subr.mxu0 0.0
    %3330 = vmatpush1.msra.mxu0 0.0
    %3331 = vmatprep.subr.mxu0 0.0
    %3332 = vmatpush1.msra.mxu0 0.0
    %3333 = vmatprep.subr.mxu0 0.0
    %3334 = vmatpush1.msra.mxu0 0.0
    %3335 = vmatprep.subr.mxu0 0.0
    %3336 = vmatpush1.msra.mxu0 0.0
    %3337 = vmatprep.subr.mxu0 0.0
    %3338 = vmatpush1.msra.mxu0 0.0
    %3339 = vmatprep.subr.mxu0 0.0
    %3340 = vmatpush1.msra.mxu0 0.0
    %3341 = vmatprep.subr.mxu0 0.0
    %3342 = vmatpush1.msra.mxu0 0.0
    %3343 = vmatprep.subr.mxu0 0.0
    %3344 = vmatpush1.msra.mxu0 0.0
    %3345 = vmatprep.subr.mxu0 0.0
    %3346 = vmatpush1.msra.mxu0 0.0
    %3347 = vmatprep.subr.mxu0 0.0
    %3348 = vmatpush1.msra.mxu0 0.0
    %3349 = vmatprep.subr.mxu0 0.0
    %3350 = vmatpush1.msra.mxu0 %v3314
    %3351 = vmatprep.subr.mxu0 0.0
    %3352 = vmatpush2.msra.mxu0 0.0
    %3353 = vmatprep.subr.mxu0 0.0
    %3354 = vmatpush2.msra.mxu0 0.0
    %3355 = vmatprep.subr.mxu0 0.0
    %3356 = vmatpush2.msra.mxu0 0.0
    %3357 = vmatprep.subr.mxu0 0.0
    %3358 = vmatpush2.msra.mxu0 0.0
    %3359 = vmatprep.subr.mxu0 0.0
    %3360 = vmatpush2.msra.mxu0 0.0
    %3361 = vmatprep.subr.mxu0 0.0
    %3362 = vmatpush2.msra.mxu0 0.0
    %3363 = vmatprep.subr.mxu0 0.0
    %3364 = vmatpush2.msra.mxu0 0.0
    %3365 = vmatprep.subr.mxu0 0.0
    %3366 = vmatpush2.msra.mxu0 0.0
    %3367 = vmatprep.subr.mxu0 0.0
    %3368 = vmatpush2.msra.mxu0 0.0
    %3369 = vmatprep.subr.mxu0 0.0
    %3370 = vmatpush2.msra.mxu0 0.0
    %3371 = vmatprep.subr.mxu0 0.0
    %3372 = vmatpush2.msra.mxu0 0.0
    %3373 = vmatprep.subr.mxu0 0.0
    %3374 = vmatpush2.msra.mxu0 0.0
    %3375 = vmatprep.subr.mxu0 0.0
    %3376 = vmatpush2.msra.mxu0 0.0
    %3377 = vmatprep.subr.mxu0 0.0
    %3378 = vmatpush2.msra.mxu0 0.0
    %3379 = vmatprep.subr.mxu0 0.0
    %3380 = vmatpush2.msra.mxu0 0.0
    %3381 = vmatprep.subr.mxu0 0.0
    %3382 = vmatpush2.msra.mxu0 0.0
    %3383 = vmatprep.mubr.f32.mxu0 0.0
    %3384 = vmatmul.mubr.f32.gmra.mxu0 %v3317
    %v3385 = vpop.f32.mrf.mxu0
    %v3386 = vadd.f32 0.0, %v3385
    %v3387 = vpop.f32.mrf.mxu0
    %3388 = vdwg.mxu0
    %3389 = vrot.lane.b32.xlu0 %v2218, 64
    %v3390 = vpop.permute.xlu0 %3389
    %v3393 = vsel %vm371, %v2931, 0
    %3395 = vmatprep.subr.mxu0 0.0
    %3396 = vmatpush1.msra.mxu0 0.0
    %3397 = vmatprep.subr.mxu0 0.0
    %3398 = vmatpush1.msra.mxu0 0.0
    %3399 = vmatprep.subr.mxu0 0.0
    %3400 = vmatpush1.msra.mxu0 0.0
    %3401 = vmatprep.subr.mxu0 0.0
    %3402 = vmatpush1.msra.mxu0 0.0
    %3403 = vmatprep.subr.mxu0 0.0
    %3404 = vmatpush1.msra.mxu0 0.0
    %3405 = vmatprep.subr.mxu0 0.0
    %3406 = vmatpush1.msra.mxu0 0.0
    %3407 = vmatprep.subr.mxu0 0.0
    %3408 = vmatpush1.msra.mxu0 0.0
    %3409 = vmatprep.subr.mxu0 0.0
    %3410 = vmatpush1.msra.mxu0 0.0
    %3411 = vmatprep.subr.mxu0 0.0
    %3412 = vmatpush1.msra.mxu0 0.0
    %3413 = vmatprep.subr.mxu0 0.0
    %3414 = vmatpush1.msra.mxu0 0.0
    %3415 = vmatprep.subr.mxu0 0.0
    %3416 = vmatpush1.msra.mxu0 0.0
    %3417 = vmatprep.subr.mxu0 0.0
    %3418 = vmatpush1.msra.mxu0 0.0
    %3419 = vmatprep.subr.mxu0 0.0
    %3420 = vmatpush1.msra.mxu0 0.0
    %3421 = vmatprep.subr.mxu0 0.0
    %3422 = vmatpush1.msra.mxu0 0.0
    %3423 = vmatprep.subr.mxu0 0.0
    %3424 = vmatpush1.msra.mxu0 0.0
    %3425 = vmatprep.subr.mxu0 0.0
    %3426 = vmatpush1.msra.mxu0 %v3390
    %3427 = vmatprep.subr.mxu0 0.0
    %3428 = vmatpush2.msra.mxu0 0.0
    %3429 = vmatprep.subr.mxu0 0.0
    %3430 = vmatpush2.msra.mxu0 0.0
    %3431 = vmatprep.subr.mxu0 0.0
    %3432 = vmatpush2.msra.mxu0 0.0
    %3433 = vmatprep.subr.mxu0 0.0
    %3434 = vmatpush2.msra.mxu0 0.0
    %3435 = vmatprep.subr.mxu0 0.0
    %3436 = vmatpush2.msra.mxu0 0.0
    %3437 = vmatprep.subr.mxu0 0.0
    %3438 = vmatpush2.msra.mxu0 0.0
    %3439 = vmatprep.subr.mxu0 0.0
    %3440 = vmatpush2.msra.mxu0 0.0
    %3441 = vmatprep.subr.mxu0 0.0
    %3442 = vmatpush2.msra.mxu0 0.0
    %3443 = vmatprep.subr.mxu0 0.0
    %3444 = vmatpush2.msra.mxu0 0.0
    %3445 = vmatprep.subr.mxu0 0.0
    %3446 = vmatpush2.msra.mxu0 0.0
    %3447 = vmatprep.subr.mxu0 0.0
    %3448 = vmatpush2.msra.mxu0 0.0
    %3449 = vmatprep.subr.mxu0 0.0
    %3450 = vmatpush2.msra.mxu0 0.0
    %3451 = vmatprep.subr.mxu0 0.0
    %3452 = vmatpush2.msra.mxu0 0.0
    %3453 = vmatprep.subr.mxu0 0.0
    %3454 = vmatpush2.msra.mxu0 0.0
    %3455 = vmatprep.subr.mxu0 0.0
    %3456 = vmatpush2.msra.mxu0 0.0
    %3457 = vmatprep.subr.mxu0 0.0
    %3458 = vmatpush2.msra.mxu0 0.0
    %3459 = vmatprep.mubr.f32.mxu0 0.0
    %3460 = vmatmul.mubr.f32.gmra.mxu0 %v3393
    %v3461 = vpop.f32.mrf.mxu0
    %v3462 = vadd.f32 0.0, %v3461
    %v3463 = vpop.f32.mrf.mxu0
    %3464 = vdwg.mxu0
    %3465 = vrot.lane.b32.xlu0 %v2220, 64
    %v3466 = vpop.permute.xlu0 %3465
    %v3469 = vsel %vm371, %v2932, 0
    %3471 = vmatprep.subr.mxu0 0.0
    %3472 = vmatpush1.msra.mxu0 0.0
    %3473 = vmatprep.subr.mxu0 0.0
    %3474 = vmatpush1.msra.mxu0 0.0
    %3475 = vmatprep.subr.mxu0 0.0
    %3476 = vmatpush1.msra.mxu0 0.0
    %3477 = vmatprep.subr.mxu0 0.0
    %3478 = vmatpush1.msra.mxu0 0.0
    %3479 = vmatprep.subr.mxu0 0.0
    %3480 = vmatpush1.msra.mxu0 0.0
    %3481 = vmatprep.subr.mxu0 0.0
    %3482 = vmatpush1.msra.mxu0 0.0
    %3483 = vmatprep.subr.mxu0 0.0
    %3484 = vmatpush1.msra.mxu0 0.0
    %3485 = vmatprep.subr.mxu0 0.0
    %3486 = vmatpush1.msra.mxu0 0.0
    %3487 = vmatprep.subr.mxu0 0.0
    %3488 = vmatpush1.msra.mxu0 0.0
    %3489 = vmatprep.subr.mxu0 0.0
    %3490 = vmatpush1.msra.mxu0 0.0
    %3491 = vmatprep.subr.mxu0 0.0
    %3492 = vmatpush1.msra.mxu0 0.0
    %3493 = vmatprep.subr.mxu0 0.0
    %3494 = vmatpush1.msra.mxu0 0.0
    %3495 = vmatprep.subr.mxu0 0.0
    %3496 = vmatpush1.msra.mxu0 0.0
    %3497 = vmatprep.subr.mxu0 0.0
    %3498 = vmatpush1.msra.mxu0 0.0
    %3499 = vmatprep.subr.mxu0 0.0
    %3500 = vmatpush1.msra.mxu0 0.0
    %3501 = vmatprep.subr.mxu0 0.0
    %3502 = vmatpush1.msra.mxu0 %v3466
    %3503 = vmatprep.subr.mxu0 0.0
    %3504 = vmatpush2.msra.mxu0 0.0
    %3505 = vmatprep.subr.mxu0 0.0
    %3506 = vmatpush2.msra.mxu0 0.0
    %3507 = vmatprep.subr.mxu0 0.0
    %3508 = vmatpush2.msra.mxu0 0.0
    %3509 = vmatprep.subr.mxu0 0.0
    %3510 = vmatpush2.msra.mxu0 0.0
    %3511 = vmatprep.subr.mxu0 0.0
    %3512 = vmatpush2.msra.mxu0 0.0
    %3513 = vmatprep.subr.mxu0 0.0
    %3514 = vmatpush2.msra.mxu0 0.0
    %3515 = vmatprep.subr.mxu0 0.0
    %3516 = vmatpush2.msra.mxu0 0.0
    %3517 = vmatprep.subr.mxu0 0.0
    %3518 = vmatpush2.msra.mxu0 0.0
    %3519 = vmatprep.subr.mxu0 0.0
    %3520 = vmatpush2.msra.mxu0 0.0
    %3521 = vmatprep.subr.mxu0 0.0
    %3522 = vmatpush2.msra.mxu0 0.0
    %3523 = vmatprep.subr.mxu0 0.0
    %3524 = vmatpush2.msra.mxu0 0.0
    %3525 = vmatprep.subr.mxu0 0.0
    %3526 = vmatpush2.msra.mxu0 0.0
    %3527 = vmatprep.subr.mxu0 0.0
    %3528 = vmatpush2.msra.mxu0 0.0
    %3529 = vmatprep.subr.mxu0 0.0
    %3530 = vmatpush2.msra.mxu0 0.0
    %3531 = vmatprep.subr.mxu0 0.0
    %3532 = vmatpush2.msra.mxu0 0.0
    %3533 = vmatprep.subr.mxu0 0.0
    %3534 = vmatpush2.msra.mxu0 0.0
    %3535 = vmatprep.mubr.f32.mxu0 0.0
    %3536 = vmatmul.mubr.f32.gmra.mxu0 %v3469
    %v3537 = vpop.f32.mrf.mxu0
    %v3538 = vadd.f32 0.0, %v3537
    %v3539 = vpop.f32.mrf.mxu0
    %3540 = vdwg.mxu0
    %3543 = vrot.lane.b32.xlu0 %v3158, 8
    %v3544 = vpop.permute.xlu0 %3543
    %3545 = vrot.lane.b32.xlu0 %v3234, 8
    %v3546 = vpop.permute.xlu0 %3545
    %3551 = vrot.lane.b32.xlu0 %v3310, 16
    %v3552 = vpop.permute.xlu0 %3551
    %3553 = vrot.lane.b32.xlu0 %v3386, 16
    %v3554 = vpop.permute.xlu0 %3553
    %3559 = vrot.lane.b32.xlu0 %v3462, 24
    %v3560 = vpop.permute.xlu0 %3559
    %3561 = vrot.lane.b32.xlu0 %v3538, 24
    %v3562 = vpop.permute.xlu0 %3561
    %v3565 = vsel %vm371, %v3006, %v3544
    %v3566 = vsel %vm371, %v3082, %v3546
    %v3567 = vsel %vm1716, %v3565, %v3552
    %v3568 = vsel %vm1716, %v3566, %v3554
    %v3569 = vsel %vm1719, %v3567, %v3560
    %v3570 = vsel %vm1719, %v3568, %v3562
    %s3571 = scalar_lea.vmem %s11, 32
    %v3572 = vld [vmem:[%s3571] sm:$0xff]
    %v3573 = vld [vmem:[%s3571 + $0x8] sm:$0xff]
    %v3574 = vld [vmem:[%s3571 + $0x10] sm:$0xff]
    %v3575 = vld [vmem:[%s3571 + $0x18] sm:$0xff]
    %s3576 = scalar_lea.vmem %s12, 1
    %v3577 = vld [vmem:[%s3576] sm:$0x1]
    %v3579 = vlaneseq
    %v3580 = vshrl.u32 %v3579, 7
    %v3581 = vsub.s32 0, %v3580
    %v3582 = vrot.slane %v3577, %v3581
    %v3585 = vsel %vm211, %v3569, 0
    %v3588 = vsel %vm211, %v3570, 0
    %3590 = vmatprep.subr.mxu0 0.0
    %3591 = vmatpush1.msra.mxu0 0.0
    %3592 = vmatprep.subr.mxu0 0.0
    %3593 = vmatpush1.msra.mxu0 0.0
    %3594 = vmatprep.subr.mxu0 0.0
    %3595 = vmatpush1.msra.mxu0 0.0
    %3596 = vmatprep.subr.mxu0 0.0
    %3597 = vmatpush1.msra.mxu0 0.0
    %3598 = vmatprep.subr.mxu0 0.0
    %3599 = vmatpush1.msra.mxu0 0.0
    %3600 = vmatprep.subr.mxu0 0.0
    %3601 = vmatpush1.msra.mxu0 0.0
    %3602 = vmatprep.subr.mxu0 0.0
    %3603 = vmatpush1.msra.mxu0 0.0
    %3604 = vmatprep.subr.mxu0 0.0
    %3605 = vmatpush1.msra.mxu0 0.0
    %3606 = vmatprep.subr.mxu0 0.0
    %3607 = vmatpush1.msra.mxu0 0.0
    %3608 = vmatprep.subr.mxu0 0.0
    %3609 = vmatpush1.msra.mxu0 0.0
    %3610 = vmatprep.subr.mxu0 0.0
    %3611 = vmatpush1.msra.mxu0 0.0
    %3612 = vmatprep.subr.mxu0 0.0
    %3613 = vmatpush1.msra.mxu0 0.0
    %3614 = vmatprep.subr.mxu0 0.0
    %3615 = vmatpush1.msra.mxu0 %v3575
    %3616 = vmatprep.subr.mxu0 0.0
    %3617 = vmatpush1.msra.mxu0 %v3574
    %3618 = vmatprep.subr.mxu0 0.0
    %3619 = vmatpush1.msra.mxu0 %v3573
    %3620 = vmatprep.subr.mxu0 0.0
    %3621 = vmatpush1.msra.mxu0 %v3572
    %3622 = vmatprep.subr.mxu0 0.0
    %3623 = vmatpush2.msra.mxu0 0.0
    %3624 = vmatprep.subr.mxu0 0.0
    %3625 = vmatpush2.msra.mxu0 0.0
    %3626 = vmatprep.subr.mxu0 0.0
    %3627 = vmatpush2.msra.mxu0 0.0
    %3628 = vmatprep.subr.mxu0 0.0
    %3629 = vmatpush2.msra.mxu0 0.0
    %3630 = vmatprep.subr.mxu0 0.0
    %3631 = vmatpush2.msra.mxu0 0.0
    %3632 = vmatprep.subr.mxu0 0.0
    %3633 = vmatpush2.msra.mxu0 0.0
    %3634 = vmatprep.subr.mxu0 0.0
    %3635 = vmatpush2.msra.mxu0 0.0
    %3636 = vmatprep.subr.mxu0 0.0
    %3637 = vmatpush2.msra.mxu0 0.0
    %3638 = vmatprep.subr.mxu0 0.0
    %3639 = vmatpush2.msra.mxu0 0.0
    %3640 = vmatprep.subr.mxu0 0.0
    %3641 = vmatpush2.msra.mxu0 0.0
    %3642 = vmatprep.subr.mxu0 0.0
    %3643 = vmatpush2.msra.mxu0 0.0
    %3644 = vmatprep.subr.mxu0 0.0
    %3645 = vmatpush2.msra.mxu0 0.0
    %3646 = vmatprep.subr.mxu0 0.0
    %3647 = vmatpush2.msra.mxu0 0.0
    %3648 = vmatprep.subr.mxu0 0.0
    %3649 = vmatpush2.msra.mxu0 0.0
    %3650 = vmatprep.subr.mxu0 0.0
    %3651 = vmatpush2.msra.mxu0 0.0
    %3652 = vmatprep.subr.mxu0 0.0
    %3653 = vmatpush2.msra.mxu0 0.0
    %3654 = vmatprep.mubr.f32.mxu0 0.0
    %3655 = vmatmul.mubr.f32.gmra.mxu0 %v3585
    %v3656 = vpop.f32.mrf.mxu0
    %v3657 = vadd.f32 %v3582, %v3656
    %v3658 = vpop.f32.mrf.mxu0
    %3659 = vmatprep.mubr.f32.mxu0 0.0
    %3660 = vmatmul.mubr.f32.gmra.mxu0 %v3588
    %v3661 = vpop.f32.mrf.mxu0
    %v3662 = vadd.f32 %v3582, %v3661
    %v3663 = vpop.f32.mrf.mxu0
    %3664 = vdwg.mxu0
    %v3665 = vadd.f32 %v3657, %v2111
    %v3666 = vadd.f32 %v3662, %v2112
    %s3667 = scalar_lea.vmem %s13, 1
    %v3668 = vld [vmem:[%s3667] sm:$0x1]
    %s3669 = scalar_lea.vmem %s14, 1
    %v3670 = vld [vmem:[%s3669] sm:$0x1]
    %v3671 = vsel %vm211, %v3665, 0.0
    %3672 = vadd.xlane.f32.xlu0 %v3671
    %v3673 = vpop.xlane.xlu0 %3672
    %v3674 = vsel %vm211, %v3666, 0.0
    %3675 = vadd.xlane.f32.xlu0 %v3674
    %v3676 = vpop.xlane.xlu0 %3675
    %v3677 = vmul.f32 %v3673, %v218
    %v3678 = vmul.f32 %v3676, %v218
    %v3679 = vsub.f32 %v3665, %v3677
    %v3680 = vsub.f32 %v3666, %v3678
    %v3681 = vmul.f32 %v3679, %v3679
    %v3682 = vmul.f32 %v3680, %v3680
    %v3683 = vsel %vm211, %v3681, 0.0
    %3684 = vadd.xlane.f32.xlu0 %v3683
    %v3685 = vpop.xlane.xlu0 %3684
    %v3686 = vsel %vm211, %v3682, 0.0
    %3687 = vadd.xlane.f32.xlu0 %v3686
    %v3688 = vpop.xlane.xlu0 %3687
    %v3689 = vmul.f32 %v3685, %v218
    %v3690 = vmul.f32 %v3688, %v218
    %v3691 = vadd.f32 %v3689, 1e-12
    %v3692 = vadd.f32 %v3690, 1e-12
    %v3693 = vrsqrt.pop %v3691
    %v3694 = vrsqrt.pop %v3692
    %v3695 = vmul.f32 %v3679, %v3693
    %v3696 = vmul.f32 %v3680, %v3694
    %v3698 = vlaneseq
    %v3699 = vshrl.u32 %v3698, 7
    %v3700 = vsub.s32 0, %v3699
    %v3701 = vrot.slane %v3668, %v3700
    %v3703 = vmul.f32 %v3695, %v3701
    %v3704 = vmul.f32 %v3696, %v3701
    %v3706 = vlaneseq
    %v3707 = vshrl.u32 %v3706, 7
    %v3708 = vsub.s32 0, %v3707
    %v3709 = vrot.slane %v3670, %v3708
    %v3711 = vadd.f32 %v3703, %v3709
    %v3712 = vadd.f32 %v3704, %v3709
    %s3713 = scalar_lea.vmem %s15, 32
    %v3714 = vld [vmem:[%s3713] sm:$0xff]
    %v3715 = vld [vmem:[%s3713 + $0x8] sm:$0xff]
    %v3716 = vld [vmem:[%s3713 + $0x10] sm:$0xff]
    %v3717 = vld [vmem:[%s3713 + $0x18] sm:$0xff]
    %s3718 = scalar_lea.vmem %s16, 1
    %v3719 = vld [vmem:[%s3718] sm:$0x1]
    %v3721 = vlaneseq
    %v3722 = vshrl.u32 %v3721, 7
    %v3723 = vsub.s32 0, %v3722
    %v3724 = vrot.slane %v3719, %v3723
    %v3727 = vsel %vm211, %v3711, 0
    %v3730 = vsel %vm211, %v3712, 0
    %3732 = vmatprep.subr.mxu0 0.0
    %3733 = vmatpush1.msra.mxu0 0.0
    %3734 = vmatprep.subr.mxu0 0.0
    %3735 = vmatpush1.msra.mxu0 0.0
    %3736 = vmatprep.subr.mxu0 0.0
    %3737 = vmatpush1.msra.mxu0 0.0
    %3738 = vmatprep.subr.mxu0 0.0
    %3739 = vmatpush1.msra.mxu0 0.0
    %3740 = vmatprep.subr.mxu0 0.0
    %3741 = vmatpush1.msra.mxu0 0.0
    %3742 = vmatprep.subr.mxu0 0.0
    %3743 = vmatpush1.msra.mxu0 0.0
    %3744 = vmatprep.subr.mxu0 0.0
    %3745 = vmatpush1.msra.mxu0 0.0
    %3746 = vmatprep.subr.mxu0 0.0
    %3747 = vmatpush1.msra.mxu0 0.0
    %3748 = vmatprep.subr.mxu0 0.0
    %3749 = vmatpush1.msra.mxu0 0.0
    %3750 = vmatprep.subr.mxu0 0.0
    %3751 = vmatpush1.msra.mxu0 0.0
    %3752 = vmatprep.subr.mxu0 0.0
    %3753 = vmatpush1.msra.mxu0 0.0
    %3754 = vmatprep.subr.mxu0 0.0
    %3755 = vmatpush1.msra.mxu0 0.0
    %3756 = vmatprep.subr.mxu0 0.0
    %3757 = vmatpush1.msra.mxu0 %v3717
    %3758 = vmatprep.subr.mxu0 0.0
    %3759 = vmatpush1.msra.mxu0 %v3716
    %3760 = vmatprep.subr.mxu0 0.0
    %3761 = vmatpush1.msra.mxu0 %v3715
    %3762 = vmatprep.subr.mxu0 0.0
    %3763 = vmatpush1.msra.mxu0 %v3714
    %3764 = vmatprep.subr.mxu0 0.0
    %3765 = vmatpush2.msra.mxu0 0.0
    %3766 = vmatprep.subr.mxu0 0.0
    %3767 = vmatpush2.msra.mxu0 0.0
    %3768 = vmatprep.subr.mxu0 0.0
    %3769 = vmatpush2.msra.mxu0 0.0
    %3770 = vmatprep.subr.mxu0 0.0
    %3771 = vmatpush2.msra.mxu0 0.0
    %3772 = vmatprep.subr.mxu0 0.0
    %3773 = vmatpush2.msra.mxu0 0.0
    %3774 = vmatprep.subr.mxu0 0.0
    %3775 = vmatpush2.msra.mxu0 0.0
    %3776 = vmatprep.subr.mxu0 0.0
    %3777 = vmatpush2.msra.mxu0 0.0
    %3778 = vmatprep.subr.mxu0 0.0
    %3779 = vmatpush2.msra.mxu0 0.0
    %3780 = vmatprep.subr.mxu0 0.0
    %3781 = vmatpush2.msra.mxu0 0.0
    %3782 = vmatprep.subr.mxu0 0.0
    %3783 = vmatpush2.msra.mxu0 0.0
    %3784 = vmatprep.subr.mxu0 0.0
    %3785 = vmatpush2.msra.mxu0 0.0
    %3786 = vmatprep.subr.mxu0 0.0
    %3787 = vmatpush2.msra.mxu0 0.0
    %3788 = vmatprep.subr.mxu0 0.0
    %3789 = vmatpush2.msra.mxu0 0.0
    %3790 = vmatprep.subr.mxu0 0.0
    %3791 = vmatpush2.msra.mxu0 0.0
    %3792 = vmatprep.subr.mxu0 0.0
    %3793 = vmatpush2.msra.mxu0 0.0
    %3794 = vmatprep.subr.mxu0 0.0
    %3795 = vmatpush2.msra.mxu0 0.0
    %3796 = vmatprep.mubr.f32.mxu0 0.0
    %3797 = vmatmul.mubr.f32.gmra.mxu0 %v3727
    %v3798 = vpop.f32.mrf.mxu0
    %v3799 = vadd.f32 %v3724, %v3798
    %v3800 = vpop.f32.mrf.mxu0
    %3801 = vmatprep.mubr.f32.mxu0 0.0
    %3802 = vmatmul.mubr.f32.gmra.mxu0 %v3730
    %v3803 = vpop.f32.mrf.mxu0
    %v3804 = vadd.f32 %v3724, %v3803
    %v3805 = vpop.f32.mrf.mxu0
    %3806 = vdwg.mxu0
    %v3807 = vmul.f32 %v3799, 0.5
    %v3808 = vmul.f32 %v3804, 0.5
    %v3809 = vmul.f32 %v3799, 0.044715
    %v3810 = vmul.f32 %v3804, 0.044715
    %v3811 = vmul.f32 %v3809, %v3799
    %v3812 = vmul.f32 %v3810, %v3804
    %v3813 = vmul.f32 %v3811, %v3799
    %v3814 = vmul.f32 %v3812, %v3804
    %v3815 = vadd.f32 %v3799, %v3813
    %v3816 = vadd.f32 %v3804, %v3814
    %v3817 = vmul.f32 %v3815, 0.7978846
    %v3818 = vmul.f32 %v3816, 0.7978846
    %v3819 = vtanh.pop %v3817
    %v3820 = vtanh.pop %v3818
    %v3821 = vadd.f32 %v3819, 1.0
    %v3822 = vadd.f32 %v3820, 1.0
    %v3823 = vmul.f32 %v3807, %v3821
    %v3824 = vmul.f32 %v3808, %v3822
    %s3825 = scalar_lea.vmem %s17, 64
    %v3826 = vld [vmem:[%s3825] sm:$0xff]
    %v3827 = vld [vmem:[%s3825 + $0x8] sm:$0xff]
    %v3828 = vld [vmem:[%s3825 + $0x10] sm:$0xff]
    %v3829 = vld [vmem:[%s3825 + $0x18] sm:$0xff]
    %v3830 = vld [vmem:[%s3825 + $0x20] sm:$0xff]
    %v3831 = vld [vmem:[%s3825 + $0x28] sm:$0xff]
    %v3832 = vld [vmem:[%s3825 + $0x30] sm:$0xff]
    %v3833 = vld [vmem:[%s3825 + $0x38] sm:$0xff]
    %s3834 = scalar_lea.vmem %s18, 1
    %v3835 = vld [vmem:[%s3834] sm:$0x1]
    %v3837 = vlaneseq
    %v3838 = vshrl.u32 %v3837, 7
    %v3839 = vsub.s32 0, %v3838
    %v3840 = vrot.slane %v3835, %v3839
    %v3843 = vsel %vm1985, %v3823, 0
    %v3846 = vsel %vm1985, %v3824, 0
    %3848 = vmatprep.subr.mxu0 0.0
    %3849 = vmatpush1.msra.mxu0 0.0
    %3850 = vmatprep.subr.mxu0 0.0
    %3851 = vmatpush1.msra.mxu0 0.0
    %3852 = vmatprep.subr.mxu0 0.0
    %3853 = vmatpush1.msra.mxu0 0.0
    %3854 = vmatprep.subr.mxu0 0.0
    %3855 = vmatpush1.msra.mxu0 0.0
    %3856 = vmatprep.subr.mxu0 0.0
    %3857 = vmatpush1.msra.mxu0 0.0
    %3858 = vmatprep.subr.mxu0 0.0
    %3859 = vmatpush1.msra.mxu0 0.0
    %3860 = vmatprep.subr.mxu0 0.0
    %3861 = vmatpush1.msra.mxu0 0.0
    %3862 = vmatprep.subr.mxu0 0.0
    %3863 = vmatpush1.msra.mxu0 0.0
    %3864 = vmatprep.subr.mxu0 0.0
    %3865 = vmatpush1.msra.mxu0 %v3833
    %3866 = vmatprep.subr.mxu0 0.0
    %3867 = vmatpush1.msra.mxu0 %v3832
    %3868 = vmatprep.subr.mxu0 0.0
    %3869 = vmatpush1.msra.mxu0 %v3831
    %3870 = vmatprep.subr.mxu0 0.0
    %3871 = vmatpush1.msra.mxu0 %v3830
    %3872 = vmatprep.subr.mxu0 0.0
    %3873 = vmatpush1.msra.mxu0 %v3829
    %3874 = vmatprep.subr.mxu0 0.0
    %3875 = vmatpush1.msra.mxu0 %v3828
    %3876 = vmatprep.subr.mxu0 0.0
    %3877 = vmatpush1.msra.mxu0 %v3827
    %3878 = vmatprep.subr.mxu0 0.0
    %3879 = vmatpush1.msra.mxu0 %v3826
    %3880 = vmatprep.subr.mxu0 0.0
    %3881 = vmatpush2.msra.mxu0 0.0
    %3882 = vmatprep.subr.mxu0 0.0
    %3883 = vmatpush2.msra.mxu0 0.0
    %3884 = vmatprep.subr.mxu0 0.0
    %3885 = vmatpush2.msra.mxu0 0.0
    %3886 = vmatprep.subr.mxu0 0.0
    %3887 = vmatpush2.msra.mxu0 0.0
    %3888 = vmatprep.subr.mxu0 0.0
    %3889 = vmatpush2.msra.mxu0 0.0
    %3890 = vmatprep.subr.mxu0 0.0
    %3891 = vmatpush2.msra.mxu0 0.0
    %3892 = vmatprep.subr.mxu0 0.0
    %3893 = vmatpush2.msra.mxu0 0.0
    %3894 = vmatprep.subr.mxu0 0.0
    %3895 = vmatpush2.msra.mxu0 0.0
    %3896 = vmatprep.subr.mxu0 0.0
    %3897 = vmatpush2.msra.mxu0 0.0
    %3898 = vmatprep.subr.mxu0 0.0
    %3899 = vmatpush2.msra.mxu0 0.0
    %3900 = vmatprep.subr.mxu0 0.0
    %3901 = vmatpush2.msra.mxu0 0.0
    %3902 = vmatprep.subr.mxu0 0.0
    %3903 = vmatpush2.msra.mxu0 0.0
    %3904 = vmatprep.subr.mxu0 0.0
    %3905 = vmatpush2.msra.mxu0 0.0
    %3906 = vmatprep.subr.mxu0 0.0
    %3907 = vmatpush2.msra.mxu0 0.0
    %3908 = vmatprep.subr.mxu0 0.0
    %3909 = vmatpush2.msra.mxu0 0.0
    %3910 = vmatprep.subr.mxu0 0.0
    %3911 = vmatpush2.msra.mxu0 0.0
    %3912 = vmatprep.mubr.f32.mxu0 0.0
    %3913 = vmatmul.mubr.f32.gmra.mxu0 %v3843
    %v3914 = vpop.f32.mrf.mxu0
    %v3915 = vadd.f32 %v3840, %v3914
    %v3916 = vpop.f32.mrf.mxu0
    %3917 = vmatprep.mubr.f32.mxu0 0.0
    %3918 = vmatmul.mubr.f32.gmra.mxu0 %v3846
    %v3919 = vpop.f32.mrf.mxu0
    %v3920 = vadd.f32 %v3840, %v3919
    %v3921 = vpop.f32.mrf.mxu0
    %3922 = vdwg.mxu0
    %v3923 = vadd.f32 %v3915, %v3711
    %v3924 = vadd.f32 %v3920, %v3712
    %s3925 = scalar_lea.vmem %s19, 1
    %v3926 = vld [vmem:[%s3925] sm:$0x1]
    %s3927 = scalar_lea.vmem %s20, 1
    %v3928 = vld [vmem:[%s3927] sm:$0x1]
    %v3929 = vsel %vm211, %v3923, 0.0
    %3930 = vadd.xlane.f32.xlu0 %v3929
    %v3931 = vpop.xlane.xlu0 %3930
    %v3932 = vsel %vm211, %v3924, 0.0
    %3933 = vadd.xlane.f32.xlu0 %v3932
    %v3934 = vpop.xlane.xlu0 %3933
    %v3935 = vmul.f32 %v3931, %v218
    %v3936 = vmul.f32 %v3934, %v218
    %v3937 = vsub.f32 %v3923, %v3935
    %v3938 = vsub.f32 %v3924, %v3936
    %v3939 = vmul.f32 %v3937, %v3937
    %v3940 = vmul.f32 %v3938, %v3938
    %v3941 = vsel %vm211, %v3939, 0.0
    %3942 = vadd.xlane.f32.xlu0 %v3941
    %v3943 = vpop.xlane.xlu0 %3942
    %v3944 = vsel %vm211, %v3940, 0.0
    %3945 = vadd.xlane.f32.xlu0 %v3944
    %v3946 = vpop.xlane.xlu0 %3945
    %v3947 = vmul.f32 %v3943, %v218
    %v3948 = vmul.f32 %v3946, %v218
    %v3949 = vadd.f32 %v3947, 1e-12
    %v3950 = vadd.f32 %v3948, 1e-12
    %v3951 = vrsqrt.pop %v3949
    %v3952 = vrsqrt.pop %v3950
    %v3953 = vmul.f32 %v3937, %v3951
    %v3954 = vmul.f32 %v3938, %v3952
    %v3956 = vlaneseq
    %v3957 = vshrl.u32 %v3956, 7
    %v3958 = vsub.s32 0, %v3957
    %v3959 = vrot.slane %v3926, %v3958
    %v3961 = vmul.f32 %v3953, %v3959
    %v3962 = vmul.f32 %v3954, %v3959
    %v3964 = vlaneseq
    %v3965 = vshrl.u32 %v3964, 7
    %v3966 = vsub.s32 0, %v3965
    %v3967 = vrot.slane %v3928, %v3966
    %v3969 = vadd.f32 %v3961, %v3967
    %v3970 = vadd.f32 %v3962, %v3967
    %v3971 = vld [vmem:[%s4] sm:$0x3]
    %v3973 = vsel %vm1716, %v3971, 0
    %3975 = vmatprep.subr.mxu0 0.0
    %3976 = vmatpush1.msra.mxu0 0.0
    %3977 = vmatprep.subr.mxu0 0.0
    %3978 = vmatpush1.msra.mxu0 0.0
    %3979 = vmatprep.subr.mxu0 0.0
    %3980 = vmatpush1.msra.mxu0 0.0
    %3981 = vmatprep.subr.mxu0 0.0
    %3982 = vmatpush1.msra.mxu0 0.0
    %3983 = vmatprep.subr.mxu0 0.0
    %3984 = vmatpush1.msra.mxu0 0.0
    %3985 = vmatprep.subr.mxu0 0.0
    %3986 = vmatpush1.msra.mxu0 0.0
    %3987 = vmatprep.subr.mxu0 0.0
    %3988 = vmatpush1.msra.mxu0 0.0
    %3989 = vmatprep.subr.mxu0 0.0
    %3990 = vmatpush1.msra.mxu0 0.0
    %3991 = vmatprep.subr.mxu0 0.0
    %3992 = vmatpush1.msra.mxu0 0.0
    %3993 = vmatprep.subr.mxu0 0.0
    %3994 = vmatpush1.msra.mxu0 0.0
    %3995 = vmatprep.subr.mxu0 0.0
    %3996 = vmatpush1.msra.mxu0 0.0
    %3997 = vmatprep.subr.mxu0 0.0
    %3998 = vmatpush1.msra.mxu0 0.0
    %3999 = vmatprep.subr.mxu0 0.0
    %4000 = vmatpush1.msra.mxu0 0.0
    %4001 = vmatprep.subr.mxu0 0.0
    %4002 = vmatpush1.msra.mxu0 0.0
    %4003 = vmatprep.subr.mxu0 0.0
    %4004 = vmatpush1.msra.mxu0 %v3970
    %4005 = vmatprep.subr.mxu0 0.0
    %4006 = vmatpush1.msra.mxu0 %v3969
    %4007 = vmatprep.subr.mxu0 0.0
    %4008 = vmatpush2.msra.mxu0 0.0
    %4009 = vmatprep.subr.mxu0 0.0
    %4010 = vmatpush2.msra.mxu0 0.0
    %4011 = vmatprep.subr.mxu0 0.0
    %4012 = vmatpush2.msra.mxu0 0.0
    %4013 = vmatprep.subr.mxu0 0.0
    %4014 = vmatpush2.msra.mxu0 0.0
    %4015 = vmatprep.subr.mxu0 0.0
    %4016 = vmatpush2.msra.mxu0 0.0
    %4017 = vmatprep.subr.mxu0 0.0
    %4018 = vmatpush2.msra.mxu0 0.0
    %4019 = vmatprep.subr.mxu0 0.0
    %4020 = vmatpush2.msra.mxu0 0.0
    %4021 = vmatprep.subr.mxu0 0.0
    %4022 = vmatpush2.msra.mxu0 0.0
    %4023 = vmatprep.subr.mxu0 0.0
    %4024 = vmatpush2.msra.mxu0 0.0
    %4025 = vmatprep.subr.mxu0 0.0
    %4026 = vmatpush2.msra.mxu0 0.0
    %4027 = vmatprep.subr.mxu0 0.0
    %4028 = vmatpush2.msra.mxu0 0.0
    %4029 = vmatprep.subr.mxu0 0.0
    %4030 = vmatpush2.msra.mxu0 0.0
    %4031 = vmatprep.subr.mxu0 0.0
    %4032 = vmatpush2.msra.mxu0 0.0
    %4033 = vmatprep.subr.mxu0 0.0
    %4034 = vmatpush2.msra.mxu0 0.0
    %4035 = vmatprep.subr.mxu0 0.0
    %4036 = vmatpush2.msra.mxu0 0.0
    %4037 = vmatprep.subr.mxu0 0.0
    %4038 = vmatpush2.msra.mxu0 0.0
    %4039 = vmatprep.mubr.f32.mxu0 0.0
    %4040 = vmatmul.mubr.f32.gmra.mxu0 %v3973
    %v4041 = vpop.f32.mrf.mxu0
    %v4042 = vadd.f32 0.0, %v4041
    %v4043 = vpop.f32.mrf.mxu0
    %4044 = vdwg.mxu0
    %vm4045 = vcmask 254976
    %4046 = vst.msk [vmem:[#allocation2] sm:$0x3] %vm4045, %v4042
    // Predicated region
    $region86: #{bert_embeddings_forward.1} parent=1 // pred_check
      _
    $region87: #{bert_embeddings_forward.1} parent=1 // pred_check_branch
      %4048 = sbr.rel (0) target = $region89
    $region88: #{bert_embeddings_forward.1} parent=1 // pred_region
      %s4050 = ssub.s32 32, 32
      %4051 = vsyncadd [#allocation3], %s4050
      %s4053 = sshll.u32 [#allocation2], 4
      %s4054 = int_to_ptr.vmem [resolvable:$true] %s4053
      %4056 = dma.vmem_to_hbm [thread:$0]  %s4054, 32, %s21, [#allocation3]
    $region89: #{bert_embeddings_forward.1} parent=1 // pred_fallthru
      _
    // Predicated region
    $region90: #{bert_embeddings_forward.1} parent=1 // pred_check
      _
    $region91: #{bert_embeddings_forward.1} parent=1 // pred_check_branch
      %4058 = sbr.rel (0) target = $region93
    $region92: #{bert_embeddings_forward.1} parent=1 // pred_region
      %4059 = dma.done [#allocation3], 32
    $region93: #{bert_embeddings_forward.1} parent=1 // pred_fallthru
      _
    %4060 = vsyncpa [#allocation3], 1

</llo_original>
